<compile_context>
chip_gen: v7x
topology: tpu7x:2x2x1
jax: 0.10.0
libtpu: 0.0.40
codegen_flags: <defaults>
</compile_context>

<pallas_src>
import functools

import jax
import jax.numpy as jnp
from jax.experimental import pallas as pl
from jax.experimental.pallas import tpu as pltpu

BN_EPS = 1e-5


# ------------------------------ Pallas kernel --------------------------------

def _fused_matmul_kernel(*refs, has_other, has_bn, has_res, relu):
    """out = relu?( (W @ X [+ other]) [* scale + shift] [+ residual] )."""
    it = iter(refs)
    w_ref = next(it)
    x_ref = next(it)
    other_ref = next(it) if has_other else None
    scale_ref = next(it) if has_bn else None
    shift_ref = next(it) if has_bn else None
    res_ref = next(it) if has_res else None
    o_ref = next(it)

    acc = jnp.dot(w_ref[...], x_ref[...], preferred_element_type=jnp.float32)
    if has_other:
        acc = acc + other_ref[...].astype(jnp.float32)
    if has_bn:
        acc = acc * scale_ref[...] + shift_ref[...]
    if has_res:
        acc = acc + res_ref[...].astype(jnp.float32)
    if relu:
        acc = jnp.maximum(acc, 0.0)
    o_ref[...] = acc.astype(o_ref.dtype)


def _pick_tile_n(n):
    # Prefer >=2 lane-dense grid steps when N is large enough (lets v7x split
    # the grid across its 2 TensorCores); otherwise one full block so odd /
    # small N (e.g. B=1 low path) still compiles without padding asserts.
    for t in (512, 384, 256):
        if n > t and n % t == 0:
            return t
    return n


def pallas_fused_matmul(w, x, other, scale, shift, residual, relu, out_dtype):
    cout, k = w.shape
    n = x.shape[1]
    tn = _pick_tile_n(n)
    grid = (n // tn,)

    in_specs = [pl.BlockSpec((cout, k), lambda i: (0, 0)),    # weights resident
                pl.BlockSpec((k, tn), lambda i: (0, i))]
    args = [w, x]
    if other is not None:
        in_specs.append(pl.BlockSpec((cout, tn), lambda i: (0, i)))
        args.append(other)
    if scale is not None:
        in_specs.append(pl.BlockSpec((cout, 1), lambda i: (0, 0)))
        in_specs.append(pl.BlockSpec((cout, 1), lambda i: (0, 0)))
        args += [scale, shift]
    if residual is not None:
        in_specs.append(pl.BlockSpec((cout, tn), lambda i: (0, i)))
        args.append(residual)

    kern = functools.partial(_fused_matmul_kernel,
                             has_other=other is not None,
                             has_bn=scale is not None,
                             has_res=residual is not None,
                             relu=relu)
    return pl.pallas_call(
        kern,
        out_shape=jax.ShapeDtypeStruct((cout, n), out_dtype),
        grid=grid,
        in_specs=in_specs,
        out_specs=pl.BlockSpec((cout, tn), lambda i: (0, i)),
        compiler_params=pltpu.CompilerParams(
            dimension_semantics=("parallel",)),
    )(*args)


def fused_matmul_op(w, x, other=None, scale=None, shift=None, residual=None,
                    relu=False, out_dtype=jnp.bfloat16, use_pallas=True):
    """Pallas fused matmul, or the identical pure-JAX math for reference."""
    if use_pallas:
        return pallas_fused_matmul(w, x, other, scale, shift, residual,
                                   relu, out_dtype)
    acc = jnp.dot(w, x, preferred_element_type=jnp.float32)
    if other is not None:
        acc = acc + other.astype(jnp.float32)
    if scale is not None:
        acc = acc * scale + shift
    if residual is not None:
        acc = acc + residual.astype(jnp.float32)
    if relu:
        acc = jnp.maximum(acc, 0.0)
    return acc.astype(out_dtype)


# ------------------------------- glue helpers --------------------------------
# Activations are kept channel-major: (C, B, H, W), flattened to (C, N) at
# kernel boundaries (a free trailing-dims reshape).

def avgpool2(x):  # nn.AvgPool2d(2, 2)
    c, b, h, w = x.shape
    return x.reshape(c, b, h // 2, 2, w // 2, 2).mean(axis=(3, 5)).astype(x.dtype)


def upsample2(x):  # nn.Upsample(scale_factor=2, mode='nearest')
    return jnp.repeat(jnp.repeat(x, 2, axis=2), 2, axis=3)


def im2col(x, k):  # stride 1, padding k//2; (C,B,H,W) -> (k*k*C, B, H, W)
    if k == 1:
        return x
    c, b, h, w = x.shape
    pad = k // 2
    xp = jnp.pad(x, ((0, 0), (0, 0), (pad, pad), (pad, pad)))
    cols = [xp[:, :, ky:ky + h, kx:kx + w]
            for ky in range(k) for kx in range(k)]
    return jnp.concatenate(cols, axis=0)


def flat(x):  # (C, B, H, W) -> (C, N)
    return x.reshape(x.shape[0], -1)


def unflat(x, b, h, w):
    return x.reshape(x.shape[0], b, h, w)


def bn_scale_shift(p):  # inference BN as per-channel affine, shape (C, 1) f32
    scale = p["gamma"] / jnp.sqrt(p["var"] + BN_EPS)
    shift = p["beta"] - p["mean"] * scale
    return scale[:, None], shift[:, None]


# ------------------------------- octave units --------------------------------

def octave_unit(xh, xl, p, ksize, relu, res_h=None, res_l=None,
                out_dtype=jnp.bfloat16, use_pallas=True):
    """OctaveConv + BN (+ReLU) stage, stride=1, alpha=0.5.

    xh: (Cin_h, B, H, W) bf16 ; xl: (Cin_l, B, H/2, W/2) bf16.
    If res_h/res_l are given they are added after BN and ReLU follows
    (used to fold the Bottleneck residual into the last stage's epilogue).
    """
    c_h = p["w_h2h"].shape[0]
    _, b, hh, ww = xh.shape
    hl, wl = xl.shape[2], xl.shape[3]

    sc_h, sh_h = bn_scale_shift(p["bn_h"])
    sc_l, sh_l = bn_scale_shift(p["bn_l"])

    # (1) l2h and l2l share the x_l operand -> one matmul with concat weights.
    xl_pat = flat(im2col(xl, ksize))
    y_low = fused_matmul_op(p["w_low_cat"], xl_pat,
                            out_dtype=jnp.bfloat16, use_pallas=use_pallas)
    y_l2h_up = flat(upsample2(unflat(y_low[:c_h], b, hl, wl)))
    y_l2l = y_low[c_h:]

    # (2) high output: h2h conv + upsampled l2h + BN (+ReLU) (+residual) fused.
    h_out = fused_matmul_op(
        p["w_h2h"], flat(im2col(xh, ksize)), other=y_l2h_up,
        scale=sc_h, shift=sh_h,
        residual=None if res_h is None else flat(res_h),
        relu=relu, out_dtype=out_dtype, use_pallas=use_pallas)

    # (3) low output: h2l conv on pooled x_h + l2l + BN (+ReLU) (+residual).
    l_out = fused_matmul_op(
        p["w_h2l"], flat(im2col(avgpool2(xh), ksize)), other=y_l2l,
        scale=sc_l, shift=sh_l,
        residual=None if res_l is None else flat(res_l),
        relu=relu, out_dtype=out_dtype, use_pallas=use_pallas)

    return unflat(h_out, b, hh, ww), unflat(l_out, b, hl, wl)


@functools.partial(jax.jit, static_argnames=("use_pallas",))
def bottleneck_forward(x_h_nchw, x_l_nchw, params, use_pallas=True):
    """Bottleneck.forward for First=False, stride=1, downsample=None."""
    # NCHW -> channel-major CNHW so flattening to (C, B*H*W) is free and the
    # big batch*spatial dim lands on the 128-lane axis of every Pallas tile.
    xh = jnp.transpose(x_h_nchw, (1, 0, 2, 3)).astype(jnp.float32)
    xl = jnp.transpose(x_l_nchw, (1, 0, 2, 3)).astype(jnp.float32)
    xh_b = xh.astype(jnp.bfloat16)
    xl_b = xl.astype(jnp.bfloat16)

    h, l = octave_unit(xh_b, xl_b, params["ocb1"], 1, True,
                       use_pallas=use_pallas)                  # OctaveCBR 1x1
    h, l = octave_unit(h, l, params["ocb2"], 3, True,
                       use_pallas=use_pallas)                  # OctaveCBR 3x3
    # OctaveCB 1x1 has no ReLU of its own; the Bottleneck residual add and the
    # final ReLU are folded into this stage's matmul epilogue.
    h, l = octave_unit(h, l, params["ocb3"], 1, True,
                       res_h=xh, res_l=xl,
                       out_dtype=jnp.float32, use_pallas=use_pallas)

    # back to NCHW like PyTorch
    return (jnp.transpose(h, (1, 0, 2, 3)),
            jnp.transpose(l, (1, 0, 2, 3)))


# ---------------------------- parameter builders ------------------------------

def make_conv_w_mat(key, cin, cout, k):
    # PyTorch weight (Cout, Cin, k, k) -> matmul layout (Cout, k*k*Cin),
    # columns ordered (ky, kx, ci) to match the im2col concat; bf16 for the MXU.
    w = jax.random.normal(key, (cout, cin, k, k), jnp.float32) * 0.1
    m = jnp.transpose(w, (0, 2, 3, 1)).reshape(cout, k * k * cin)
    return m.astype(jnp.bfloat16)


def make_bn(key, c):
    k1, k2, k3, k4 = jax.random.split(key, 4)
    return dict(
        gamma=1.0 + 0.1 * jax.random.normal(k1, (c,), jnp.float32),
        beta=0.05 * jax.random.normal(k2, (c,), jnp.float32),
        mean=0.1 * jax.random.normal(k3, (c,), jnp.float32),
        var=1.0 + 0.1 * jax.random.uniform(k4, (c,), jnp.float32),
    )


def make_octave_params(key, cin, cout, k):
    cin_l, cin_h = cin // 2, cin - cin // 2       # alpha = 0.5
    cout_l, cout_h = cout // 2, cout - cout // 2
    ks = jax.random.split(key, 6)
    w_h2h = make_conv_w_mat(ks[0], cin_h, cout_h, k)
    w_l2h = make_conv_w_mat(ks[1], cin_l, cout_h, k)
    w_l2l = make_conv_w_mat(ks[2], cin_l, cout_l, k)
    w_h2l = make_conv_w_mat(ks[3], cin_h, cout_l, k)
    return dict(
        w_h2h=w_h2h,
        w_h2l=w_h2l,
        # l2h and l2l consume the same x_l operand -> single fused matmul.
        w_low_cat=jnp.concatenate([w_l2h, w_l2l], axis=0),
        bn_h=make_bn(ks[4], cout_h),
        bn_l=make_bn(ks[5], cout_l),
    )


def make_bottleneck_params(key, inplanes, planes, expansion=4):
    width = planes  # groups=1, base_width=64
    k1, k2, k3 = jax.random.split(key, 3)
    return dict(
        ocb1=make_octave_params(k1, inplanes, width, 1),
        ocb2=make_octave_params(k2, width, width, 3),
        ocb3=make_octave_params(k3, width, planes * expansion, 1),
    )
    # TODO(synk): stride=2 (extra AvgPool inside OctaveConv), First=True and
    # downsample branches are not exercised in this configuration.


# ------------------------------------ main ------------------------------------

if __name__ == "__main__":
    inplanes, planes = 64, 16     # planes * expansion == inplanes -> residual matches
    B, H, W = 2, 16, 16
    ch_h = inplanes - inplanes // 2   # 32 high-frequency channels
    ch_l = inplanes // 2              # 32 low-frequency channels (half spatial)

    root = jax.random.PRNGKey(0)
    kp, kxh, kxl = jax.random.split(root, 3)
    params = make_bottleneck_params(kp, inplanes, planes)

    x_h = jax.random.normal(kxh, (B, ch_h, H, W), jnp.float32)            # NCHW
    x_l = jax.random.normal(kxl, (B, ch_l, H // 2, W // 2), jnp.float32)  # NCHW

    out_h, out_l = bottleneck_forward(x_h, x_l, params, use_pallas=True)
    jax.block_until_ready((out_h, out_l))

    # pure-JAX reference of the exact same math (no Pallas) as a sanity check
    ref_h, ref_l = bottleneck_forward(x_h, x_l, params, use_pallas=False)
    jax.block_until_ready((ref_h, ref_l))

    assert out_h.shape == (B, ch_h, H, W)
    assert out_l.shape == (B, ch_l, H // 2, W // 2)
    assert jnp.allclose(out_h, ref_h, atol=1e-2, rtol=1e-2)
    assert jnp.allclose(out_l, ref_l, atol=1e-2, rtol=1e-2)

    print("KERNEL_OK")
</pallas_src>

<mosaic_0001>
module attributes {stable_mosaic.version = 11 : i64} {
  func.func @_fused_matmul_kernel(%arg0: i32, %arg1: memref<16x32xbf16, #tpu.memory_space<vmem>>, %arg2: memref<32x128xbf16, #tpu.memory_space<vmem>>, %arg3: memref<16x128xbf16, #tpu.memory_space<vmem>>) attributes {dimension_semantics = [#tpu.dimension_semantics<parallel>], iteration_bounds = array<i64: 1>, scalar_prefetch = 0 : i64, scratch_operands = 0 : i64, tpu.core_type = #tpu.core_type<tc>, window_params = [{pipeline_mode = #tpu.pipeline_mode<synchronous>, transform_indices = @transform_0, window_bounds = array<i64: 16, 32>}, {transform_indices = @transform_1, window_bounds = array<i64: 32, 128>}, {transform_indices = @transform_2, window_bounds = array<i64: 16, 128>}]} {
    %c0 = arith.constant 0 : index
    %c0_0 = arith.constant 0 : index
    %0 = vector.load %arg1[%c0, %c0_0] : memref<16x32xbf16, #tpu.memory_space<vmem>>, vector<16x32xbf16>
    %c0_1 = arith.constant 0 : index
    %c0_2 = arith.constant 0 : index
    %1 = vector.load %arg2[%c0_1, %c0_2] : memref<32x128xbf16, #tpu.memory_space<vmem>>, vector<32x128xbf16>
    %cst = arith.constant dense<0.000000e+00> : vector<16x128xf32>
    %2 = tpu.matmul %0, %1, %cst {dimension_numbers = #tpu.dot_dimension_numbers<[1], [0], [0], [1], [0, 0, 1, 1], [], []>} : vector<16x32xbf16>, vector<32x128xbf16>, vector<16x128xf32> -> vector<16x128xf32>
    %3 = arith.truncf %2 : vector<16x128xf32> to vector<16x128xbf16>
    %c0_3 = arith.constant 0 : index
    %c0_4 = arith.constant 0 : index
    %4 = vector.load %arg3[%c0_3, %c0_4] : memref<16x128xbf16, #tpu.memory_space<vmem>>, vector<16x128xbf16>
    tpu.vector_store %arg3[%c0_3, %c0_4], %3 {strides = array<i32>} : memref<16x128xbf16, #tpu.memory_space<vmem>>, vector<16x128xbf16>,
    return
  }
  func.func @transform_0(%arg0: i32) -> (i32, i32) {
    %c0_i32 = arith.constant 0 : i32
    %c0_i32_0 = arith.constant 0 : i32
    %c0_i32_1 = arith.constant 0 : i32
    return %c0_i32, %c0_i32_0 : i32, i32
  }
  func.func @transform_1(%arg0: i32) -> (i32, i32) {
    %c0_i32 = arith.constant 0 : i32
    %c0_i32_0 = arith.constant 0 : i32
    return %c0_i32, %arg0 : i32, i32
  }
  func.func @transform_2(%arg0: i32) -> (i32, i32) {
    %c0_i32 = arith.constant 0 : i32
    %c0_i32_0 = arith.constant 0 : i32
    return %c0_i32, %arg0 : i32, i32
  }
}

module attributes {stable_mosaic.version = 11 : i64} {
  func.func @_fused_matmul_kernel(%arg0: i32, %arg1: memref<8x32xbf16, #tpu.memory_space<vmem>>, %arg2: memref<32x256xbf16, #tpu.memory_space<vmem>>, %arg3: memref<8x256xbf16, #tpu.memory_space<vmem>>, %arg4: memref<8x1xf32, #tpu.memory_space<vmem>>, %arg5: memref<8x1xf32, #tpu.memory_space<vmem>>, %arg6: memref<8x256xbf16, #tpu.memory_space<vmem>>) attributes {dimension_semantics = [#tpu.dimension_semantics<parallel>], iteration_bounds = array<i64: 2>, scalar_prefetch = 0 : i64, scratch_operands = 0 : i64, tpu.core_type = #tpu.core_type<tc>, window_params = [{pipeline_mode = #tpu.pipeline_mode<synchronous>, transform_indices = @transform_0, window_bounds = array<i64: 8, 32>}, {transform_indices = @transform_1, window_bounds = array<i64: 32, 256>}, {transform_indices = @transform_2, window_bounds = array<i64: 8, 256>}, {pipeline_mode = #tpu.pipeline_mode<synchronous>, transform_indices = @transform_3, window_bounds = array<i64: 8, 1>}, {pipeline_mode = #tpu.pipeline_mode<synchronous>, transform_indices = @transform_4, window_bounds = array<i64: 8, 1>}, {transform_indices = @transform_5, window_bounds = array<i64: 8, 256>}]} {
    %c0 = arith.constant 0 : index
    %c0_0 = arith.constant 0 : index
    %0 = vector.load %arg1[%c0, %c0_0] : memref<8x32xbf16, #tpu.memory_space<vmem>>, vector<8x32xbf16>
    %c0_1 = arith.constant 0 : index
    %c0_2 = arith.constant 0 : index
    %1 = vector.load %arg2[%c0_1, %c0_2] : memref<32x256xbf16, #tpu.memory_space<vmem>>, vector<32x256xbf16>
    %cst = arith.constant dense<0.000000e+00> : vector<8x256xf32>
    %2 = tpu.matmul %0, %1, %cst {dimension_numbers = #tpu.dot_dimension_numbers<[1], [0], [0], [1], [0, 0, 1, 1], [], []>} : vector<8x32xbf16>, vector<32x256xbf16>, vector<8x256xf32> -> vector<8x256xf32>
    %c0_3 = arith.constant 0 : index
    %c0_4 = arith.constant 0 : index
    %3 = vector.load %arg3[%c0_3, %c0_4] : memref<8x256xbf16, #tpu.memory_space<vmem>>, vector<8x256xbf16>
    %4 = arith.extf %3 : vector<8x256xbf16> to vector<8x256xf32>
    %5 = arith.addf %2, %4 : vector<8x256xf32>
    %c0_5 = arith.constant 0 : index
    %c0_6 = arith.constant 0 : index
    %6 = vector.load %arg4[%c0_5, %c0_6] : memref<8x1xf32, #tpu.memory_space<vmem>>, vector<8x1xf32>
    %7 = vector.broadcast %6 : vector<8x1xf32> to vector<8x256xf32>
    %8 = arith.mulf %5, %7 : vector<8x256xf32>
    %c0_7 = arith.constant 0 : index
    %c0_8 = arith.constant 0 : index
    %9 = vector.load %arg5[%c0_7, %c0_8] : memref<8x1xf32, #tpu.memory_space<vmem>>, vector<8x1xf32>
    %10 = vector.broadcast %9 : vector<8x1xf32> to vector<8x256xf32>
    %11 = arith.addf %8, %10 : vector<8x256xf32>
    %cst_9 = arith.constant 0.000000e+00 : f32
    %12 = vector.broadcast %cst_9 : f32 to vector<8x256xf32>
    %13 = arith.maximumf %11, %12 : vector<8x256xf32>
    %14 = arith.truncf %13 : vector<8x256xf32> to vector<8x256xbf16>
    %c0_10 = arith.constant 0 : index
    %c0_11 = arith.constant 0 : index
    %15 = vector.load %arg6[%c0_10, %c0_11] : memref<8x256xbf16, #tpu.memory_space<vmem>>, vector<8x256xbf16>
    tpu.vector_store %arg6[%c0_10, %c0_11], %14 {strides = array<i32>} : memref<8x256xbf16, #tpu.memory_space<vmem>>, vector<8x256xbf16>,
    return
  }
  func.func @transform_0(%arg0: i32) -> (i32, i32) {
    %c0_i32 = arith.constant 0 : i32
    %c0_i32_0 = arith.constant 0 : i32
    %c0_i32_1 = arith.constant 0 : i32
    return %c0_i32, %c0_i32_0 : i32, i32
  }
  func.func @transform_1(%arg0: i32) -> (i32, i32) {
    %c0_i32 = arith.constant 0 : i32
    %c0_i32_0 = arith.constant 0 : i32
    return %c0_i32, %arg0 : i32, i32
  }
  func.func @transform_2(%arg0: i32) -> (i32, i32) {
    %c0_i32 = arith.constant 0 : i32
    %c0_i32_0 = arith.constant 0 : i32
    return %c0_i32, %arg0 : i32, i32
  }
  func.func @transform_3(%arg0: i32) -> (i32, i32) {
    %c0_i32 = arith.constant 0 : i32
    %c0_i32_0 = arith.constant 0 : i32
    %c0_i32_1 = arith.constant 0 : i32
    return %c0_i32, %c0_i32_0 : i32, i32
  }
  func.func @transform_4(%arg0: i32) -> (i32, i32) {
    %c0_i32 = arith.constant 0 : i32
    %c0_i32_0 = arith.constant 0 : i32
    %c0_i32_1 = arith.constant 0 : i32
    return %c0_i32, %c0_i32_0 : i32, i32
  }
  func.func @transform_5(%arg0: i32) -> (i32, i32) {
    %c0_i32 = arith.constant 0 : i32
    %c0_i32_0 = arith.constant 0 : i32
    return %c0_i32, %arg0 : i32, i32
  }
}

module attributes {stable_mosaic.version = 11 : i64} {
  func.func @_fused_matmul_kernel(%arg0: i32, %arg1: memref<8x32xbf16, #tpu.memory_space<vmem>>, %arg2: memref<32x128xbf16, #tpu.memory_space<vmem>>, %arg3: memref<8x128xbf16, #tpu.memory_space<vmem>>, %arg4: memref<8x1xf32, #tpu.memory_space<vmem>>, %arg5: memref<8x1xf32, #tpu.memory_space<vmem>>, %arg6: memref<8x128xbf16, #tpu.memory_space<vmem>>) attributes {dimension_semantics = [#tpu.dimension_semantics<parallel>], iteration_bounds = array<i64: 1>, scalar_prefetch = 0 : i64, scratch_operands = 0 : i64, tpu.core_type = #tpu.core_type<tc>, window_params = [{pipeline_mode = #tpu.pipeline_mode<synchronous>, transform_indices = @transform_0, window_bounds = array<i64: 8, 32>}, {transform_indices = @transform_1, window_bounds = array<i64: 32, 128>}, {transform_indices = @transform_2, window_bounds = array<i64: 8, 128>}, {pipeline_mode = #tpu.pipeline_mode<synchronous>, transform_indices = @transform_3, window_bounds = array<i64: 8, 1>}, {pipeline_mode = #tpu.pipeline_mode<synchronous>, transform_indices = @transform_4, window_bounds = array<i64: 8, 1>}, {transform_indices = @transform_5, window_bounds = array<i64: 8, 128>}]} {
    %c0 = arith.constant 0 : index
    %c0_0 = arith.constant 0 : index
    %0 = vector.load %arg1[%c0, %c0_0] : memref<8x32xbf16, #tpu.memory_space<vmem>>, vector<8x32xbf16>
    %c0_1 = arith.constant 0 : index
    %c0_2 = arith.constant 0 : index
    %1 = vector.load %arg2[%c0_1, %c0_2] : memref<32x128xbf16, #tpu.memory_space<vmem>>, vector<32x128xbf16>
    %cst = arith.constant dense<0.000000e+00> : vector<8x128xf32>
    %2 = tpu.matmul %0, %1, %cst {dimension_numbers = #tpu.dot_dimension_numbers<[1], [0], [0], [1], [0, 0, 1, 1], [], []>} : vector<8x32xbf16>, vector<32x128xbf16>, vector<8x128xf32> -> vector<8x128xf32>
    %c0_3 = arith.constant 0 : index
    %c0_4 = arith.constant 0 : index
    %3 = vector.load %arg3[%c0_3, %c0_4] : memref<8x128xbf16, #tpu.memory_space<vmem>>, vector<8x128xbf16>
    %4 = arith.extf %3 : vector<8x128xbf16> to vector<8x128xf32>
    %5 = arith.addf %2, %4 : vector<8x128xf32>
    %c0_5 = arith.constant 0 : index
    %c0_6 = arith.constant 0 : index
    %6 = vector.load %arg4[%c0_5, %c0_6] : memref<8x1xf32, #tpu.memory_space<vmem>>, vector<8x1xf32>
    %7 = vector.broadcast %6 : vector<8x1xf32> to vector<8x128xf32>
    %8 = arith.mulf %5, %7 : vector<8x128xf32>
    %c0_7 = arith.constant 0 : index
    %c0_8 = arith.constant 0 : index
    %9 = vector.load %arg5[%c0_7, %c0_8] : memref<8x1xf32, #tpu.memory_space<vmem>>, vector<8x1xf32>
    %10 = vector.broadcast %9 : vector<8x1xf32> to vector<8x128xf32>
    %11 = arith.addf %8, %10 : vector<8x128xf32>
    %cst_9 = arith.constant 0.000000e+00 : f32
    %12 = vector.broadcast %cst_9 : f32 to vector<8x128xf32>
    %13 = arith.maximumf %11, %12 : vector<8x128xf32>
    %14 = arith.truncf %13 : vector<8x128xf32> to vector<8x128xbf16>
    %c0_10 = arith.constant 0 : index
    %c0_11 = arith.constant 0 : index
    %15 = vector.load %arg6[%c0_10, %c0_11] : memref<8x128xbf16, #tpu.memory_space<vmem>>, vector<8x128xbf16>
    tpu.vector_store %arg6[%c0_10, %c0_11], %14 {strides = array<i32>} : memref<8x128xbf16, #tpu.memory_space<vmem>>, vector<8x128xbf16>,
    return
  }
  func.func @transform_0(%arg0: i32) -> (i32, i32) {
    %c0_i32 = arith.constant 0 : i32
    %c0_i32_0 = arith.constant 0 : i32
    %c0_i32_1 = arith.constant 0 : i32
    return %c0_i32, %c0_i32_0 : i32, i32
  }
  func.func @transform_1(%arg0: i32) -> (i32, i32) {
    %c0_i32 = arith.constant 0 : i32
    %c0_i32_0 = arith.constant 0 : i32
    return %c0_i32, %arg0 : i32, i32
  }
  func.func @transform_2(%arg0: i32) -> (i32, i32) {
    %c0_i32 = arith.constant 0 : i32
    %c0_i32_0 = arith.constant 0 : i32
    return %c0_i32, %arg0 : i32, i32
  }
  func.func @transform_3(%arg0: i32) -> (i32, i32) {
    %c0_i32 = arith.constant 0 : i32
    %c0_i32_0 = arith.constant 0 : i32
    %c0_i32_1 = arith.constant 0 : i32
    return %c0_i32, %c0_i32_0 : i32, i32
  }
  func.func @transform_4(%arg0: i32) -> (i32, i32) {
    %c0_i32 = arith.constant 0 : i32
    %c0_i32_0 = arith.constant 0 : i32
    %c0_i32_1 = arith.constant 0 : i32
    return %c0_i32, %c0_i32_0 : i32, i32
  }
  func.func @transform_5(%arg0: i32) -> (i32, i32) {
    %c0_i32 = arith.constant 0 : i32
    %c0_i32_0 = arith.constant 0 : i32
    return %c0_i32, %arg0 : i32, i32
  }
}

module attributes {stable_mosaic.version = 11 : i64} {
  func.func @_fused_matmul_kernel(%arg0: i32, %arg1: memref<16x72xbf16, #tpu.memory_space<vmem>>, %arg2: memref<72x128xbf16, #tpu.memory_space<vmem>>, %arg3: memref<16x128xbf16, #tpu.memory_space<vmem>>) attributes {dimension_semantics = [#tpu.dimension_semantics<parallel>], iteration_bounds = array<i64: 1>, scalar_prefetch = 0 : i64, scratch_operands = 0 : i64, tpu.core_type = #tpu.core_type<tc>, window_params = [{pipeline_mode = #tpu.pipeline_mode<synchronous>, transform_indices = @transform_0, window_bounds = array<i64: 16, 72>}, {transform_indices = @transform_1, window_bounds = array<i64: 72, 128>}, {transform_indices = @transform_2, window_bounds = array<i64: 16, 128>}]} {
    %c0 = arith.constant 0 : index
    %c0_0 = arith.constant 0 : index
    %0 = vector.load %arg1[%c0, %c0_0] : memref<16x72xbf16, #tpu.memory_space<vmem>>, vector<16x72xbf16>
    %c0_1 = arith.constant 0 : index
    %c0_2 = arith.constant 0 : index
    %1 = vector.load %arg2[%c0_1, %c0_2] : memref<72x128xbf16, #tpu.memory_space<vmem>>, vector<72x128xbf16>
    %cst = arith.constant dense<0.000000e+00> : vector<16x128xf32>
    %2 = tpu.matmul %0, %1, %cst {dimension_numbers = #tpu.dot_dimension_numbers<[1], [0], [0], [1], [0, 0, 1, 1], [], []>} : vector<16x72xbf16>, vector<72x128xbf16>, vector<16x128xf32> -> vector<16x128xf32>
    %3 = arith.truncf %2 : vector<16x128xf32> to vector<16x128xbf16>
    %c0_3 = arith.constant 0 : index
    %c0_4 = arith.constant 0 : index
    %4 = vector.load %arg3[%c0_3, %c0_4] : memref<16x128xbf16, #tpu.memory_space<vmem>>, vector<16x128xbf16>
    tpu.vector_store %arg3[%c0_3, %c0_4], %3 {strides = array<i32>} : memref<16x128xbf16, #tpu.memory_space<vmem>>, vector<16x128xbf16>,
    return
  }
  func.func @transform_0(%arg0: i32) -> (i32, i32) {
    %c0_i32 = arith.constant 0 : i32
    %c0_i32_0 = arith.constant 0 : i32
    %c0_i32_1 = arith.constant 0 : i32
    return %c0_i32, %c0_i32_0 : i32, i32
  }
  func.func @transform_1(%arg0: i32) -> (i32, i32) {
    %c0_i32 = arith.constant 0 : i32
    %c0_i32_0 = arith.constant 0 : i32
    return %c0_i32, %arg0 : i32, i32
  }
  func.func @transform_2(%arg0: i32) -> (i32, i32) {
    %c0_i32 = arith.constant 0 : i32
    %c0_i32_0 = arith.constant 0 : i32
    return %c0_i32, %arg0 : i32, i32
  }
}

module attributes {stable_mosaic.version = 11 : i64} {
  func.func @_fused_matmul_kernel(%arg0: i32, %arg1: memref<8x72xbf16, #tpu.memory_space<vmem>>, %arg2: memref<72x128xbf16, #tpu.memory_space<vmem>>, %arg3: memref<8x128xbf16, #tpu.memory_space<vmem>>, %arg4: memref<8x1xf32, #tpu.memory_space<vmem>>, %arg5: memref<8x1xf32, #tpu.memory_space<vmem>>, %arg6: memref<8x128xbf16, #tpu.memory_space<vmem>>) attributes {dimension_semantics = [#tpu.dimension_semantics<parallel>], iteration_bounds = array<i64: 1>, scalar_prefetch = 0 : i64, scratch_operands = 0 : i64, tpu.core_type = #tpu.core_type<tc>, window_params = [{pipeline_mode = #tpu.pipeline_mode<synchronous>, transform_indices = @transform_0, window_bounds = array<i64: 8, 72>}, {transform_indices = @transform_1, window_bounds = array<i64: 72, 128>}, {transform_indices = @transform_2, window_bounds = array<i64: 8, 128>}, {pipeline_mode = #tpu.pipeline_mode<synchronous>, transform_indices = @transform_3, window_bounds = array<i64: 8, 1>}, {pipeline_mode = #tpu.pipeline_mode<synchronous>, transform_indices = @transform_4, window_bounds = array<i64: 8, 1>}, {transform_indices = @transform_5, window_bounds = array<i64: 8, 128>}]} {
    %c0 = arith.constant 0 : index
    %c0_0 = arith.constant 0 : index
    %0 = vector.load %arg1[%c0, %c0_0] : memref<8x72xbf16, #tpu.memory_space<vmem>>, vector<8x72xbf16>
    %c0_1 = arith.constant 0 : index
    %c0_2 = arith.constant 0 : index
    %1 = vector.load %arg2[%c0_1, %c0_2] : memref<72x128xbf16, #tpu.memory_space<vmem>>, vector<72x128xbf16>
    %cst = arith.constant dense<0.000000e+00> : vector<8x128xf32>
    %2 = tpu.matmul %0, %1, %cst {dimension_numbers = #tpu.dot_dimension_numbers<[1], [0], [0], [1], [0, 0, 1, 1], [], []>} : vector<8x72xbf16>, vector<72x128xbf16>, vector<8x128xf32> -> vector<8x128xf32>
    %c0_3 = arith.constant 0 : index
    %c0_4 = arith.constant 0 : index
    %3 = vector.load %arg3[%c0_3, %c0_4] : memref<8x128xbf16, #tpu.memory_space<vmem>>, vector<8x128xbf16>
    %4 = arith.extf %3 : vector<8x128xbf16> to vector<8x128xf32>
    %5 = arith.addf %2, %4 : vector<8x128xf32>
    %c0_5 = arith.constant 0 : index
    %c0_6 = arith.constant 0 : index
    %6 = vector.load %arg4[%c0_5, %c0_6] : memref<8x1xf32, #tpu.memory_space<vmem>>, vector<8x1xf32>
    %7 = vector.broadcast %6 : vector<8x1xf32> to vector<8x128xf32>
    %8 = arith.mulf %5, %7 : vector<8x128xf32>
    %c0_7 = arith.constant 0 : index
    %c0_8 = arith.constant 0 : index
    %9 = vector.load %arg5[%c0_7, %c0_8] : memref<8x1xf32, #tpu.memory_space<vmem>>, vector<8x1xf32>
    %10 = vector.broadcast %9 : vector<8x1xf32> to vector<8x128xf32>
    %11 = arith.addf %8, %10 : vector<8x128xf32>
    %cst_9 = arith.constant 0.000000e+00 : f32
    %12 = vector.broadcast %cst_9 : f32 to vector<8x128xf32>
    %13 = arith.maximumf %11, %12 : vector<8x128xf32>
    %14 = arith.truncf %13 : vector<8x128xf32> to vector<8x128xbf16>
    %c0_10 = arith.constant 0 : index
    %c0_11 = arith.constant 0 : index
    %15 = vector.load %arg6[%c0_10, %c0_11] : memref<8x128xbf16, #tpu.memory_space<vmem>>, vector<8x128xbf16>
    tpu.vector_store %arg6[%c0_10, %c0_11], %14 {strides = array<i32>} : memref<8x128xbf16, #tpu.memory_space<vmem>>, vector<8x128xbf16>,
    return
  }
  func.func @transform_0(%arg0: i32) -> (i32, i32) {
    %c0_i32 = arith.constant 0 : i32
    %c0_i32_0 = arith.constant 0 : i32
    %c0_i32_1 = arith.constant 0 : i32
    return %c0_i32, %c0_i32_0 : i32, i32
  }
  func.func @transform_1(%arg0: i32) -> (i32, i32) {
    %c0_i32 = arith.constant 0 : i32
    %c0_i32_0 = arith.constant 0 : i32
    return %c0_i32, %arg0 : i32, i32
  }
  func.func @transform_2(%arg0: i32) -> (i32, i32) {
    %c0_i32 = arith.constant 0 : i32
    %c0_i32_0 = arith.constant 0 : i32
    return %c0_i32, %arg0 : i32, i32
  }
  func.func @transform_3(%arg0: i32) -> (i32, i32) {
    %c0_i32 = arith.constant 0 : i32
    %c0_i32_0 = arith.constant 0 : i32
    %c0_i32_1 = arith.constant 0 : i32
    return %c0_i32, %c0_i32_0 : i32, i32
  }
  func.func @transform_4(%arg0: i32) -> (i32, i32) {
    %c0_i32 = arith.constant 0 : i32
    %c0_i32_0 = arith.constant 0 : i32
    %c0_i32_1 = arith.constant 0 : i32
    return %c0_i32, %c0_i32_0 : i32, i32
  }
  func.func @transform_5(%arg0: i32) -> (i32, i32) {
    %c0_i32 = arith.constant 0 : i32
    %c0_i32_0 = arith.constant 0 : i32
    return %c0_i32, %arg0 : i32, i32
  }
}

module attributes {stable_mosaic.version = 11 : i64} {
  func.func @_fused_matmul_kernel(%arg0: i32, %arg1: memref<64x8xbf16, #tpu.memory_space<vmem>>, %arg2: memref<8x128xbf16, #tpu.memory_space<vmem>>, %arg3: memref<64x128xbf16, #tpu.memory_space<vmem>>) attributes {dimension_semantics = [#tpu.dimension_semantics<parallel>], iteration_bounds = array<i64: 1>, scalar_prefetch = 0 : i64, scratch_operands = 0 : i64, tpu.core_type = #tpu.core_type<tc>, window_params = [{pipeline_mode = #tpu.pipeline_mode<synchronous>, transform_indices = @transform_0, window_bounds = array<i64: 64, 8>}, {transform_indices = @transform_1, window_bounds = array<i64: 8, 128>}, {transform_indices = @transform_2, window_bounds = array<i64: 64, 128>}]} {
    %c0 = arith.constant 0 : index
    %c0_0 = arith.constant 0 : index
    %0 = vector.load %arg1[%c0, %c0_0] : memref<64x8xbf16, #tpu.memory_space<vmem>>, vector<64x8xbf16>
    %c0_1 = arith.constant 0 : index
    %c0_2 = arith.constant 0 : index
    %1 = vector.load %arg2[%c0_1, %c0_2] : memref<8x128xbf16, #tpu.memory_space<vmem>>, vector<8x128xbf16>
    %cst = arith.constant dense<0.000000e+00> : vector<64x128xf32>
    %2 = tpu.matmul %0, %1, %cst {dimension_numbers = #tpu.dot_dimension_numbers<[1], [0], [0], [1], [0, 0, 1, 1], [], []>} : vector<64x8xbf16>, vector<8x128xbf16>, vector<64x128xf32> -> vector<64x128xf32>
    %3 = arith.truncf %2 : vector<64x128xf32> to vector<64x128xbf16>
    %c0_3 = arith.constant 0 : index
    %c0_4 = arith.constant 0 : index
    %4 = vector.load %arg3[%c0_3, %c0_4] : memref<64x128xbf16, #tpu.memory_space<vmem>>, vector<64x128xbf16>
    tpu.vector_store %arg3[%c0_3, %c0_4], %3 {strides = array<i32>} : memref<64x128xbf16, #tpu.memory_space<vmem>>, vector<64x128xbf16>,
    return
  }
  func.func @transform_0(%arg0: i32) -> (i32, i32) {
    %c0_i32 = arith.constant 0 : i32
    %c0_i32_0 = arith.constant 0 : i32
    %c0_i32_1 = arith.constant 0 : i32
    return %c0_i32, %c0_i32_0 : i32, i32
  }
  func.func @transform_1(%arg0: i32) -> (i32, i32) {
    %c0_i32 = arith.constant 0 : i32
    %c0_i32_0 = arith.constant 0 : i32
    return %c0_i32, %arg0 : i32, i32
  }
  func.func @transform_2(%arg0: i32) -> (i32, i32) {
    %c0_i32 = arith.constant 0 : i32
    %c0_i32_0 = arith.constant 0 : i32
    return %c0_i32, %arg0 : i32, i32
  }
}

module attributes {stable_mosaic.version = 11 : i64} {
  func.func @_fused_matmul_kernel(%arg0: i32, %arg1: memref<8x72xbf16, #tpu.memory_space<vmem>>, %arg2: memref<72x256xbf16, #tpu.memory_space<vmem>>, %arg3: memref<8x256xbf16, #tpu.memory_space<vmem>>, %arg4: memref<8x1xf32, #tpu.memory_space<vmem>>, %arg5: memref<8x1xf32, #tpu.memory_space<vmem>>, %arg6: memref<8x256xbf16, #tpu.memory_space<vmem>>) attributes {dimension_semantics = [#tpu.dimension_semantics<parallel>], iteration_bounds = array<i64: 2>, scalar_prefetch = 0 : i64, scratch_operands = 0 : i64, tpu.core_type = #tpu.core_type<tc>, window_params = [{pipeline_mode = #tpu.pipeline_mode<synchronous>, transform_indices = @transform_0, window_bounds = array<i64: 8, 72>}, {transform_indices = @transform_1, window_bounds = array<i64: 72, 256>}, {transform_indices = @transform_2, window_bounds = array<i64: 8, 256>}, {pipeline_mode = #tpu.pipeline_mode<synchronous>, transform_indices = @transform_3, window_bounds = array<i64: 8, 1>}, {pipeline_mode = #tpu.pipeline_mode<synchronous>, transform_indices = @transform_4, window_bounds = array<i64: 8, 1>}, {transform_indices = @transform_5, window_bounds = array<i64: 8, 256>}]} {
    %c0 = arith.constant 0 : index
    %c0_0 = arith.constant 0 : index
    %0 = vector.load %arg1[%c0, %c0_0] : memref<8x72xbf16, #tpu.memory_space<vmem>>, vector<8x72xbf16>
    %c0_1 = arith.constant 0 : index
    %c0_2 = arith.constant 0 : index
    %1 = vector.load %arg2[%c0_1, %c0_2] : memref<72x256xbf16, #tpu.memory_space<vmem>>, vector<72x256xbf16>
    %cst = arith.constant dense<0.000000e+00> : vector<8x256xf32>
    %2 = tpu.matmul %0, %1, %cst {dimension_numbers = #tpu.dot_dimension_numbers<[1], [0], [0], [1], [0, 0, 1, 1], [], []>} : vector<8x72xbf16>, vector<72x256xbf16>, vector<8x256xf32> -> vector<8x256xf32>
    %c0_3 = arith.constant 0 : index
    %c0_4 = arith.constant 0 : index
    %3 = vector.load %arg3[%c0_3, %c0_4] : memref<8x256xbf16, #tpu.memory_space<vmem>>, vector<8x256xbf16>
    %4 = arith.extf %3 : vector<8x256xbf16> to vector<8x256xf32>
    %5 = arith.addf %2, %4 : vector<8x256xf32>
    %c0_5 = arith.constant 0 : index
    %c0_6 = arith.constant 0 : index
    %6 = vector.load %arg4[%c0_5, %c0_6] : memref<8x1xf32, #tpu.memory_space<vmem>>, vector<8x1xf32>
    %7 = vector.broadcast %6 : vector<8x1xf32> to vector<8x256xf32>
    %8 = arith.mulf %5, %7 : vector<8x256xf32>
    %c0_7 = arith.constant 0 : index
    %c0_8 = arith.constant 0 : index
    %9 = vector.load %arg5[%c0_7, %c0_8] : memref<8x1xf32, #tpu.memory_space<vmem>>, vector<8x1xf32>
    %10 = vector.broadcast %9 : vector<8x1xf32> to vector<8x256xf32>
    %11 = arith.addf %8, %10 : vector<8x256xf32>
    %cst_9 = arith.constant 0.000000e+00 : f32
    %12 = vector.broadcast %cst_9 : f32 to vector<8x256xf32>
    %13 = arith.maximumf %11, %12 : vector<8x256xf32>
    %14 = arith.truncf %13 : vector<8x256xf32> to vector<8x256xbf16>
    %c0_10 = arith.constant 0 : index
    %c0_11 = arith.constant 0 : index
    %15 = vector.load %arg6[%c0_10, %c0_11] : memref<8x256xbf16, #tpu.memory_space<vmem>>, vector<8x256xbf16>
    tpu.vector_store %arg6[%c0_10, %c0_11], %14 {strides = array<i32>} : memref<8x256xbf16, #tpu.memory_space<vmem>>, vector<8x256xbf16>,
    return
  }
  func.func @transform_0(%arg0: i32) -> (i32, i32) {
    %c0_i32 = arith.constant 0 : i32
    %c0_i32_0 = arith.constant 0 : i32
    %c0_i32_1 = arith.constant 0 : i32
    return %c0_i32, %c0_i32_0 : i32, i32
  }
  func.func @transform_1(%arg0: i32) -> (i32, i32) {
    %c0_i32 = arith.constant 0 : i32
    %c0_i32_0 = arith.constant 0 : i32
    return %c0_i32, %arg0 : i32, i32
  }
  func.func @transform_2(%arg0: i32) -> (i32, i32) {
    %c0_i32 = arith.constant 0 : i32
    %c0_i32_0 = arith.constant 0 : i32
    return %c0_i32, %arg0 : i32, i32
  }
  func.func @transform_3(%arg0: i32) -> (i32, i32) {
    %c0_i32 = arith.constant 0 : i32
    %c0_i32_0 = arith.constant 0 : i32
    %c0_i32_1 = arith.constant 0 : i32
    return %c0_i32, %c0_i32_0 : i32, i32
  }
  func.func @transform_4(%arg0: i32) -> (i32, i32) {
    %c0_i32 = arith.constant 0 : i32
    %c0_i32_0 = arith.constant 0 : i32
    %c0_i32_1 = arith.constant 0 : i32
    return %c0_i32, %c0_i32_0 : i32, i32
  }
  func.func @transform_5(%arg0: i32) -> (i32, i32) {
    %c0_i32 = arith.constant 0 : i32
    %c0_i32_0 = arith.constant 0 : i32
    return %c0_i32, %arg0 : i32, i32
  }
}

module attributes {stable_mosaic.version = 11 : i64} {
  func.func @_fused_matmul_kernel(%arg0: i32, %arg1: memref<32x8xbf16, #tpu.memory_space<vmem>>, %arg2: memref<8x128xbf16, #tpu.memory_space<vmem>>, %arg3: memref<32x128xbf16, #tpu.memory_space<vmem>>, %arg4: memref<32x1xf32, #tpu.memory_space<vmem>>, %arg5: memref<32x1xf32, #tpu.memory_space<vmem>>, %arg6: memref<32x128xf32, #tpu.memory_space<vmem>>, %arg7: memref<32x128xf32, #tpu.memory_space<vmem>>) attributes {dimension_semantics = [#tpu.dimension_semantics<parallel>], iteration_bounds = array<i64: 1>, scalar_prefetch = 0 : i64, scratch_operands = 0 : i64, tpu.core_type = #tpu.core_type<tc>, window_params = [{pipeline_mode = #tpu.pipeline_mode<synchronous>, transform_indices = @transform_0, window_bounds = array<i64: 32, 8>}, {transform_indices = @transform_1, window_bounds = array<i64: 8, 128>}, {transform_indices = @transform_2, window_bounds = array<i64: 32, 128>}, {pipeline_mode = #tpu.pipeline_mode<synchronous>, transform_indices = @transform_3, window_bounds = array<i64: 32, 1>}, {pipeline_mode = #tpu.pipeline_mode<synchronous>, transform_indices = @transform_4, window_bounds = array<i64: 32, 1>}, {transform_indices = @transform_5, window_bounds = array<i64: 32, 128>}, {transform_indices = @transform_6, window_bounds = array<i64: 32, 128>}]} {
    %c0 = arith.constant 0 : index
    %c0_0 = arith.constant 0 : index
    %0 = vector.load %arg1[%c0, %c0_0] : memref<32x8xbf16, #tpu.memory_space<vmem>>, vector<32x8xbf16>
    %c0_1 = arith.constant 0 : index
    %c0_2 = arith.constant 0 : index
    %1 = vector.load %arg2[%c0_1, %c0_2] : memref<8x128xbf16, #tpu.memory_space<vmem>>, vector<8x128xbf16>
    %cst = arith.constant dense<0.000000e+00> : vector<32x128xf32>
    %2 = tpu.matmul %0, %1, %cst {dimension_numbers = #tpu.dot_dimension_numbers<[1], [0], [0], [1], [0, 0, 1, 1], [], []>} : vector<32x8xbf16>, vector<8x128xbf16>, vector<32x128xf32> -> vector<32x128xf32>
    %c0_3 = arith.constant 0 : index
    %c0_4 = arith.constant 0 : index
    %3 = vector.load %arg3[%c0_3, %c0_4] : memref<32x128xbf16, #tpu.memory_space<vmem>>, vector<32x128xbf16>
    %4 = arith.extf %3 : vector<32x128xbf16> to vector<32x128xf32>
    %5 = arith.addf %2, %4 : vector<32x128xf32>
    %c0_5 = arith.constant 0 : index
    %c0_6 = arith.constant 0 : index
    %6 = vector.load %arg4[%c0_5, %c0_6] : memref<32x1xf32, #tpu.memory_space<vmem>>, vector<32x1xf32>
    %7 = vector.broadcast %6 : vector<32x1xf32> to vector<32x128xf32>
    %8 = arith.mulf %5, %7 : vector<32x128xf32>
    %c0_7 = arith.constant 0 : index
    %c0_8 = arith.constant 0 : index
    %9 = vector.load %arg5[%c0_7, %c0_8] : memref<32x1xf32, #tpu.memory_space<vmem>>, vector<32x1xf32>
    %10 = vector.broadcast %9 : vector<32x1xf32> to vector<32x128xf32>
    %11 = arith.addf %8, %10 : vector<32x128xf32>
    %c0_9 = arith.constant 0 : index
    %c0_10 = arith.constant 0 : index
    %12 = vector.load %arg6[%c0_9, %c0_10] : memref<32x128xf32, #tpu.memory_space<vmem>>, vector<32x128xf32>
    %13 = arith.addf %11, %12 : vector<32x128xf32>
    %cst_11 = arith.constant 0.000000e+00 : f32
    %14 = vector.broadcast %cst_11 : f32 to vector<32x128xf32>
    %15 = arith.maximumf %13, %14 : vector<32x128xf32>
    %c0_12 = arith.constant 0 : index
    %c0_13 = arith.constant 0 : index
    %16 = vector.load %arg7[%c0_12, %c0_13] : memref<32x128xf32, #tpu.memory_space<vmem>>, vector<32x128xf32>
    tpu.vector_store %arg7[%c0_12, %c0_13], %15 {strides = array<i32>} : memref<32x128xf32, #tpu.memory_space<vmem>>, vector<32x128xf32>,
    return
  }
  func.func @transform_0(%arg0: i32) -> (i32, i32) {
    %c0_i32 = arith.constant 0 : i32
    %c0_i32_0 = arith.constant 0 : i32
    %c0_i32_1 = arith.constant 0 : i32
    return %c0_i32, %c0_i32_0 : i32, i32
  }
  func.func @transform_1(%arg0: i32) -> (i32, i32) {
    %c0_i32 = arith.constant 0 : i32
    %c0_i32_0 = arith.constant 0 : i32
    return %c0_i32, %arg0 : i32, i32
  }
  func.func @transform_2(%arg0: i32) -> (i32, i32) {
    %c0_i32 = arith.constant 0 : i32
    %c0_i32_0 = arith.constant 0 : i32
    return %c0_i32, %arg0 : i32, i32
  }
  func.func @transform_3(%arg0: i32) -> (i32, i32) {
    %c0_i32 = arith.constant 0 : i32
    %c0_i32_0 = arith.constant 0 : i32
    %c0_i32_1 = arith.constant 0 : i32
    return %c0_i32, %c0_i32_0 : i32, i32
  }
  func.func @transform_4(%arg0: i32) -> (i32, i32) {
    %c0_i32 = arith.constant 0 : i32
    %c0_i32_0 = arith.constant 0 : i32
    %c0_i32_1 = arith.constant 0 : i32
    return %c0_i32, %c0_i32_0 : i32, i32
  }
  func.func @transform_5(%arg0: i32) -> (i32, i32) {
    %c0_i32 = arith.constant 0 : i32
    %c0_i32_0 = arith.constant 0 : i32
    return %c0_i32, %arg0 : i32, i32
  }
  func.func @transform_6(%arg0: i32) -> (i32, i32) {
    %c0_i32 = arith.constant 0 : i32
    %c0_i32_0 = arith.constant 0 : i32
    return %c0_i32, %arg0 : i32, i32
  }
}

module attributes {stable_mosaic.version = 11 : i64} {
  func.func @_fused_matmul_kernel(%arg0: i32, %arg1: memref<32x8xbf16, #tpu.memory_space<vmem>>, %arg2: memref<8x256xbf16, #tpu.memory_space<vmem>>, %arg3: memref<32x256xbf16, #tpu.memory_space<vmem>>, %arg4: memref<32x1xf32, #tpu.memory_space<vmem>>, %arg5: memref<32x1xf32, #tpu.memory_space<vmem>>, %arg6: memref<32x256xf32, #tpu.memory_space<vmem>>, %arg7: memref<32x256xf32, #tpu.memory_space<vmem>>) attributes {dimension_semantics = [#tpu.dimension_semantics<parallel>], iteration_bounds = array<i64: 2>, scalar_prefetch = 0 : i64, scratch_operands = 0 : i64, tpu.core_type = #tpu.core_type<tc>, window_params = [{pipeline_mode = #tpu.pipeline_mode<synchronous>, transform_indices = @transform_0, window_bounds = array<i64: 32, 8>}, {transform_indices = @transform_1, window_bounds = array<i64: 8, 256>}, {transform_indices = @transform_2, window_bounds = array<i64: 32, 256>}, {pipeline_mode = #tpu.pipeline_mode<synchronous>, transform_indices = @transform_3, window_bounds = array<i64: 32, 1>}, {pipeline_mode = #tpu.pipeline_mode<synchronous>, transform_indices = @transform_4, window_bounds = array<i64: 32, 1>}, {transform_indices = @transform_5, window_bounds = array<i64: 32, 256>}, {transform_indices = @transform_6, window_bounds = array<i64: 32, 256>}]} {
    %c0 = arith.constant 0 : index
    %c0_0 = arith.constant 0 : index
    %0 = vector.load %arg1[%c0, %c0_0] : memref<32x8xbf16, #tpu.memory_space<vmem>>, vector<32x8xbf16>
    %c0_1 = arith.constant 0 : index
    %c0_2 = arith.constant 0 : index
    %1 = vector.load %arg2[%c0_1, %c0_2] : memref<8x256xbf16, #tpu.memory_space<vmem>>, vector<8x256xbf16>
    %cst = arith.constant dense<0.000000e+00> : vector<32x256xf32>
    %2 = tpu.matmul %0, %1, %cst {dimension_numbers = #tpu.dot_dimension_numbers<[1], [0], [0], [1], [0, 0, 1, 1], [], []>} : vector<32x8xbf16>, vector<8x256xbf16>, vector<32x256xf32> -> vector<32x256xf32>
    %c0_3 = arith.constant 0 : index
    %c0_4 = arith.constant 0 : index
    %3 = vector.load %arg3[%c0_3, %c0_4] : memref<32x256xbf16, #tpu.memory_space<vmem>>, vector<32x256xbf16>
    %4 = arith.extf %3 : vector<32x256xbf16> to vector<32x256xf32>
    %5 = arith.addf %2, %4 : vector<32x256xf32>
    %c0_5 = arith.constant 0 : index
    %c0_6 = arith.constant 0 : index
    %6 = vector.load %arg4[%c0_5, %c0_6] : memref<32x1xf32, #tpu.memory_space<vmem>>, vector<32x1xf32>
    %7 = vector.broadcast %6 : vector<32x1xf32> to vector<32x256xf32>
    %8 = arith.mulf %5, %7 : vector<32x256xf32>
    %c0_7 = arith.constant 0 : index
    %c0_8 = arith.constant 0 : index
    %9 = vector.load %arg5[%c0_7, %c0_8] : memref<32x1xf32, #tpu.memory_space<vmem>>, vector<32x1xf32>
    %10 = vector.broadcast %9 : vector<32x1xf32> to vector<32x256xf32>
    %11 = arith.addf %8, %10 : vector<32x256xf32>
    %c0_9 = arith.constant 0 : index
    %c0_10 = arith.constant 0 : index
    %12 = vector.load %arg6[%c0_9, %c0_10] : memref<32x256xf32, #tpu.memory_space<vmem>>, vector<32x256xf32>
    %13 = arith.addf %11, %12 : vector<32x256xf32>
    %cst_11 = arith.constant 0.000000e+00 : f32
    %14 = vector.broadcast %cst_11 : f32 to vector<32x256xf32>
    %15 = arith.maximumf %13, %14 : vector<32x256xf32>
    %c0_12 = arith.constant 0 : index
    %c0_13 = arith.constant 0 : index
    %16 = vector.load %arg7[%c0_12, %c0_13] : memref<32x256xf32, #tpu.memory_space<vmem>>, vector<32x256xf32>
    tpu.vector_store %arg7[%c0_12, %c0_13], %15 {strides = array<i32>} : memref<32x256xf32, #tpu.memory_space<vmem>>, vector<32x256xf32>,
    return
  }
  func.func @transform_0(%arg0: i32) -> (i32, i32) {
    %c0_i32 = arith.constant 0 : i32
    %c0_i32_0 = arith.constant 0 : i32
    %c0_i32_1 = arith.constant 0 : i32
    return %c0_i32, %c0_i32_0 : i32, i32
  }
  func.func @transform_1(%arg0: i32) -> (i32, i32) {
    %c0_i32 = arith.constant 0 : i32
    %c0_i32_0 = arith.constant 0 : i32
    return %c0_i32, %arg0 : i32, i32
  }
  func.func @transform_2(%arg0: i32) -> (i32, i32) {
    %c0_i32 = arith.constant 0 : i32
    %c0_i32_0 = arith.constant 0 : i32
    return %c0_i32, %arg0 : i32, i32
  }
  func.func @transform_3(%arg0: i32) -> (i32, i32) {
    %c0_i32 = arith.constant 0 : i32
    %c0_i32_0 = arith.constant 0 : i32
    %c0_i32_1 = arith.constant 0 : i32
    return %c0_i32, %c0_i32_0 : i32, i32
  }
  func.func @transform_4(%arg0: i32) -> (i32, i32) {
    %c0_i32 = arith.constant 0 : i32
    %c0_i32_0 = arith.constant 0 : i32
    %c0_i32_1 = arith.constant 0 : i32
    return %c0_i32, %c0_i32_0 : i32, i32
  }
  func.func @transform_5(%arg0: i32) -> (i32, i32) {
    %c0_i32 = arith.constant 0 : i32
    %c0_i32_0 = arith.constant 0 : i32
    return %c0_i32, %arg0 : i32, i32
  }
  func.func @transform_6(%arg0: i32) -> (i32, i32) {
    %c0_i32 = arith.constant 0 : i32
    %c0_i32_0 = arith.constant 0 : i32
    return %c0_i32, %arg0 : i32, i32
  }
}

</mosaic_0001>

<llo_original>
// kernel: bottleneck_forward.9
$region0: #{bottleneck_forward.9}
  #allocation0 [shape = 'u32[]', space=smem, size = 0x4, offset = 0x4, fixed_abs, tag = 'smem constant byte address 0x4 - core index']
  #allocation1 [shape = 'u32[144,128]{1,0:T(1,128)}', space=vmem, size = 0x12000, scoped, tag = 'internal scratch']
  %s0 = inlined_call_operand.vmem [shape: bf16[16,32], index: 0, kind: input, shape index: {}]
  %s1 = inlined_call_operand.vmem [shape: bf16[32,128], index: 1, kind: input, shape index: {}]
  %s2 = inlined_call_operand.vmem [shape: bf16[16,128], index: 2, kind: output, shape index: {}]
  %s3 = sld [smem:[#allocation0]]
  $region18: #{bottleneck_forward.9} parent=0
    _
  %s5 = ssub.s32 1, %s3
  %s6 = scalar_select 0, %s5, %s3
  // Predicated region
  $region2: #{bottleneck_forward.9} parent=0 // pred_check
    _
  $region3: #{bottleneck_forward.9} parent=0 // pred_check_branch
    %8 = sbr.rel (0) target = $region5
  $region4: #{bottleneck_forward.9} parent=0 // pred_region
    _
  $region5: #{bottleneck_forward.9} parent=0 // pred_fallthru
    _
  // Predicated region
  $region6: #{bottleneck_forward.9} parent=0 // pred_check
    _
  $region7: #{bottleneck_forward.9} parent=0 // pred_check_branch
    %10 = sbr.rel (0) target = $region9
  $region8: #{bottleneck_forward.9} parent=0 // pred_region
    _
  $region9: #{bottleneck_forward.9} parent=0 // pred_fallthru
    _
  %v12 = vld [vmem:[%s0] sm:$0xf]
  %v13 = vld [vmem:[%s0 + $0x4] sm:$0xf]
  %v14 = vld [vmem:[%s1] sm:$0xf]
  %v15 = vld [vmem:[%s1 + $0x4] sm:$0xf]
  %v16 = vld [vmem:[%s1 + $0x8] sm:$0xf]
  %v17 = vld [vmem:[%s1 + $0xc] sm:$0xf]
  %v20 = vunpack.c.l.b16 %v12
  %v21 = vunpack.c.l.b16 %v13
  %v22 = vpack.c.b16 %v21, %v20
  %v27 = vunpack.c.l.b16 %v14
  %v28 = vunpack.c.l.b16 %v15
  %v29 = vunpack.c.l.b16 %v16
  %v30 = vunpack.c.l.b16 %v17
  %v31 = vpack.c.b16 %v28, %v27
  %v32 = vpack.c.b16 %v30, %v29
  %vm35 = vcmask 261120
  %v37 = vsel %vm35, %v22, 0
  %39 = vmatprep.subr.bf16.mxu0 0
  %40 = vmatpush1.bf16.msra.mxu0 %v31
  %41 = vmatprep.subr.bf16.mxu0 0
  %42 = vmatpush1.bf16.msra.mxu0 %v32
  %43 = vmatprep.subr.bf16.mxu0 0
  %44 = vmatpush1.bf16.msra.mxu0 0
  %45 = vmatprep.subr.bf16.mxu0 0
  %46 = vmatpush1.bf16.msra.mxu0 0
  %47 = vmatprep.subr.bf16.mxu0 0
  %48 = vmatpush1.bf16.msra.mxu0 0
  %49 = vmatprep.subr.bf16.mxu0 0
  %50 = vmatpush1.bf16.msra.mxu0 0
  %51 = vmatprep.subr.bf16.mxu0 0
  %52 = vmatpush1.bf16.msra.mxu0 0
  %53 = vmatprep.subr.bf16.mxu0 0
  %54 = vmatpush1.bf16.msra.mxu0 0
  %55 = vmatprep.subr.bf16.mxu0 0
  %56 = vmatpush1.bf16.msra.mxu0 0
  %57 = vmatprep.subr.bf16.mxu0 0
  %58 = vmatpush1.bf16.msra.mxu0 0
  %59 = vmatprep.subr.bf16.mxu0 0
  %60 = vmatpush1.bf16.msra.mxu0 0
  %61 = vmatprep.subr.bf16.mxu0 0
  %62 = vmatpush1.bf16.msra.mxu0 0
  %63 = vmatprep.subr.bf16.mxu0 0
  %64 = vmatpush1.bf16.msra.mxu0 0
  %65 = vmatprep.subr.bf16.mxu0 0
  %66 = vmatpush1.bf16.msra.mxu0 0
  %67 = vmatprep.subr.bf16.mxu0 0
  %68 = vmatpush1.bf16.msra.mxu0 0
  %69 = vmatprep.subr.bf16.mxu0 0
  %70 = vmatpush1.bf16.msra.mxu0 0
  %71 = vmatprep.mubr.bf16.mxu0 0
  %72 = vmatmul.mubr.bf16.gmra.mrb[0].mxu0 %v37
  %v73 = vpop.f32.mrb[0].mxu0
  %v74 = vadd.f32 0.0, %v73
  %v75 = vpop.f32.mrb[0].mxu0
  %v76 = vpop.f32.mrb[0].mxu0
  %v77 = vadd.f32 0.0, %v76
  %v78 = vpop.f32.mrb[0].mxu0
  %79 = vdwg.mxu0
  %v80 = vpack.c.bf16 %v77, %v74
  %v82 = vunpack.c.l.b16 %v80
  %v83 = vunpack.c.h.b16 %v80
  %v84 = vpack.c.b16 %v82, %v82
  %v85 = vpack.c.b16 %v83, %v83
  %88 = vst [vmem:[%s2] sm:$0xf] %v84
  %89 = vst [vmem:[%s2 + $0x4] sm:$0xf] %v85
  // Predicated region
  $region10: #{bottleneck_forward.9} parent=0 // pred_check
    _
  $region11: #{bottleneck_forward.9} parent=0 // pred_check_branch
    %91 = sbr.rel (0) target = $region13
  $region12: #{bottleneck_forward.9} parent=0 // pred_region
    _
  $region13: #{bottleneck_forward.9} parent=0 // pred_fallthru
    _
  // Predicated region
  $region14: #{bottleneck_forward.9} parent=0 // pred_check
    _
  $region15: #{bottleneck_forward.9} parent=0 // pred_check_branch
    %93 = sbr.rel (0) target = $region17
  $region16: #{bottleneck_forward.9} parent=0 // pred_region
    _
  $region17: #{bottleneck_forward.9} parent=0 // pred_fallthru
    _

// kernel: bottleneck_forward.10
$region0: #{bottleneck_forward.10}
  #allocation0 [shape = 'u32[]', space=smem, size = 0x4, offset = 0x4, fixed_abs, tag = 'smem constant byte address 0x4 - core index']
  #allocation1 [shape = 'u32[144,128]{1,0:T(1,128)}', space=vmem, size = 0x12000, scoped, tag = 'internal scratch']
  %s0 = inlined_call_operand.vmem [shape: bf16[8,32], index: 0, kind: input, shape index: {}]
  %s1 = inlined_call_operand.vmem [shape: bf16[32,512], index: 1, kind: input, shape index: {}]
  %s2 = inlined_call_operand.vmem [shape: bf16[8,512], index: 2, kind: input, shape index: {}]
  %s3 = inlined_call_operand.vmem [shape: f32[8,1], index: 3, kind: input, shape index: {}]
  %s4 = inlined_call_operand.vmem [shape: f32[8,1], index: 4, kind: input, shape index: {}]
  %s5 = inlined_call_operand.vmem [shape: bf16[8,512], index: 5, kind: output, shape index: {}]
  %s6 = sld [smem:[#allocation0]]
  $region91: #{bottleneck_forward.10} parent=0
    _
  %s8 = ssub.s32 1, %s6
  %s9 = scalar_select 0, %s8, %s6
  $region1: #{bottleneck_forward.10} parent=0
    #allocation2 [shape = 'u8[32768]{0}', space=vmem, size = 0x8000, scoped, tag = 'input window, operand 1']
    loop: start=0, step=1, limit=4
    $region2: #{bottleneck_forward.10} parent=1 // loop_pre_header
      _
    $region3: #{bottleneck_forward.10} parent=1 // loop_header
      %s11 = sphi 0, %s15
      %p12 = scmp.ge.s32.totalorder %s11, 4
      %s19 = sphi 0, %s19
      %s21 = sphi 0, %s19
      %s22 = sphi 0, %s21
      %s36 = sphi 0, %s22
      %s42 = sphi 0, %s44
      %s45 = sphi 0, %s42
      %s46 = sphi 0, %s45
      %s62 = sphi 0, %s46
      %s68 = sphi 0, %s70
      %s71 = sphi 0, %s68
      %s72 = sphi 0, %s71
      %s88 = sphi 0, %s72
      %s92 = sphi 0, %s92
      %s94 = sphi 0, %s92
      %s95 = sphi 0, %s94
      %s109 = sphi 0, %s95
      %s113 = sphi 0, %s113
      %s115 = sphi 0, %s113
      %s116 = sphi 0, %s115
      %s130 = sphi 0, %s116
      %s136 = sphi 0, %s138
      %s139 = sphi 0, %s136
      %s140 = sphi 0, %s139
      %s156 = sphi 0, %s140
    $region4: #{bottleneck_forward.10} parent=1 // loop_header_branch
      %14 = sbr.rel (%p12) target = $region8
    $region5: #{bottleneck_forward.10} parent=1 // loop_body
      %s16 = ssub.s32 %s11, 1
      %s17 = ssub.s32 %s11, 2
      %s18 = sadd.s32 %s11, 1
      %s20 = sadd.s32 %s19, 1
      %p23 = scmp.eq.s32.totalorder %s11, 1
      %p24 = scmp.ne.s32.totalorder %s19, %s21
      %p25 = scmp.eq.s32.totalorder %s11, 0
      %p26 = por %p24, %p25
      %p27 = scmp.ne.s32.totalorder %s19, %s21
      %p28 = scmp.eq.s32.totalorder %s16, 1
      %p29 = por %p27, %p28
      %p30 = scmp.ne.s32.totalorder %s21, %s22
      %p31 = scmp.eq.s32.totalorder %s16, 0
      %p32 = por %p30, %p31
      %p33 = scmp.ne.s32.totalorder %s21, %s22
      %p34 = scmp.eq.s32.totalorder %s17, 1
      %p35 = por %p33, %p34
      %p37 = scmp.ne.s32.totalorder %s22, %s36
      %p38 = scmp.eq.s32.totalorder %s17, 0
      %p39 = por %p37, %p38
      %s40 = ssub.s32 %s11, %s18
      %p41 = scmp.eq.s32.totalorder %s40, 0
      %s43 = sadd.s32 %s42, 1
      %s44 = scalar_select %p41, %s42, %s43
      %p47 = pneg %p41
      %p48 = scmp.eq.s32.totalorder %s11, 1
      %p49 = por %p47, %p48
      %p50 = scmp.ne.s32.totalorder %s42, %s45
      %p51 = scmp.eq.s32.totalorder %s11, 0
      %p52 = por %p50, %p51
      %p53 = scmp.ne.s32.totalorder %s42, %s45
      %p54 = scmp.eq.s32.totalorder %s16, 1
      %p55 = por %p53, %p54
      %p56 = scmp.ne.s32.totalorder %s45, %s46
      %p57 = scmp.eq.s32.totalorder %s16, 0
      %p58 = por %p56, %p57
      %p59 = scmp.ne.s32.totalorder %s45, %s46
      %p60 = scmp.eq.s32.totalorder %s17, 1
      %p61 = por %p59, %p60
      %p63 = scmp.ne.s32.totalorder %s46, %s62
      %p64 = scmp.eq.s32.totalorder %s17, 0
      %p65 = por %p63, %p64
      %s66 = ssub.s32 %s11, %s18
      %p67 = scmp.eq.s32.totalorder %s66, 0
      %s69 = sadd.s32 %s68, 1
      %s70 = scalar_select %p67, %s68, %s69
      %p73 = pneg %p67
      %p74 = scmp.eq.s32.totalorder %s11, 1
      %p75 = por %p73, %p74
      %p76 = scmp.ne.s32.totalorder %s68, %s71
      %p77 = scmp.eq.s32.totalorder %s11, 0
      %p78 = por %p76, %p77
      %p79 = scmp.ne.s32.totalorder %s68, %s71
      %p80 = scmp.eq.s32.totalorder %s16, 1
      %p81 = por %p79, %p80
      %p82 = scmp.ne.s32.totalorder %s71, %s72
      %p83 = scmp.eq.s32.totalorder %s16, 0
      %p84 = por %p82, %p83
      %p85 = scmp.ne.s32.totalorder %s71, %s72
      %p86 = scmp.eq.s32.totalorder %s17, 1
      %p87 = por %p85, %p86
      %p89 = scmp.ne.s32.totalorder %s72, %s88
      %p90 = scmp.eq.s32.totalorder %s17, 0
      %p91 = por %p89, %p90
      %s93 = sadd.s32 %s92, 1
      %p96 = scmp.eq.s32.totalorder %s11, 1
      %p97 = scmp.ne.s32.totalorder %s92, %s94
      %p98 = scmp.eq.s32.totalorder %s11, 0
      %p99 = por %p97, %p98
      %p100 = scmp.ne.s32.totalorder %s92, %s94
      %p101 = scmp.eq.s32.totalorder %s16, 1
      %p102 = por %p100, %p101
      %p103 = scmp.ne.s32.totalorder %s94, %s95
      %p104 = scmp.eq.s32.totalorder %s16, 0
      %p105 = por %p103, %p104
      %p106 = scmp.ne.s32.totalorder %s94, %s95
      %p107 = scmp.eq.s32.totalorder %s17, 1
      %p108 = por %p106, %p107
      %p110 = scmp.ne.s32.totalorder %s95, %s109
      %p111 = scmp.eq.s32.totalorder %s17, 0
      %p112 = por %p110, %p111
      %s114 = sadd.s32 %s113, 1
      %p117 = scmp.eq.s32.totalorder %s11, 1
      %p118 = scmp.ne.s32.totalorder %s113, %s115
      %p119 = scmp.eq.s32.totalorder %s11, 0
      %p120 = por %p118, %p119
      %p121 = scmp.ne.s32.totalorder %s113, %s115
      %p122 = scmp.eq.s32.totalorder %s16, 1
      %p123 = por %p121, %p122
      %p124 = scmp.ne.s32.totalorder %s115, %s116
      %p125 = scmp.eq.s32.totalorder %s16, 0
      %p126 = por %p124, %p125
      %p127 = scmp.ne.s32.totalorder %s115, %s116
      %p128 = scmp.eq.s32.totalorder %s17, 1
      %p129 = por %p127, %p128
      %p131 = scmp.ne.s32.totalorder %s116, %s130
      %p132 = scmp.eq.s32.totalorder %s17, 0
      %p133 = por %p131, %p132
      %s134 = ssub.s32 %s11, %s18
      %p135 = scmp.eq.s32.totalorder %s134, 0
      %s137 = sadd.s32 %s136, 1
      %s138 = scalar_select %p135, %s136, %s137
      %p141 = pneg %p135
      %p142 = scmp.eq.s32.totalorder %s11, 1
      %p143 = por %p141, %p142
      %p144 = scmp.ne.s32.totalorder %s136, %s139
      %p145 = scmp.eq.s32.totalorder %s11, 0
      %p146 = por %p144, %p145
      %p147 = scmp.ne.s32.totalorder %s136, %s139
      %p148 = scmp.eq.s32.totalorder %s16, 1
      %p149 = por %p147, %p148
      %p150 = scmp.ne.s32.totalorder %s139, %s140
      %p151 = scmp.eq.s32.totalorder %s16, 0
      %p152 = por %p150, %p151
      %p153 = scmp.ne.s32.totalorder %s139, %s140
      %p154 = scmp.eq.s32.totalorder %s17, 1
      %p155 = por %p153, %p154
      %p157 = scmp.ne.s32.totalorder %s140, %s156
      %p158 = scmp.eq.s32.totalorder %s17, 0
      %p159 = por %p157, %p158
      %p160 = scmp.le.s32.totalorder 1, %s11
      %p161 = scmp.lt.s32.totalorder %s11, 3
      %p162 = pnand %p160, %p161
      %p163 = pneg %p162
      // Predicated region
      $region9: #{bottleneck_forward.10} parent=5 // pred_check
        _
      $region10: #{bottleneck_forward.10} parent=5 // pred_check_branch
        %165 = sbr.rel (%p162) target = $region12
      $region11: #{bottleneck_forward.10} parent=5 // pred_region
        %s166 = ssub.s32 %s11, 1
        // Predicated region
        $region13: #{bottleneck_forward.10} parent=11 // pred_check
          %p167 = pneg %p32
        $region14: #{bottleneck_forward.10} parent=11 // pred_check_branch
          %169 = sbr.rel (%p167) target = $region16
        $region15: #{bottleneck_forward.10} parent=11 // pred_region
          _
        $region16: #{bottleneck_forward.10} parent=11 // pred_fallthru
          _
        // Predicated region
        $region17: #{bottleneck_forward.10} parent=11 // pred_check
          %p170 = pneg %p105
        $region18: #{bottleneck_forward.10} parent=11 // pred_check_branch
          %172 = sbr.rel (%p170) target = $region20
        $region19: #{bottleneck_forward.10} parent=11 // pred_region
          _
        $region20: #{bottleneck_forward.10} parent=11 // pred_fallthru
          _
        // Predicated region
        $region21: #{bottleneck_forward.10} parent=11 // pred_check
          %p173 = pneg %p126
        $region22: #{bottleneck_forward.10} parent=11 // pred_check_branch
          %175 = sbr.rel (%p173) target = $region24
        $region23: #{bottleneck_forward.10} parent=11 // pred_region
          _
        $region24: #{bottleneck_forward.10} parent=11 // pred_fallthru
          _
      $region12: #{bottleneck_forward.10} parent=5 // pred_fallthru
        _
      %p176 = scmp.lt.s32.totalorder %s11, 2
      // Predicated region
      $region25: #{bottleneck_forward.10} parent=5 // pred_check
        %p177 = pneg %p176
      $region26: #{bottleneck_forward.10} parent=5 // pred_check_branch
        %179 = sbr.rel (%p177) target = $region28
      $region27: #{bottleneck_forward.10} parent=5 // pred_region
        // Predicated region
        $region29: #{bottleneck_forward.10} parent=27 // pred_check
          %p180 = pneg %p52
        $region30: #{bottleneck_forward.10} parent=27 // pred_check_branch
          %182 = sbr.rel (%p180) target = $region32
        $region31: #{bottleneck_forward.10} parent=27 // pred_region
          %s183 = sand.u32 %s42, 1
          %s184 = sand.u32 %s42, 1
          %s185 = smul.addr %s184, 32
          %s186 = scalar_lea.vmem [#allocation2], %s185
          %s187 = smul.u32 2, %s11
          %s188 = smul.addr %s187, 4
          %s189 = scalar_lea.vmem %s1, %s188
          // Predicated region
          $region33: #{bottleneck_forward.10} parent=31 // pred_check
            _
          $region34: #{bottleneck_forward.10} parent=31 // pred_check_branch
            %191 = sbr.rel (0) target = $region36
          $region35: #{bottleneck_forward.10} parent=31 // pred_region
            // Predicated region
            $region37: #{bottleneck_forward.10} parent=35 // pred_check
              _
            $region38: #{bottleneck_forward.10} parent=35 // pred_check_branch
              %193 = sbr.rel (0) target = $region40
            $region39: #{bottleneck_forward.10} parent=35 // pred_region
              // Predicated region
              $region52: #{bottleneck_forward.10} parent=39 // pred_check
                _
              $region53: #{bottleneck_forward.10} parent=39 // pred_check_branch
                %214 = sbr.rel (0) target = $region55
              $region54: #{bottleneck_forward.10} parent=39 // pred_region
                loop: start=0, step=1, limit=1
                $region56: #{bottleneck_forward.10} parent=54 // loop_pre_header
                  _
                $region57: #{bottleneck_forward.10} parent=54 // loop_header
                  %s216 = sphi 0, %s220
                  %p217 = scmp.ge.s32.totalorder %s216, 1
                  %s221 = sphi %s189, %s189
                  %s222 = sphi %s186, %s186
                $region58: #{bottleneck_forward.10} parent=54 // loop_header_branch
                  %219 = sbr.rel (%p217) target = $region62
                $region59: #{bottleneck_forward.10} parent=54 // loop_body
                  %v223 = vld [vmem:[%s221] sm:$0xff]
                  %224 = vst [vmem:[%s222] sm:$0xff] %v223
                  %v225 = vld [vmem:[%s221 + $0x10] sm:$0xff]
                  %226 = vst [vmem:[%s222 + $0x8] sm:$0xff] %v225
                  %v227 = vld [vmem:[%s221 + $0x20] sm:$0xff]
                  %228 = vst [vmem:[%s222 + $0x10] sm:$0xff] %v227
                  %v229 = vld [vmem:[%s221 + $0x30] sm:$0xff]
                  %230 = vst [vmem:[%s222 + $0x18] sm:$0xff] %v229
                $region60: #{bottleneck_forward.10} parent=54 // loop_footer
                  %s220 = sadd.s32 1, %s216
                $region61: #{bottleneck_forward.10} parent=54 // loop_footer_branch
                  %215 = sbr.rel target = $region57
                $region62: #{bottleneck_forward.10} parent=54 // loop_exit
                  _
              $region55: #{bottleneck_forward.10} parent=39 // pred_fallthru
                _
              // Predicated region
              $region63: #{bottleneck_forward.10} parent=39 // pred_check
                _
              $region64: #{bottleneck_forward.10} parent=39 // pred_check_branch
                %232 = sbr.rel target = $region66
              $region65: #{bottleneck_forward.10} parent=39 // pred_region
                _
              $region66: #{bottleneck_forward.10} parent=39 // pred_fallthru
                _
            $region40: #{bottleneck_forward.10} parent=35 // pred_fallthru
              _
            // Predicated region
            $region41: #{bottleneck_forward.10} parent=35 // pred_check
              _
            $region42: #{bottleneck_forward.10} parent=35 // pred_check_branch
              %195 = sbr.rel target = $region44
            $region43: #{bottleneck_forward.10} parent=35 // pred_region
              loop: start=0, step=1, limit=1
              $region45: #{bottleneck_forward.10} parent=43 // loop_pre_header
                _
              $region46: #{bottleneck_forward.10} parent=43 // loop_header
                %s198 = sphi 0, %s202
                %p199 = scmp.ge.s32.totalorder %s198, 1
                %s203 = sphi %s189, %s189
                %s204 = sphi %s186, %s186
              $region47: #{bottleneck_forward.10} parent=43 // loop_header_branch
                %201 = sbr.rel (%p199) target = $region51
              $region48: #{bottleneck_forward.10} parent=43 // loop_body
                %v205 = vld [vmem:[%s203] sm:$0xff]
                %206 = vst [vmem:[%s204] sm:$0xff] %v205
                %v207 = vld [vmem:[%s203 + $0x10] sm:$0xff]
                %208 = vst [vmem:[%s204 + $0x8] sm:$0xff] %v207
                %v209 = vld [vmem:[%s203 + $0x20] sm:$0xff]
                %210 = vst [vmem:[%s204 + $0x10] sm:$0xff] %v209
                %v211 = vld [vmem:[%s203 + $0x30] sm:$0xff]
                %212 = vst [vmem:[%s204 + $0x18] sm:$0xff] %v211
              $region49: #{bottleneck_forward.10} parent=43 // loop_footer
                %s202 = sadd.s32 1, %s198
              $region50: #{bottleneck_forward.10} parent=43 // loop_footer_branch
                %197 = sbr.rel target = $region46
              $region51: #{bottleneck_forward.10} parent=43 // loop_exit
                _
            $region44: #{bottleneck_forward.10} parent=35 // pred_fallthru
              _
          $region36: #{bottleneck_forward.10} parent=31 // pred_fallthru
            _
          %233 = vnop
        $region32: #{bottleneck_forward.10} parent=27 // pred_fallthru
          _
        // Predicated region
        $region67: #{bottleneck_forward.10} parent=27 // pred_check
          %p234 = pneg %p78
        $region68: #{bottleneck_forward.10} parent=27 // pred_check_branch
          %236 = sbr.rel (%p234) target = $region70
        $region69: #{bottleneck_forward.10} parent=27 // pred_region
          %s237 = smul.u32 2, %s11
          %p238 = scmp.lt.s32.totalorder %s237, 3
          %s239 = scalar_select %p238, %s237, 3
          %s240 = smul.addr %s239, 4
          %s241 = scalar_lea.vmem %s2, %s240
          %s242 = smul.u32 2, %s11
        $region70: #{bottleneck_forward.10} parent=27 // pred_fallthru
          _
      $region28: #{bottleneck_forward.10} parent=5 // pred_fallthru
        _
      %p243 = scmp.le.s32.totalorder 1, %s11
      %p244 = scmp.lt.s32.totalorder %s11, 3
      %p245 = pnand %p243, %p244
      %p246 = pneg %p245
      // Predicated region
      $region71: #{bottleneck_forward.10} parent=5 // pred_check
        _
      $region72: #{bottleneck_forward.10} parent=5 // pred_check_branch
        %248 = sbr.rel (%p245) target = $region74
      $region73: #{bottleneck_forward.10} parent=5 // pred_region
        %s249 = ssub.s32 %s11, 1
        %s250 = sand.u32 %s45, 1
        %s251 = sand.u32 %s45, 1
        %s252 = smul.addr %s251, 32
        %s253 = scalar_lea.vmem [#allocation2], %s252
        // Predicated region
        $region75: #{bottleneck_forward.10} parent=73 // pred_check
          %p254 = pneg %p58
        $region76: #{bottleneck_forward.10} parent=73 // pred_check_branch
          %256 = sbr.rel (%p254) target = $region78
        $region77: #{bottleneck_forward.10} parent=73 // pred_region
          _
        $region78: #{bottleneck_forward.10} parent=73 // pred_fallthru
          _
        %p257 = pneg %p32
        %p258 = pneg %p29
        %s259 = sand.u32 %s45, 1
        %s260 = sand.u32 %s45, 1
        %s261 = smul.addr %s260, 32
        %s262 = scalar_lea.vmem [#allocation2], %s261
        %p263 = pneg %p58
        %p264 = pneg %p55
        %s265 = smul.u32 2, %s16
        %p266 = scmp.lt.s32.totalorder %s265, 3
        %s267 = scalar_select %p266, %s265, 3
        %s268 = smul.addr %s267, 4
        %s269 = scalar_lea.vmem %s2, %s268
        %p270 = pneg %p84
        %p271 = pneg %p81
        %p272 = pneg %p105
        %p273 = pneg %p102
        %p274 = pneg %p126
        %p275 = pneg %p123
        %p276 = pneg %p152
        %p277 = pneg %p149
        %s278 = smul.u32 2, %s16
        %p279 = scmp.lt.s32.totalorder %s278, 3
        %s280 = scalar_select %p279, %s278, 3
        %s281 = smul.addr %s280, 4
        %s282 = scalar_lea.vmem %s5, %s281
        %s283 = smul.u32 2, %s16
        %s284 = smul.u32 2, %s16
        %p285 = scmp.lt.s32.totalorder %s284, 3
        %s286 = scalar_select %p285, %s284, 3
        %s287 = smul.addr %s286, 4
        %s288 = scalar_lea.vmem %s2, %s287
        %s289 = smul.u32 2, %s16
        %s290 = smul.u32 2, %s16
        %p291 = scmp.lt.s32.totalorder %s290, 3
        %s292 = scalar_select %p291, %s290, 3
        %s293 = smul.addr %s292, 4
        %s294 = scalar_lea.vmem %s5, %s293
        %s295 = smul.u32 2, %s16
        %v297 = vld [vmem:[%s0] sm:$0xf]
        %v298 = vld [vmem:[%s253] sm:$0xff]
        %v299 = vld [vmem:[%s253 + $0x8] sm:$0xff]
        %v300 = vld [vmem:[%s253 + $0x10] sm:$0xff]
        %v301 = vld [vmem:[%s253 + $0x18] sm:$0xff]
        %v302 = vld [vmem:[%s288] sm:$0xff]
        %v303 = vunpack.c.l.bf16 %v302
        %v304 = vunpack.c.h.bf16 %v302
        %v309 = vunpack.c.l.b16 %v298
        %v310 = vunpack.c.h.b16 %v298
        %v311 = vunpack.c.l.b16 %v299
        %v312 = vunpack.c.h.b16 %v299
        %v313 = vunpack.c.l.b16 %v300
        %v314 = vunpack.c.h.b16 %v300
        %v315 = vunpack.c.l.b16 %v301
        %v316 = vunpack.c.h.b16 %v301
        %v317 = vpack.c.b16 %v311, %v309
        %v318 = vpack.c.b16 %v312, %v310
        %v319 = vpack.c.b16 %v315, %v313
        %v320 = vpack.c.b16 %v316, %v314
        %vm325 = vcmask 261120
        %v327 = vsel %vm325, %v297, 0
        %329 = vmatprep.subr.bf16.mxu0 %v318
        %330 = vmatpush1.bf16.msra.mxu0 %v317
        %331 = vmatprep.subr.bf16.mxu0 %v320
        %332 = vmatpush1.bf16.msra.mxu0 %v319
        %333 = vmatprep.subr.bf16.mxu0 0
        %334 = vmatpush1.bf16.msra.mxu0 0
        %335 = vmatprep.subr.bf16.mxu0 0
        %336 = vmatpush1.bf16.msra.mxu0 0
        %337 = vmatprep.subr.bf16.mxu0 0
        %338 = vmatpush1.bf16.msra.mxu0 0
        %339 = vmatprep.subr.bf16.mxu0 0
        %340 = vmatpush1.bf16.msra.mxu0 0
        %341 = vmatprep.subr.bf16.mxu0 0
        %342 = vmatpush1.bf16.msra.mxu0 0
        %343 = vmatprep.subr.bf16.mxu0 0
        %344 = vmatpush1.bf16.msra.mxu0 0
        %345 = vmatprep.subr.bf16.mxu0 0
        %346 = vmatpush1.bf16.msra.mxu0 0
        %347 = vmatprep.subr.bf16.mxu0 0
        %348 = vmatpush1.bf16.msra.mxu0 0
        %349 = vmatprep.subr.bf16.mxu0 0
        %350 = vmatpush1.bf16.msra.mxu0 0
        %351 = vmatprep.subr.bf16.mxu0 0
        %352 = vmatpush1.bf16.msra.mxu0 0
        %353 = vmatprep.subr.bf16.mxu0 0
        %354 = vmatpush1.bf16.msra.mxu0 0
        %355 = vmatprep.subr.bf16.mxu0 0
        %356 = vmatpush1.bf16.msra.mxu0 0
        %357 = vmatprep.subr.bf16.mxu0 0
        %358 = vmatpush1.bf16.msra.mxu0 0
        %359 = vmatprep.subr.bf16.mxu0 0
        %360 = vmatpush1.bf16.msra.mxu0 0
        %361 = vmatprep.mubr.bf16.mxu0 0
        %362 = vmatmul.mubr.bf16.gmra.mrb[0].mxu0 %v327
        %v363 = vpop.f32.mrb[0].mxu0
        %v364 = vadd.f32 %v303, %v363
        %v365 = vpop.f32.mrb[0].mxu0
        %v366 = vadd.f32 %v304, %v365
        %v367 = vpop.f32.mrb[0].mxu0
        %v368 = vpop.f32.mrb[0].mxu0
        %369 = vdwg.mxu0
        %v370 = vld [vmem:[%s3] sm:$0xff]
        %372 = vset.pattern.permute.xlu0 0
        %373 = vperm.xlu0 %372, %v370
        %v374 = vpop.permute.xlu0 %373
        %v376 = vmul.f32 %v364, %v374
        %v377 = vmul.f32 %v366, %v374
        %v378 = vld [vmem:[%s4] sm:$0xff]
        %380 = vset.pattern.permute.xlu0 0
        %381 = vperm.xlu0 %380, %v378
        %v382 = vpop.permute.xlu0 %381
        %v384 = vadd.f32 %v376, %v382
        %v385 = vadd.f32 %v377, %v382
        %v386 = vmax.f32 %v384, 0.0
        %v387 = vmax.f32 %v385, 0.0
        %v388 = vpack.c.bf16 %v386, %v386
        %v389 = vpack.c.bf16 %v387, %v387
        %v392 = vunpack.c.l.b16 %v388
        %v393 = vunpack.c.l.b16 %v389
        %v394 = vpack.c.b16 %v393, %v392
        %396 = vst [vmem:[%s294] sm:$0xff] %v394
        %s397 = smul.u32 2, %s16
        %p398 = scmp.lt.s32.totalorder %s397, 3
        %s399 = scalar_select %p398, %s397, 3
        %s400 = smul.addr %s399, 4
        %s401 = scalar_lea.vmem %s5, %s400
        // Predicated region
        $region79: #{bottleneck_forward.10} parent=73 // pred_check
          %p402 = pneg %p149
        $region80: #{bottleneck_forward.10} parent=73 // pred_check_branch
          %404 = sbr.rel (%p402) target = $region82
        $region81: #{bottleneck_forward.10} parent=73 // pred_region
          %s405 = smul.u32 2, %s16
        $region82: #{bottleneck_forward.10} parent=73 // pred_fallthru
          _
      $region74: #{bottleneck_forward.10} parent=5 // pred_fallthru
        _
      %p406 = scmp.le.s32.totalorder 2, %s11
      // Predicated region
      $region83: #{bottleneck_forward.10} parent=5 // pred_check
        %p407 = pneg %p406
      $region84: #{bottleneck_forward.10} parent=5 // pred_check_branch
        %409 = sbr.rel (%p407) target = $region86
      $region85: #{bottleneck_forward.10} parent=5 // pred_region
        %s410 = ssub.s32 %s11, 2
        // Predicated region
        $region87: #{bottleneck_forward.10} parent=85 // pred_check
          %p411 = pneg %p155
        $region88: #{bottleneck_forward.10} parent=85 // pred_check_branch
          %413 = sbr.rel (%p411) target = $region90
        $region89: #{bottleneck_forward.10} parent=85 // pred_region
          %s414 = smul.u32 2, %s17
          %p415 = scmp.lt.s32.totalorder %s414, 3
          %s416 = scalar_select %p415, %s414, 3
          %s417 = smul.addr %s416, 4
          %s418 = scalar_lea.vmem %s5, %s417
        $region90: #{bottleneck_forward.10} parent=85 // pred_fallthru
          _
      $region86: #{bottleneck_forward.10} parent=5 // pred_fallthru
        _
    $region6: #{bottleneck_forward.10} parent=1 // loop_footer
      %s15 = sadd.s32 1, %s11
    $region7: #{bottleneck_forward.10} parent=1 // loop_footer_branch
      %10 = sbr.rel target = $region3
    $region8: #{bottleneck_forward.10} parent=1 // loop_exit
      _

// kernel: bottleneck_forward.11
$region0: #{bottleneck_forward.11}
  #allocation0 [shape = 'u32[]', space=smem, size = 0x4, offset = 0x4, fixed_abs, tag = 'smem constant byte address 0x4 - core index']
  #allocation1 [shape = 'u32[144,128]{1,0:T(1,128)}', space=vmem, size = 0x12000, scoped, tag = 'internal scratch']
  %s0 = inlined_call_operand.vmem [shape: bf16[8,32], index: 0, kind: input, shape index: {}]
  %s1 = inlined_call_operand.vmem [shape: bf16[32,128], index: 1, kind: input, shape index: {}]
  %s2 = inlined_call_operand.vmem [shape: bf16[8,128], index: 2, kind: input, shape index: {}]
  %s3 = inlined_call_operand.vmem [shape: f32[8,1], index: 3, kind: input, shape index: {}]
  %s4 = inlined_call_operand.vmem [shape: f32[8,1], index: 4, kind: input, shape index: {}]
  %s5 = inlined_call_operand.vmem [shape: bf16[8,128], index: 5, kind: output, shape index: {}]
  %s6 = sld [smem:[#allocation0]]
  $region30: #{bottleneck_forward.11} parent=0
    _
  %s8 = ssub.s32 1, %s6
  %s9 = scalar_select 0, %s8, %s6
  // Predicated region
  $region2: #{bottleneck_forward.11} parent=0 // pred_check
    _
  $region3: #{bottleneck_forward.11} parent=0 // pred_check_branch
    %11 = sbr.rel (0) target = $region5
  $region4: #{bottleneck_forward.11} parent=0 // pred_region
    _
  $region5: #{bottleneck_forward.11} parent=0 // pred_fallthru
    _
  // Predicated region
  $region6: #{bottleneck_forward.11} parent=0 // pred_check
    _
  $region7: #{bottleneck_forward.11} parent=0 // pred_check_branch
    %13 = sbr.rel (0) target = $region9
  $region8: #{bottleneck_forward.11} parent=0 // pred_region
    _
  $region9: #{bottleneck_forward.11} parent=0 // pred_fallthru
    _
  // Predicated region
  $region10: #{bottleneck_forward.11} parent=0 // pred_check
    _
  $region11: #{bottleneck_forward.11} parent=0 // pred_check_branch
    %15 = sbr.rel (0) target = $region13
  $region12: #{bottleneck_forward.11} parent=0 // pred_region
    _
  $region13: #{bottleneck_forward.11} parent=0 // pred_fallthru
    _
  // Predicated region
  $region14: #{bottleneck_forward.11} parent=0 // pred_check
    _
  $region15: #{bottleneck_forward.11} parent=0 // pred_check_branch
    %17 = sbr.rel (0) target = $region17
  $region16: #{bottleneck_forward.11} parent=0 // pred_region
    _
  $region17: #{bottleneck_forward.11} parent=0 // pred_fallthru
    _
  // Predicated region
  $region18: #{bottleneck_forward.11} parent=0 // pred_check
    _
  $region19: #{bottleneck_forward.11} parent=0 // pred_check_branch
    %19 = sbr.rel (0) target = $region21
  $region20: #{bottleneck_forward.11} parent=0 // pred_region
    _
  $region21: #{bottleneck_forward.11} parent=0 // pred_fallthru
    _
  %v21 = vld [vmem:[%s0] sm:$0xf]
  %v22 = vld [vmem:[%s1] sm:$0xf]
  %v23 = vld [vmem:[%s1 + $0x4] sm:$0xf]
  %v24 = vld [vmem:[%s1 + $0x8] sm:$0xf]
  %v25 = vld [vmem:[%s1 + $0xc] sm:$0xf]
  %v26 = vld [vmem:[%s2] sm:$0xf]
  %v27 = vunpack.c.l.bf16 %v26
  %v32 = vunpack.c.l.b16 %v22
  %v33 = vunpack.c.l.b16 %v23
  %v34 = vunpack.c.l.b16 %v24
  %v35 = vunpack.c.l.b16 %v25
  %v36 = vpack.c.b16 %v33, %v32
  %v37 = vpack.c.b16 %v35, %v34
  %vm40 = vcmask 261120
  %v42 = vsel %vm40, %v21, 0
  %44 = vmatprep.subr.bf16.mxu0 0
  %45 = vmatpush1.bf16.msra.mxu0 %v36
  %46 = vmatprep.subr.bf16.mxu0 0
  %47 = vmatpush1.bf16.msra.mxu0 %v37
  %48 = vmatprep.subr.bf16.mxu0 0
  %49 = vmatpush1.bf16.msra.mxu0 0
  %50 = vmatprep.subr.bf16.mxu0 0
  %51 = vmatpush1.bf16.msra.mxu0 0
  %52 = vmatprep.subr.bf16.mxu0 0
  %53 = vmatpush1.bf16.msra.mxu0 0
  %54 = vmatprep.subr.bf16.mxu0 0
  %55 = vmatpush1.bf16.msra.mxu0 0
  %56 = vmatprep.subr.bf16.mxu0 0
  %57 = vmatpush1.bf16.msra.mxu0 0
  %58 = vmatprep.subr.bf16.mxu0 0
  %59 = vmatpush1.bf16.msra.mxu0 0
  %60 = vmatprep.subr.bf16.mxu0 0
  %61 = vmatpush1.bf16.msra.mxu0 0
  %62 = vmatprep.subr.bf16.mxu0 0
  %63 = vmatpush1.bf16.msra.mxu0 0
  %64 = vmatprep.subr.bf16.mxu0 0
  %65 = vmatpush1.bf16.msra.mxu0 0
  %66 = vmatprep.subr.bf16.mxu0 0
  %67 = vmatpush1.bf16.msra.mxu0 0
  %68 = vmatprep.subr.bf16.mxu0 0
  %69 = vmatpush1.bf16.msra.mxu0 0
  %70 = vmatprep.subr.bf16.mxu0 0
  %71 = vmatpush1.bf16.msra.mxu0 0
  %72 = vmatprep.subr.bf16.mxu0 0
  %73 = vmatpush1.bf16.msra.mxu0 0
  %74 = vmatprep.subr.bf16.mxu0 0
  %75 = vmatpush1.bf16.msra.mxu0 0
  %76 = vmatprep.mubr.bf16.mxu0 0
  %77 = vmatmul.mubr.bf16.gmra.mrb[0].mxu0 %v42
  %v78 = vpop.f32.mrb[0].mxu0
  %v79 = vadd.f32 %v27, %v78
  %v80 = vpop.f32.mrb[0].mxu0
  %v81 = vpop.f32.mrb[0].mxu0
  %v82 = vpop.f32.mrb[0].mxu0
  %83 = vdwg.mxu0
  %v84 = vld [vmem:[%s3] sm:$0xff]
  %86 = vset.pattern.permute.xlu0 0
  %87 = vperm.xlu0 %86, %v84
  %v88 = vpop.permute.xlu0 %87
  %v90 = vmul.f32 %v79, %v88
  %v91 = vld [vmem:[%s4] sm:$0xff]
  %93 = vset.pattern.permute.xlu0 0
  %94 = vperm.xlu0 %93, %v91
  %v95 = vpop.permute.xlu0 %94
  %v97 = vadd.f32 %v90, %v95
  %v98 = vmax.f32 %v97, 0.0
  %v99 = vpack.c.bf16 %v98, %v98
  %100 = vst [vmem:[%s5] sm:$0xf] %v99
  // Predicated region
  $region22: #{bottleneck_forward.11} parent=0 // pred_check
    _
  $region23: #{bottleneck_forward.11} parent=0 // pred_check_branch
    %102 = sbr.rel (0) target = $region25
  $region24: #{bottleneck_forward.11} parent=0 // pred_region
    _
  $region25: #{bottleneck_forward.11} parent=0 // pred_fallthru
    _
  // Predicated region
  $region26: #{bottleneck_forward.11} parent=0 // pred_check
    _
  $region27: #{bottleneck_forward.11} parent=0 // pred_check_branch
    %104 = sbr.rel (0) target = $region29
  $region28: #{bottleneck_forward.11} parent=0 // pred_region
    _
  $region29: #{bottleneck_forward.11} parent=0 // pred_fallthru
    _

// kernel: bottleneck_forward.12
$region0: #{bottleneck_forward.12}
  #allocation0 [shape = 'u32[]', space=smem, size = 0x4, offset = 0x4, fixed_abs, tag = 'smem constant byte address 0x4 - core index']
  #allocation1 [shape = 'u32[144,128]{1,0:T(1,128)}', space=vmem, size = 0x12000, scoped, tag = 'internal scratch']
  %s0 = inlined_call_operand.vmem [shape: bf16[16,72], index: 0, kind: input, shape index: {}]
  %s1 = inlined_call_operand.vmem [shape: bf16[72,128], index: 1, kind: input, shape index: {}]
  %s2 = inlined_call_operand.vmem [shape: bf16[16,128], index: 2, kind: output, shape index: {}]
  %s3 = sld [smem:[#allocation0]]
  $region18: #{bottleneck_forward.12} parent=0
    _
  %s5 = ssub.s32 1, %s3
  %s6 = scalar_select 0, %s5, %s3
  // Predicated region
  $region2: #{bottleneck_forward.12} parent=0 // pred_check
    _
  $region3: #{bottleneck_forward.12} parent=0 // pred_check_branch
    %8 = sbr.rel (0) target = $region5
  $region4: #{bottleneck_forward.12} parent=0 // pred_region
    _
  $region5: #{bottleneck_forward.12} parent=0 // pred_fallthru
    _
  // Predicated region
  $region6: #{bottleneck_forward.12} parent=0 // pred_check
    _
  $region7: #{bottleneck_forward.12} parent=0 // pred_check_branch
    %10 = sbr.rel (0) target = $region9
  $region8: #{bottleneck_forward.12} parent=0 // pred_region
    _
  $region9: #{bottleneck_forward.12} parent=0 // pred_fallthru
    _
  %v12 = vld [vmem:[%s0] sm:$0xf]
  %v13 = vld [vmem:[%s0 + $0x4] sm:$0xf]
  %v14 = vld [vmem:[%s1] sm:$0xf]
  %v15 = vld [vmem:[%s1 + $0x4] sm:$0xf]
  %v16 = vld [vmem:[%s1 + $0x8] sm:$0xf]
  %v17 = vld [vmem:[%s1 + $0xc] sm:$0xf]
  %v18 = vld [vmem:[%s1 + $0x10] sm:$0xf]
  %v19 = vld [vmem:[%s1 + $0x14] sm:$0xf]
  %v20 = vld [vmem:[%s1 + $0x18] sm:$0xf]
  %v21 = vld [vmem:[%s1 + $0x1c] sm:$0xf]
  %v22 = vld [vmem:[%s1 + $0x20] sm:$0xf]
  %v25 = vunpack.c.l.b16 %v12
  %v26 = vunpack.c.l.b16 %v13
  %v27 = vpack.c.b16 %v26, %v25
  %v37 = vunpack.c.l.b16 %v14
  %v38 = vunpack.c.l.b16 %v15
  %v39 = vunpack.c.l.b16 %v16
  %v40 = vunpack.c.l.b16 %v17
  %v41 = vunpack.c.l.b16 %v18
  %v42 = vunpack.c.l.b16 %v19
  %v43 = vunpack.c.l.b16 %v20
  %v44 = vunpack.c.l.b16 %v21
  %v45 = vunpack.c.l.b16 %v22
  %v46 = vpack.c.b16 %v38, %v37
  %v47 = vpack.c.b16 %v40, %v39
  %v48 = vpack.c.b16 %v42, %v41
  %v49 = vpack.c.b16 %v44, %v43
  %v50 = vpack.c.b16 %v45, %v45
  %vm55 = vcmask 588800
  %v57 = vsel %vm55, %v27, 0
  %vm59 = vcmask 1043456
  %v61 = vsel %vm59, %v50, 0
  %63 = vmatprep.subr.bf16.mxu0 0
  %64 = vmatpush1.bf16.msra.mxu0 %v46
  %65 = vmatprep.subr.bf16.mxu0 0
  %66 = vmatpush1.bf16.msra.mxu0 %v47
  %67 = vmatprep.subr.bf16.mxu0 0
  %68 = vmatpush1.bf16.msra.mxu0 %v48
  %69 = vmatprep.subr.bf16.mxu0 0
  %70 = vmatpush1.bf16.msra.mxu0 %v49
  %71 = vmatprep.subr.bf16.mxu0 0
  %72 = vmatpush1.bf16.msra.mxu0 %v61
  %73 = vmatprep.subr.bf16.mxu0 0
  %74 = vmatpush1.bf16.msra.mxu0 0
  %75 = vmatprep.subr.bf16.mxu0 0
  %76 = vmatpush1.bf16.msra.mxu0 0
  %77 = vmatprep.subr.bf16.mxu0 0
  %78 = vmatpush1.bf16.msra.mxu0 0
  %79 = vmatprep.subr.bf16.mxu0 0
  %80 = vmatpush1.bf16.msra.mxu0 0
  %81 = vmatprep.subr.bf16.mxu0 0
  %82 = vmatpush1.bf16.msra.mxu0 0
  %83 = vmatprep.subr.bf16.mxu0 0
  %84 = vmatpush1.bf16.msra.mxu0 0
  %85 = vmatprep.subr.bf16.mxu0 0
  %86 = vmatpush1.bf16.msra.mxu0 0
  %87 = vmatprep.subr.bf16.mxu0 0
  %88 = vmatpush1.bf16.msra.mxu0 0
  %89 = vmatprep.subr.bf16.mxu0 0
  %90 = vmatpush1.bf16.msra.mxu0 0
  %91 = vmatprep.subr.bf16.mxu0 0
  %92 = vmatpush1.bf16.msra.mxu0 0
  %93 = vmatprep.subr.bf16.mxu0 0
  %94 = vmatpush1.bf16.msra.mxu0 0
  %95 = vmatprep.mubr.bf16.mxu0 0
  %96 = vmatmul.mubr.bf16.gmra.mrb[0].mxu0 %v57
  %v97 = vpop.f32.mrb[0].mxu0
  %v98 = vadd.f32 0.0, %v97
  %v99 = vpop.f32.mrb[0].mxu0
  %v100 = vpop.f32.mrb[0].mxu0
  %v101 = vadd.f32 0.0, %v100
  %v102 = vpop.f32.mrb[0].mxu0
  %103 = vdwg.mxu0
  %v104 = vpack.c.bf16 %v101, %v98
  %v106 = vunpack.c.l.b16 %v104
  %v107 = vunpack.c.h.b16 %v104
  %v108 = vpack.c.b16 %v106, %v106
  %v109 = vpack.c.b16 %v107, %v107
  %112 = vst [vmem:[%s2] sm:$0xf] %v108
  %113 = vst [vmem:[%s2 + $0x4] sm:$0xf] %v109
  // Predicated region
  $region10: #{bottleneck_forward.12} parent=0 // pred_check
    _
  $region11: #{bottleneck_forward.12} parent=0 // pred_check_branch
    %115 = sbr.rel (0) target = $region13
  $region12: #{bottleneck_forward.12} parent=0 // pred_region
    _
  $region13: #{bottleneck_forward.12} parent=0 // pred_fallthru
    _
  // Predicated region
  $region14: #{bottleneck_forward.12} parent=0 // pred_check
    _
  $region15: #{bottleneck_forward.12} parent=0 // pred_check_branch
    %117 = sbr.rel (0) target = $region17
  $region16: #{bottleneck_forward.12} parent=0 // pred_region
    _
  $region17: #{bottleneck_forward.12} parent=0 // pred_fallthru
    _

// kernel: bottleneck_forward.14
$region0: #{bottleneck_forward.14}
  #allocation0 [shape = 'u32[]', space=smem, size = 0x4, offset = 0x4, fixed_abs, tag = 'smem constant byte address 0x4 - core index']
  #allocation1 [shape = 'u32[144,128]{1,0:T(1,128)}', space=vmem, size = 0x12000, scoped, tag = 'internal scratch']
  %s0 = inlined_call_operand.vmem [shape: bf16[8,72], index: 0, kind: input, shape index: {}]
  %s1 = inlined_call_operand.vmem [shape: bf16[72,128], index: 1, kind: input, shape index: {}]
  %s2 = inlined_call_operand.vmem [shape: bf16[8,128], index: 2, kind: input, shape index: {}]
  %s3 = inlined_call_operand.vmem [shape: f32[8,1], index: 3, kind: input, shape index: {}]
  %s4 = inlined_call_operand.vmem [shape: f32[8,1], index: 4, kind: input, shape index: {}]
  %s5 = inlined_call_operand.vmem [shape: bf16[8,128], index: 5, kind: output, shape index: {}]
  %s6 = sld [smem:[#allocation0]]
  $region30: #{bottleneck_forward.14} parent=0
    _
  %s8 = ssub.s32 1, %s6
  %s9 = scalar_select 0, %s8, %s6
  // Predicated region
  $region2: #{bottleneck_forward.14} parent=0 // pred_check
    _
  $region3: #{bottleneck_forward.14} parent=0 // pred_check_branch
    %11 = sbr.rel (0) target = $region5
  $region4: #{bottleneck_forward.14} parent=0 // pred_region
    _
  $region5: #{bottleneck_forward.14} parent=0 // pred_fallthru
    _
  // Predicated region
  $region6: #{bottleneck_forward.14} parent=0 // pred_check
    _
  $region7: #{bottleneck_forward.14} parent=0 // pred_check_branch
    %13 = sbr.rel (0) target = $region9
  $region8: #{bottleneck_forward.14} parent=0 // pred_region
    _
  $region9: #{bottleneck_forward.14} parent=0 // pred_fallthru
    _
  // Predicated region
  $region10: #{bottleneck_forward.14} parent=0 // pred_check
    _
  $region11: #{bottleneck_forward.14} parent=0 // pred_check_branch
    %15 = sbr.rel (0) target = $region13
  $region12: #{bottleneck_forward.14} parent=0 // pred_region
    _
  $region13: #{bottleneck_forward.14} parent=0 // pred_fallthru
    _
  // Predicated region
  $region14: #{bottleneck_forward.14} parent=0 // pred_check
    _
  $region15: #{bottleneck_forward.14} parent=0 // pred_check_branch
    %17 = sbr.rel (0) target = $region17
  $region16: #{bottleneck_forward.14} parent=0 // pred_region
    _
  $region17: #{bottleneck_forward.14} parent=0 // pred_fallthru
    _
  // Predicated region
  $region18: #{bottleneck_forward.14} parent=0 // pred_check
    _
  $region19: #{bottleneck_forward.14} parent=0 // pred_check_branch
    %19 = sbr.rel (0) target = $region21
  $region20: #{bottleneck_forward.14} parent=0 // pred_region
    _
  $region21: #{bottleneck_forward.14} parent=0 // pred_fallthru
    _
  %v21 = vld [vmem:[%s0] sm:$0xf]
  %v22 = vld [vmem:[%s1] sm:$0xf]
  %v23 = vld [vmem:[%s1 + $0x4] sm:$0xf]
  %v24 = vld [vmem:[%s1 + $0x8] sm:$0xf]
  %v25 = vld [vmem:[%s1 + $0xc] sm:$0xf]
  %v26 = vld [vmem:[%s1 + $0x10] sm:$0xf]
  %v27 = vld [vmem:[%s1 + $0x14] sm:$0xf]
  %v28 = vld [vmem:[%s1 + $0x18] sm:$0xf]
  %v29 = vld [vmem:[%s1 + $0x1c] sm:$0xf]
  %v30 = vld [vmem:[%s1 + $0x20] sm:$0xf]
  %v31 = vld [vmem:[%s2] sm:$0xf]
  %v32 = vunpack.c.l.bf16 %v31
  %v42 = vunpack.c.l.b16 %v22
  %v43 = vunpack.c.l.b16 %v23
  %v44 = vunpack.c.l.b16 %v24
  %v45 = vunpack.c.l.b16 %v25
  %v46 = vunpack.c.l.b16 %v26
  %v47 = vunpack.c.l.b16 %v27
  %v48 = vunpack.c.l.b16 %v28
  %v49 = vunpack.c.l.b16 %v29
  %v50 = vunpack.c.l.b16 %v30
  %v51 = vpack.c.b16 %v43, %v42
  %v52 = vpack.c.b16 %v45, %v44
  %v53 = vpack.c.b16 %v47, %v46
  %v54 = vpack.c.b16 %v49, %v48
  %v55 = vpack.c.b16 %v50, %v50
  %vm60 = vcmask 588800
  %v62 = vsel %vm60, %v21, 0
  %vm64 = vcmask 1043456
  %v66 = vsel %vm64, %v55, 0
  %68 = vmatprep.subr.bf16.mxu0 0
  %69 = vmatpush1.bf16.msra.mxu0 %v51
  %70 = vmatprep.subr.bf16.mxu0 0
  %71 = vmatpush1.bf16.msra.mxu0 %v52
  %72 = vmatprep.subr.bf16.mxu0 0
  %73 = vmatpush1.bf16.msra.mxu0 %v53
  %74 = vmatprep.subr.bf16.mxu0 0
  %75 = vmatpush1.bf16.msra.mxu0 %v54
  %76 = vmatprep.subr.bf16.mxu0 0
  %77 = vmatpush1.bf16.msra.mxu0 %v66
  %78 = vmatprep.subr.bf16.mxu0 0
  %79 = vmatpush1.bf16.msra.mxu0 0
  %80 = vmatprep.subr.bf16.mxu0 0
  %81 = vmatpush1.bf16.msra.mxu0 0
  %82 = vmatprep.subr.bf16.mxu0 0
  %83 = vmatpush1.bf16.msra.mxu0 0
  %84 = vmatprep.subr.bf16.mxu0 0
  %85 = vmatpush1.bf16.msra.mxu0 0
  %86 = vmatprep.subr.bf16.mxu0 0
  %87 = vmatpush1.bf16.msra.mxu0 0
  %88 = vmatprep.subr.bf16.mxu0 0
  %89 = vmatpush1.bf16.msra.mxu0 0
  %90 = vmatprep.subr.bf16.mxu0 0
  %91 = vmatpush1.bf16.msra.mxu0 0
  %92 = vmatprep.subr.bf16.mxu0 0
  %93 = vmatpush1.bf16.msra.mxu0 0
  %94 = vmatprep.subr.bf16.mxu0 0
  %95 = vmatpush1.bf16.msra.mxu0 0
  %96 = vmatprep.subr.bf16.mxu0 0
  %97 = vmatpush1.bf16.msra.mxu0 0
  %98 = vmatprep.subr.bf16.mxu0 0
  %99 = vmatpush1.bf16.msra.mxu0 0
  %100 = vmatprep.mubr.bf16.mxu0 0
  %101 = vmatmul.mubr.bf16.gmra.mrb[0].mxu0 %v62
  %v102 = vpop.f32.mrb[0].mxu0
  %v103 = vadd.f32 %v32, %v102
  %v104 = vpop.f32.mrb[0].mxu0
  %v105 = vpop.f32.mrb[0].mxu0
  %v106 = vpop.f32.mrb[0].mxu0
  %107 = vdwg.mxu0
  %v108 = vld [vmem:[%s3] sm:$0xff]
  %110 = vset.pattern.permute.xlu0 0
  %111 = vperm.xlu0 %110, %v108
  %v112 = vpop.permute.xlu0 %111
  %v114 = vmul.f32 %v103, %v112
  %v115 = vld [vmem:[%s4] sm:$0xff]
  %117 = vset.pattern.permute.xlu0 0
  %118 = vperm.xlu0 %117, %v115
  %v119 = vpop.permute.xlu0 %118
  %v121 = vadd.f32 %v114, %v119
  %v122 = vmax.f32 %v121, 0.0
  %v123 = vpack.c.bf16 %v122, %v122
  %124 = vst [vmem:[%s5] sm:$0xf] %v123
  // Predicated region
  $region22: #{bottleneck_forward.14} parent=0 // pred_check
    _
  $region23: #{bottleneck_forward.14} parent=0 // pred_check_branch
    %126 = sbr.rel (0) target = $region25
  $region24: #{bottleneck_forward.14} parent=0 // pred_region
    _
  $region25: #{bottleneck_forward.14} parent=0 // pred_fallthru
    _
  // Predicated region
  $region26: #{bottleneck_forward.14} parent=0 // pred_check
    _
  $region27: #{bottleneck_forward.14} parent=0 // pred_check_branch
    %128 = sbr.rel (0) target = $region29
  $region28: #{bottleneck_forward.14} parent=0 // pred_region
    _
  $region29: #{bottleneck_forward.14} parent=0 // pred_fallthru
    _

// kernel: bottleneck_forward.15
$region0: #{bottleneck_forward.15}
  #allocation0 [shape = 'u32[]', space=smem, size = 0x4, offset = 0x4, fixed_abs, tag = 'smem constant byte address 0x4 - core index']
  #allocation1 [shape = 'u32[144,128]{1,0:T(1,128)}', space=vmem, size = 0x12000, scoped, tag = 'internal scratch']
  %s0 = inlined_call_operand.vmem [shape: bf16[64,8], index: 0, kind: input, shape index: {}]
  %s1 = inlined_call_operand.vmem [shape: bf16[8,128], index: 1, kind: input, shape index: {}]
  %s2 = inlined_call_operand.vmem [shape: bf16[64,128], index: 2, kind: output, shape index: {}]
  %s3 = sld [smem:[#allocation0]]
  $region18: #{bottleneck_forward.15} parent=0
    _
  %s5 = ssub.s32 1, %s3
  %s6 = scalar_select 0, %s5, %s3
  // Predicated region
  $region2: #{bottleneck_forward.15} parent=0 // pred_check
    _
  $region3: #{bottleneck_forward.15} parent=0 // pred_check_branch
    %8 = sbr.rel (0) target = $region5
  $region4: #{bottleneck_forward.15} parent=0 // pred_region
    _
  $region5: #{bottleneck_forward.15} parent=0 // pred_fallthru
    _
  // Predicated region
  $region6: #{bottleneck_forward.15} parent=0 // pred_check
    _
  $region7: #{bottleneck_forward.15} parent=0 // pred_check_branch
    %10 = sbr.rel (0) target = $region9
  $region8: #{bottleneck_forward.15} parent=0 // pred_region
    _
  $region9: #{bottleneck_forward.15} parent=0 // pred_fallthru
    _
  %v12 = vld [vmem:[%s0] sm:$0xf]
  %v13 = vld [vmem:[%s0 + $0x4] sm:$0xf]
  %v14 = vld [vmem:[%s0 + $0x8] sm:$0xf]
  %v15 = vld [vmem:[%s0 + $0xc] sm:$0xf]
  %v16 = vld [vmem:[%s0 + $0x10] sm:$0xf]
  %v17 = vld [vmem:[%s0 + $0x14] sm:$0xf]
  %v18 = vld [vmem:[%s0 + $0x18] sm:$0xf]
  %v19 = vld [vmem:[%s0 + $0x1c] sm:$0xf]
  %v20 = vld [vmem:[%s1] sm:$0xf]
  %v29 = vunpack.c.l.b16 %v12
  %v30 = vunpack.c.l.b16 %v13
  %v31 = vunpack.c.l.b16 %v14
  %v32 = vunpack.c.l.b16 %v15
  %v33 = vunpack.c.l.b16 %v16
  %v34 = vunpack.c.l.b16 %v17
  %v35 = vunpack.c.l.b16 %v18
  %v36 = vunpack.c.l.b16 %v19
  %v37 = vpack.c.b16 %v30, %v29
  %v38 = vpack.c.b16 %v32, %v31
  %v39 = vpack.c.b16 %v34, %v33
  %v40 = vpack.c.b16 %v36, %v35
  %vm41 = vcmask 64512
  %v43 = vsel %vm41, %v37, 0
  %v46 = vsel %vm41, %v38, 0
  %v49 = vsel %vm41, %v39, 0
  %v52 = vsel %vm41, %v40, 0
  %vm54 = vcmask 1043456
  %v56 = vsel %vm54, %v20, 0
  %58 = vmatprep.subr.bf16.mxu0 0
  %59 = vmatpush1.bf16.msra.mxu0 %v56
  %60 = vmatprep.subr.bf16.mxu0 0
  %61 = vmatpush1.bf16.msra.mxu0 0
  %62 = vmatprep.subr.bf16.mxu0 0
  %63 = vmatpush1.bf16.msra.mxu0 0
  %64 = vmatprep.subr.bf16.mxu0 0
  %65 = vmatpush1.bf16.msra.mxu0 0
  %66 = vmatprep.subr.bf16.mxu0 0
  %67 = vmatpush1.bf16.msra.mxu0 0
  %68 = vmatprep.subr.bf16.mxu0 0
  %69 = vmatpush1.bf16.msra.mxu0 0
  %70 = vmatprep.subr.bf16.mxu0 0
  %71 = vmatpush1.bf16.msra.mxu0 0
  %72 = vmatprep.subr.bf16.mxu0 0
  %73 = vmatpush1.bf16.msra.mxu0 0
  %74 = vmatprep.subr.bf16.mxu0 0
  %75 = vmatpush1.bf16.msra.mxu0 0
  %76 = vmatprep.subr.bf16.mxu0 0
  %77 = vmatpush1.bf16.msra.mxu0 0
  %78 = vmatprep.subr.bf16.mxu0 0
  %79 = vmatpush1.bf16.msra.mxu0 0
  %80 = vmatprep.subr.bf16.mxu0 0
  %81 = vmatpush1.bf16.msra.mxu0 0
  %82 = vmatprep.subr.bf16.mxu0 0
  %83 = vmatpush1.bf16.msra.mxu0 0
  %84 = vmatprep.subr.bf16.mxu0 0
  %85 = vmatpush1.bf16.msra.mxu0 0
  %86 = vmatprep.subr.bf16.mxu0 0
  %87 = vmatpush1.bf16.msra.mxu0 0
  %88 = vmatprep.subr.bf16.mxu0 0
  %89 = vmatpush1.bf16.msra.mxu0 0
  %90 = vmatprep.mubr.bf16.mxu0 0
  %91 = vmatmul.mubr.bf16.gmra.mrb[0].mxu0 %v43
  %v92 = vpop.f32.mrb[0].mxu0
  %v93 = vadd.f32 0.0, %v92
  %v94 = vpop.f32.mrb[0].mxu0
  %v95 = vpop.f32.mrb[0].mxu0
  %v96 = vadd.f32 0.0, %v95
  %v97 = vpop.f32.mrb[0].mxu0
  %98 = vmatprep.mubr.bf16.mxu0 0
  %99 = vmatmul.mubr.bf16.gmra.mrb[0].mxu0 %v46
  %v100 = vpop.f32.mrb[0].mxu0
  %v101 = vadd.f32 0.0, %v100
  %v102 = vpop.f32.mrb[0].mxu0
  %v103 = vpop.f32.mrb[0].mxu0
  %v104 = vadd.f32 0.0, %v103
  %v105 = vpop.f32.mrb[0].mxu0
  %106 = vmatprep.mubr.bf16.mxu0 0
  %107 = vmatmul.mubr.bf16.gmra.mrb[0].mxu0 %v49
  %v108 = vpop.f32.mrb[0].mxu0
  %v109 = vadd.f32 0.0, %v108
  %v110 = vpop.f32.mrb[0].mxu0
  %v111 = vpop.f32.mrb[0].mxu0
  %v112 = vadd.f32 0.0, %v111
  %v113 = vpop.f32.mrb[0].mxu0
  %114 = vmatprep.mubr.bf16.mxu0 0
  %115 = vmatmul.mubr.bf16.gmra.mrb[0].mxu0 %v52
  %v116 = vpop.f32.mrb[0].mxu0
  %v117 = vadd.f32 0.0, %v116
  %v118 = vpop.f32.mrb[0].mxu0
  %v119 = vpop.f32.mrb[0].mxu0
  %v120 = vadd.f32 0.0, %v119
  %v121 = vpop.f32.mrb[0].mxu0
  %122 = vdwg.mxu0
  %v123 = vpack.c.bf16 %v96, %v93
  %v124 = vpack.c.bf16 %v104, %v101
  %v125 = vpack.c.bf16 %v112, %v109
  %v126 = vpack.c.bf16 %v120, %v117
  %v131 = vunpack.c.l.b16 %v123
  %v132 = vunpack.c.h.b16 %v123
  %v133 = vunpack.c.l.b16 %v124
  %v134 = vunpack.c.h.b16 %v124
  %v135 = vunpack.c.l.b16 %v125
  %v136 = vunpack.c.h.b16 %v125
  %v137 = vunpack.c.l.b16 %v126
  %v138 = vunpack.c.h.b16 %v126
  %v139 = vpack.c.b16 %v131, %v131
  %v140 = vpack.c.b16 %v132, %v132
  %v141 = vpack.c.b16 %v133, %v133
  %v142 = vpack.c.b16 %v134, %v134
  %v143 = vpack.c.b16 %v135, %v135
  %v144 = vpack.c.b16 %v136, %v136
  %v145 = vpack.c.b16 %v137, %v137
  %v146 = vpack.c.b16 %v138, %v138
  %155 = vst [vmem:[%s2] sm:$0xf] %v139
  %156 = vst [vmem:[%s2 + $0x4] sm:$0xf] %v140
  %157 = vst [vmem:[%s2 + $0x8] sm:$0xf] %v141
  %158 = vst [vmem:[%s2 + $0xc] sm:$0xf] %v142
  %159 = vst [vmem:[%s2 + $0x10] sm:$0xf] %v143
  %160 = vst [vmem:[%s2 + $0x14] sm:$0xf] %v144
  %161 = vst [vmem:[%s2 + $0x18] sm:$0xf] %v145
  %162 = vst [vmem:[%s2 + $0x1c] sm:$0xf] %v146
  // Predicated region
  $region10: #{bottleneck_forward.15} parent=0 // pred_check
    _
  $region11: #{bottleneck_forward.15} parent=0 // pred_check_branch
    %164 = sbr.rel (0) target = $region13
  $region12: #{bottleneck_forward.15} parent=0 // pred_region
    _
  $region13: #{bottleneck_forward.15} parent=0 // pred_fallthru
    _
  // Predicated region
  $region14: #{bottleneck_forward.15} parent=0 // pred_check
    _
  $region15: #{bottleneck_forward.15} parent=0 // pred_check_branch
    %166 = sbr.rel (0) target = $region17
  $region16: #{bottleneck_forward.15} parent=0 // pred_region
    _
  $region17: #{bottleneck_forward.15} parent=0 // pred_fallthru
    _

// kernel: bottleneck_forward.13
$region0: #{bottleneck_forward.13}
  #allocation0 [shape = 'u32[]', space=smem, size = 0x4, offset = 0x4, fixed_abs, tag = 'smem constant byte address 0x4 - core index']
  #allocation1 [shape = 'u32[144,128]{1,0:T(1,128)}', space=vmem, size = 0x12000, scoped, tag = 'internal scratch']
  %s0 = inlined_call_operand.vmem [shape: bf16[8,72], index: 0, kind: input, shape index: {}]
  %s1 = inlined_call_operand.vmem [shape: bf16[72,512], index: 1, kind: input, shape index: {}]
  %s2 = inlined_call_operand.vmem [shape: bf16[8,512], index: 2, kind: input, shape index: {}]
  %s3 = inlined_call_operand.vmem [shape: f32[8,1], index: 3, kind: input, shape index: {}]
  %s4 = inlined_call_operand.vmem [shape: f32[8,1], index: 4, kind: input, shape index: {}]
  %s5 = inlined_call_operand.vmem [shape: bf16[8,512], index: 5, kind: output, shape index: {}]
  %s6 = sld [smem:[#allocation0]]
  $region91: #{bottleneck_forward.13} parent=0
    _
  %s8 = ssub.s32 1, %s6
  %s9 = scalar_select 0, %s8, %s6
  $region1: #{bottleneck_forward.13} parent=0
    #allocation2 [shape = 'u8[73728]{0}', space=vmem, size = 0x12000, scoped, tag = 'input window, operand 1']
    loop: start=0, step=1, limit=4
    $region2: #{bottleneck_forward.13} parent=1 // loop_pre_header
      _
    $region3: #{bottleneck_forward.13} parent=1 // loop_header
      %s11 = sphi 0, %s15
      %p12 = scmp.ge.s32.totalorder %s11, 4
      %s19 = sphi 0, %s19
      %s21 = sphi 0, %s19
      %s22 = sphi 0, %s21
      %s36 = sphi 0, %s22
      %s42 = sphi 0, %s44
      %s45 = sphi 0, %s42
      %s46 = sphi 0, %s45
      %s62 = sphi 0, %s46
      %s68 = sphi 0, %s70
      %s71 = sphi 0, %s68
      %s72 = sphi 0, %s71
      %s88 = sphi 0, %s72
      %s92 = sphi 0, %s92
      %s94 = sphi 0, %s92
      %s95 = sphi 0, %s94
      %s109 = sphi 0, %s95
      %s113 = sphi 0, %s113
      %s115 = sphi 0, %s113
      %s116 = sphi 0, %s115
      %s130 = sphi 0, %s116
      %s136 = sphi 0, %s138
      %s139 = sphi 0, %s136
      %s140 = sphi 0, %s139
      %s156 = sphi 0, %s140
    $region4: #{bottleneck_forward.13} parent=1 // loop_header_branch
      %14 = sbr.rel (%p12) target = $region8
    $region5: #{bottleneck_forward.13} parent=1 // loop_body
      %s16 = ssub.s32 %s11, 1
      %s17 = ssub.s32 %s11, 2
      %s18 = sadd.s32 %s11, 1
      %s20 = sadd.s32 %s19, 1
      %p23 = scmp.eq.s32.totalorder %s11, 1
      %p24 = scmp.ne.s32.totalorder %s19, %s21
      %p25 = scmp.eq.s32.totalorder %s11, 0
      %p26 = por %p24, %p25
      %p27 = scmp.ne.s32.totalorder %s19, %s21
      %p28 = scmp.eq.s32.totalorder %s16, 1
      %p29 = por %p27, %p28
      %p30 = scmp.ne.s32.totalorder %s21, %s22
      %p31 = scmp.eq.s32.totalorder %s16, 0
      %p32 = por %p30, %p31
      %p33 = scmp.ne.s32.totalorder %s21, %s22
      %p34 = scmp.eq.s32.totalorder %s17, 1
      %p35 = por %p33, %p34
      %p37 = scmp.ne.s32.totalorder %s22, %s36
      %p38 = scmp.eq.s32.totalorder %s17, 0
      %p39 = por %p37, %p38
      %s40 = ssub.s32 %s11, %s18
      %p41 = scmp.eq.s32.totalorder %s40, 0
      %s43 = sadd.s32 %s42, 1
      %s44 = scalar_select %p41, %s42, %s43
      %p47 = pneg %p41
      %p48 = scmp.eq.s32.totalorder %s11, 1
      %p49 = por %p47, %p48
      %p50 = scmp.ne.s32.totalorder %s42, %s45
      %p51 = scmp.eq.s32.totalorder %s11, 0
      %p52 = por %p50, %p51
      %p53 = scmp.ne.s32.totalorder %s42, %s45
      %p54 = scmp.eq.s32.totalorder %s16, 1
      %p55 = por %p53, %p54
      %p56 = scmp.ne.s32.totalorder %s45, %s46
      %p57 = scmp.eq.s32.totalorder %s16, 0
      %p58 = por %p56, %p57
      %p59 = scmp.ne.s32.totalorder %s45, %s46
      %p60 = scmp.eq.s32.totalorder %s17, 1
      %p61 = por %p59, %p60
      %p63 = scmp.ne.s32.totalorder %s46, %s62
      %p64 = scmp.eq.s32.totalorder %s17, 0
      %p65 = por %p63, %p64
      %s66 = ssub.s32 %s11, %s18
      %p67 = scmp.eq.s32.totalorder %s66, 0
      %s69 = sadd.s32 %s68, 1
      %s70 = scalar_select %p67, %s68, %s69
      %p73 = pneg %p67
      %p74 = scmp.eq.s32.totalorder %s11, 1
      %p75 = por %p73, %p74
      %p76 = scmp.ne.s32.totalorder %s68, %s71
      %p77 = scmp.eq.s32.totalorder %s11, 0
      %p78 = por %p76, %p77
      %p79 = scmp.ne.s32.totalorder %s68, %s71
      %p80 = scmp.eq.s32.totalorder %s16, 1
      %p81 = por %p79, %p80
      %p82 = scmp.ne.s32.totalorder %s71, %s72
      %p83 = scmp.eq.s32.totalorder %s16, 0
      %p84 = por %p82, %p83
      %p85 = scmp.ne.s32.totalorder %s71, %s72
      %p86 = scmp.eq.s32.totalorder %s17, 1
      %p87 = por %p85, %p86
      %p89 = scmp.ne.s32.totalorder %s72, %s88
      %p90 = scmp.eq.s32.totalorder %s17, 0
      %p91 = por %p89, %p90
      %s93 = sadd.s32 %s92, 1
      %p96 = scmp.eq.s32.totalorder %s11, 1
      %p97 = scmp.ne.s32.totalorder %s92, %s94
      %p98 = scmp.eq.s32.totalorder %s11, 0
      %p99 = por %p97, %p98
      %p100 = scmp.ne.s32.totalorder %s92, %s94
      %p101 = scmp.eq.s32.totalorder %s16, 1
      %p102 = por %p100, %p101
      %p103 = scmp.ne.s32.totalorder %s94, %s95
      %p104 = scmp.eq.s32.totalorder %s16, 0
      %p105 = por %p103, %p104
      %p106 = scmp.ne.s32.totalorder %s94, %s95
      %p107 = scmp.eq.s32.totalorder %s17, 1
      %p108 = por %p106, %p107
      %p110 = scmp.ne.s32.totalorder %s95, %s109
      %p111 = scmp.eq.s32.totalorder %s17, 0
      %p112 = por %p110, %p111
      %s114 = sadd.s32 %s113, 1
      %p117 = scmp.eq.s32.totalorder %s11, 1
      %p118 = scmp.ne.s32.totalorder %s113, %s115
      %p119 = scmp.eq.s32.totalorder %s11, 0
      %p120 = por %p118, %p119
      %p121 = scmp.ne.s32.totalorder %s113, %s115
      %p122 = scmp.eq.s32.totalorder %s16, 1
      %p123 = por %p121, %p122
      %p124 = scmp.ne.s32.totalorder %s115, %s116
      %p125 = scmp.eq.s32.totalorder %s16, 0
      %p126 = por %p124, %p125
      %p127 = scmp.ne.s32.totalorder %s115, %s116
      %p128 = scmp.eq.s32.totalorder %s17, 1
      %p129 = por %p127, %p128
      %p131 = scmp.ne.s32.totalorder %s116, %s130
      %p132 = scmp.eq.s32.totalorder %s17, 0
      %p133 = por %p131, %p132
      %s134 = ssub.s32 %s11, %s18
      %p135 = scmp.eq.s32.totalorder %s134, 0
      %s137 = sadd.s32 %s136, 1
      %s138 = scalar_select %p135, %s136, %s137
      %p141 = pneg %p135
      %p142 = scmp.eq.s32.totalorder %s11, 1
      %p143 = por %p141, %p142
      %p144 = scmp.ne.s32.totalorder %s136, %s139
      %p145 = scmp.eq.s32.totalorder %s11, 0
      %p146 = por %p144, %p145
      %p147 = scmp.ne.s32.totalorder %s136, %s139
      %p148 = scmp.eq.s32.totalorder %s16, 1
      %p149 = por %p147, %p148
      %p150 = scmp.ne.s32.totalorder %s139, %s140
      %p151 = scmp.eq.s32.totalorder %s16, 0
      %p152 = por %p150, %p151
      %p153 = scmp.ne.s32.totalorder %s139, %s140
      %p154 = scmp.eq.s32.totalorder %s17, 1
      %p155 = por %p153, %p154
      %p157 = scmp.ne.s32.totalorder %s140, %s156
      %p158 = scmp.eq.s32.totalorder %s17, 0
      %p159 = por %p157, %p158
      %p160 = scmp.le.s32.totalorder 1, %s11
      %p161 = scmp.lt.s32.totalorder %s11, 3
      %p162 = pnand %p160, %p161
      %p163 = pneg %p162
      // Predicated region
      $region9: #{bottleneck_forward.13} parent=5 // pred_check
        _
      $region10: #{bottleneck_forward.13} parent=5 // pred_check_branch
        %165 = sbr.rel (%p162) target = $region12
      $region11: #{bottleneck_forward.13} parent=5 // pred_region
        %s166 = ssub.s32 %s11, 1
        // Predicated region
        $region13: #{bottleneck_forward.13} parent=11 // pred_check
          %p167 = pneg %p32
        $region14: #{bottleneck_forward.13} parent=11 // pred_check_branch
          %169 = sbr.rel (%p167) target = $region16
        $region15: #{bottleneck_forward.13} parent=11 // pred_region
          _
        $region16: #{bottleneck_forward.13} parent=11 // pred_fallthru
          _
        // Predicated region
        $region17: #{bottleneck_forward.13} parent=11 // pred_check
          %p170 = pneg %p105
        $region18: #{bottleneck_forward.13} parent=11 // pred_check_branch
          %172 = sbr.rel (%p170) target = $region20
        $region19: #{bottleneck_forward.13} parent=11 // pred_region
          _
        $region20: #{bottleneck_forward.13} parent=11 // pred_fallthru
          _
        // Predicated region
        $region21: #{bottleneck_forward.13} parent=11 // pred_check
          %p173 = pneg %p126
        $region22: #{bottleneck_forward.13} parent=11 // pred_check_branch
          %175 = sbr.rel (%p173) target = $region24
        $region23: #{bottleneck_forward.13} parent=11 // pred_region
          _
        $region24: #{bottleneck_forward.13} parent=11 // pred_fallthru
          _
      $region12: #{bottleneck_forward.13} parent=5 // pred_fallthru
        _
      %p176 = scmp.lt.s32.totalorder %s11, 2
      // Predicated region
      $region25: #{bottleneck_forward.13} parent=5 // pred_check
        %p177 = pneg %p176
      $region26: #{bottleneck_forward.13} parent=5 // pred_check_branch
        %179 = sbr.rel (%p177) target = $region28
      $region27: #{bottleneck_forward.13} parent=5 // pred_region
        // Predicated region
        $region29: #{bottleneck_forward.13} parent=27 // pred_check
          %p180 = pneg %p52
        $region30: #{bottleneck_forward.13} parent=27 // pred_check_branch
          %182 = sbr.rel (%p180) target = $region32
        $region31: #{bottleneck_forward.13} parent=27 // pred_region
          %s183 = sand.u32 %s42, 1
          %s184 = sand.u32 %s42, 1
          %s185 = smul.addr %s184, 72
          %s186 = scalar_lea.vmem [#allocation2], %s185
          %s187 = smul.u32 2, %s11
          %s188 = smul.addr %s187, 4
          %s189 = scalar_lea.vmem %s1, %s188
          // Predicated region
          $region33: #{bottleneck_forward.13} parent=31 // pred_check
            _
          $region34: #{bottleneck_forward.13} parent=31 // pred_check_branch
            %191 = sbr.rel (0) target = $region36
          $region35: #{bottleneck_forward.13} parent=31 // pred_region
            // Predicated region
            $region37: #{bottleneck_forward.13} parent=35 // pred_check
              _
            $region38: #{bottleneck_forward.13} parent=35 // pred_check_branch
              %193 = sbr.rel (0) target = $region40
            $region39: #{bottleneck_forward.13} parent=35 // pred_region
              // Predicated region
              $region52: #{bottleneck_forward.13} parent=39 // pred_check
                _
              $region53: #{bottleneck_forward.13} parent=39 // pred_check_branch
                %224 = sbr.rel (0) target = $region55
              $region54: #{bottleneck_forward.13} parent=39 // pred_region
                loop: start=0, step=1, limit=1
                $region56: #{bottleneck_forward.13} parent=54 // loop_pre_header
                  _
                $region57: #{bottleneck_forward.13} parent=54 // loop_header
                  %s226 = sphi 0, %s230
                  %p227 = scmp.ge.s32.totalorder %s226, 1
                  %s231 = sphi %s189, %s189
                  %s232 = sphi %s186, %s186
                $region58: #{bottleneck_forward.13} parent=54 // loop_header_branch
                  %229 = sbr.rel (%p227) target = $region62
                $region59: #{bottleneck_forward.13} parent=54 // loop_body
                  %v233 = vld [vmem:[%s231] sm:$0xff]
                  %234 = vst [vmem:[%s232] sm:$0xff] %v233
                  %v235 = vld [vmem:[%s231 + $0x10] sm:$0xff]
                  %236 = vst [vmem:[%s232 + $0x8] sm:$0xff] %v235
                  %v237 = vld [vmem:[%s231 + $0x20] sm:$0xff]
                  %238 = vst [vmem:[%s232 + $0x10] sm:$0xff] %v237
                  %v239 = vld [vmem:[%s231 + $0x30] sm:$0xff]
                  %240 = vst [vmem:[%s232 + $0x18] sm:$0xff] %v239
                  %v241 = vld [vmem:[%s231 + $0x40] sm:$0xff]
                  %242 = vst [vmem:[%s232 + $0x20] sm:$0xff] %v241
                  %v243 = vld [vmem:[%s231 + $0x50] sm:$0xff]
                  %244 = vst [vmem:[%s232 + $0x28] sm:$0xff] %v243
                  %v245 = vld [vmem:[%s231 + $0x60] sm:$0xff]
                  %246 = vst [vmem:[%s232 + $0x30] sm:$0xff] %v245
                  %v247 = vld [vmem:[%s231 + $0x70] sm:$0xff]
                  %248 = vst [vmem:[%s232 + $0x38] sm:$0xff] %v247
                  %v249 = vld [vmem:[%s231 + $0x80] sm:$0xff]
                  %250 = vst [vmem:[%s232 + $0x40] sm:$0xff] %v249
                $region60: #{bottleneck_forward.13} parent=54 // loop_footer
                  %s230 = sadd.s32 1, %s226
                $region61: #{bottleneck_forward.13} parent=54 // loop_footer_branch
                  %225 = sbr.rel target = $region57
                $region62: #{bottleneck_forward.13} parent=54 // loop_exit
                  _
              $region55: #{bottleneck_forward.13} parent=39 // pred_fallthru
                _
              // Predicated region
              $region63: #{bottleneck_forward.13} parent=39 // pred_check
                _
              $region64: #{bottleneck_forward.13} parent=39 // pred_check_branch
                %252 = sbr.rel target = $region66
              $region65: #{bottleneck_forward.13} parent=39 // pred_region
                _
              $region66: #{bottleneck_forward.13} parent=39 // pred_fallthru
                _
            $region40: #{bottleneck_forward.13} parent=35 // pred_fallthru
              _
            // Predicated region
            $region41: #{bottleneck_forward.13} parent=35 // pred_check
              _
            $region42: #{bottleneck_forward.13} parent=35 // pred_check_branch
              %195 = sbr.rel target = $region44
            $region43: #{bottleneck_forward.13} parent=35 // pred_region
              loop: start=0, step=1, limit=1
              $region45: #{bottleneck_forward.13} parent=43 // loop_pre_header
                _
              $region46: #{bottleneck_forward.13} parent=43 // loop_header
                %s198 = sphi 0, %s202
                %p199 = scmp.ge.s32.totalorder %s198, 1
                %s203 = sphi %s189, %s189
                %s204 = sphi %s186, %s186
              $region47: #{bottleneck_forward.13} parent=43 // loop_header_branch
                %201 = sbr.rel (%p199) target = $region51
              $region48: #{bottleneck_forward.13} parent=43 // loop_body
                %v205 = vld [vmem:[%s203] sm:$0xff]
                %206 = vst [vmem:[%s204] sm:$0xff] %v205
                %v207 = vld [vmem:[%s203 + $0x10] sm:$0xff]
                %208 = vst [vmem:[%s204 + $0x8] sm:$0xff] %v207
                %v209 = vld [vmem:[%s203 + $0x20] sm:$0xff]
                %210 = vst [vmem:[%s204 + $0x10] sm:$0xff] %v209
                %v211 = vld [vmem:[%s203 + $0x30] sm:$0xff]
                %212 = vst [vmem:[%s204 + $0x18] sm:$0xff] %v211
                %v213 = vld [vmem:[%s203 + $0x40] sm:$0xff]
                %214 = vst [vmem:[%s204 + $0x20] sm:$0xff] %v213
                %v215 = vld [vmem:[%s203 + $0x50] sm:$0xff]
                %216 = vst [vmem:[%s204 + $0x28] sm:$0xff] %v215
                %v217 = vld [vmem:[%s203 + $0x60] sm:$0xff]
                %218 = vst [vmem:[%s204 + $0x30] sm:$0xff] %v217
                %v219 = vld [vmem:[%s203 + $0x70] sm:$0xff]
                %220 = vst [vmem:[%s204 + $0x38] sm:$0xff] %v219
                %v221 = vld [vmem:[%s203 + $0x80] sm:$0xff]
                %222 = vst [vmem:[%s204 + $0x40] sm:$0xff] %v221
              $region49: #{bottleneck_forward.13} parent=43 // loop_footer
                %s202 = sadd.s32 1, %s198
              $region50: #{bottleneck_forward.13} parent=43 // loop_footer_branch
                %197 = sbr.rel target = $region46
              $region51: #{bottleneck_forward.13} parent=43 // loop_exit
                _
            $region44: #{bottleneck_forward.13} parent=35 // pred_fallthru
              _
          $region36: #{bottleneck_forward.13} parent=31 // pred_fallthru
            _
          %253 = vnop
        $region32: #{bottleneck_forward.13} parent=27 // pred_fallthru
          _
        // Predicated region
        $region67: #{bottleneck_forward.13} parent=27 // pred_check
          %p254 = pneg %p78
        $region68: #{bottleneck_forward.13} parent=27 // pred_check_branch
          %256 = sbr.rel (%p254) target = $region70
        $region69: #{bottleneck_forward.13} parent=27 // pred_region
          %s257 = smul.u32 2, %s11
          %p258 = scmp.lt.s32.totalorder %s257, 3
          %s259 = scalar_select %p258, %s257, 3
          %s260 = smul.addr %s259, 4
          %s261 = scalar_lea.vmem %s2, %s260
          %s262 = smul.u32 2, %s11
        $region70: #{bottleneck_forward.13} parent=27 // pred_fallthru
          _
      $region28: #{bottleneck_forward.13} parent=5 // pred_fallthru
        _
      %p263 = scmp.le.s32.totalorder 1, %s11
      %p264 = scmp.lt.s32.totalorder %s11, 3
      %p265 = pnand %p263, %p264
      %p266 = pneg %p265
      // Predicated region
      $region71: #{bottleneck_forward.13} parent=5 // pred_check
        _
      $region72: #{bottleneck_forward.13} parent=5 // pred_check_branch
        %268 = sbr.rel (%p265) target = $region74
      $region73: #{bottleneck_forward.13} parent=5 // pred_region
        %s269 = ssub.s32 %s11, 1
        %s270 = sand.u32 %s45, 1
        %s271 = sand.u32 %s45, 1
        %s272 = smul.addr %s271, 72
        %s273 = scalar_lea.vmem [#allocation2], %s272
        // Predicated region
        $region75: #{bottleneck_forward.13} parent=73 // pred_check
          %p274 = pneg %p58
        $region76: #{bottleneck_forward.13} parent=73 // pred_check_branch
          %276 = sbr.rel (%p274) target = $region78
        $region77: #{bottleneck_forward.13} parent=73 // pred_region
          _
        $region78: #{bottleneck_forward.13} parent=73 // pred_fallthru
          _
        %p277 = pneg %p32
        %p278 = pneg %p29
        %s279 = sand.u32 %s45, 1
        %s280 = sand.u32 %s45, 1
        %s281 = smul.addr %s280, 72
        %s282 = scalar_lea.vmem [#allocation2], %s281
        %p283 = pneg %p58
        %p284 = pneg %p55
        %s285 = smul.u32 2, %s16
        %p286 = scmp.lt.s32.totalorder %s285, 3
        %s287 = scalar_select %p286, %s285, 3
        %s288 = smul.addr %s287, 4
        %s289 = scalar_lea.vmem %s2, %s288
        %p290 = pneg %p84
        %p291 = pneg %p81
        %p292 = pneg %p105
        %p293 = pneg %p102
        %p294 = pneg %p126
        %p295 = pneg %p123
        %p296 = pneg %p152
        %p297 = pneg %p149
        %s298 = smul.u32 2, %s16
        %p299 = scmp.lt.s32.totalorder %s298, 3
        %s300 = scalar_select %p299, %s298, 3
        %s301 = smul.addr %s300, 4
        %s302 = scalar_lea.vmem %s5, %s301
        %s303 = smul.u32 2, %s16
        %s304 = smul.u32 2, %s16
        %p305 = scmp.lt.s32.totalorder %s304, 3
        %s306 = scalar_select %p305, %s304, 3
        %s307 = smul.addr %s306, 4
        %s308 = scalar_lea.vmem %s2, %s307
        %s309 = smul.u32 2, %s16
        %s310 = smul.u32 2, %s16
        %p311 = scmp.lt.s32.totalorder %s310, 3
        %s312 = scalar_select %p311, %s310, 3
        %s313 = smul.addr %s312, 4
        %s314 = scalar_lea.vmem %s5, %s313
        %s315 = smul.u32 2, %s16
        %v317 = vld [vmem:[%s0] sm:$0xf]
        %v318 = vld [vmem:[%s273] sm:$0xff]
        %v319 = vld [vmem:[%s273 + $0x8] sm:$0xff]
        %v320 = vld [vmem:[%s273 + $0x10] sm:$0xff]
        %v321 = vld [vmem:[%s273 + $0x18] sm:$0xff]
        %v322 = vld [vmem:[%s273 + $0x20] sm:$0xff]
        %v323 = vld [vmem:[%s273 + $0x28] sm:$0xff]
        %v324 = vld [vmem:[%s273 + $0x30] sm:$0xff]
        %v325 = vld [vmem:[%s273 + $0x38] sm:$0xff]
        %v326 = vld [vmem:[%s273 + $0x40] sm:$0xff]
        %v327 = vld [vmem:[%s308] sm:$0xff]
        %v328 = vunpack.c.l.bf16 %v327
        %v329 = vunpack.c.h.bf16 %v327
        %v339 = vunpack.c.l.b16 %v318
        %v340 = vunpack.c.h.b16 %v318
        %v341 = vunpack.c.l.b16 %v319
        %v342 = vunpack.c.h.b16 %v319
        %v343 = vunpack.c.l.b16 %v320
        %v344 = vunpack.c.h.b16 %v320
        %v345 = vunpack.c.l.b16 %v321
        %v346 = vunpack.c.h.b16 %v321
        %v347 = vunpack.c.l.b16 %v322
        %v348 = vunpack.c.h.b16 %v322
        %v349 = vunpack.c.l.b16 %v323
        %v350 = vunpack.c.h.b16 %v323
        %v351 = vunpack.c.l.b16 %v324
        %v352 = vunpack.c.h.b16 %v324
        %v353 = vunpack.c.l.b16 %v325
        %v354 = vunpack.c.h.b16 %v325
        %v355 = vunpack.c.l.b16 %v326
        %v356 = vunpack.c.h.b16 %v326
        %v357 = vpack.c.b16 %v341, %v339
        %v358 = vpack.c.b16 %v342, %v340
        %v359 = vpack.c.b16 %v345, %v343
        %v360 = vpack.c.b16 %v346, %v344
        %v361 = vpack.c.b16 %v349, %v347
        %v362 = vpack.c.b16 %v350, %v348
        %v363 = vpack.c.b16 %v353, %v351
        %v364 = vpack.c.b16 %v354, %v352
        %v365 = vpack.c.b16 %v355, %v355
        %v366 = vpack.c.b16 %v356, %v356
        %vm375 = vcmask 588800
        %v377 = vsel %vm375, %v317, 0
        %vm379 = vcmask 1043456
        %v381 = vsel %vm379, %v365, 0
        %v384 = vsel %vm379, %v366, 0
        %386 = vmatprep.subr.bf16.mxu0 %v358
        %387 = vmatpush1.bf16.msra.mxu0 %v357
        %388 = vmatprep.subr.bf16.mxu0 %v360
        %389 = vmatpush1.bf16.msra.mxu0 %v359
        %390 = vmatprep.subr.bf16.mxu0 %v362
        %391 = vmatpush1.bf16.msra.mxu0 %v361
        %392 = vmatprep.subr.bf16.mxu0 %v364
        %393 = vmatpush1.bf16.msra.mxu0 %v363
        %394 = vmatprep.subr.bf16.mxu0 %v384
        %395 = vmatpush1.bf16.msra.mxu0 %v381
        %396 = vmatprep.subr.bf16.mxu0 0
        %397 = vmatpush1.bf16.msra.mxu0 0
        %398 = vmatprep.subr.bf16.mxu0 0
        %399 = vmatpush1.bf16.msra.mxu0 0
        %400 = vmatprep.subr.bf16.mxu0 0
        %401 = vmatpush1.bf16.msra.mxu0 0
        %402 = vmatprep.subr.bf16.mxu0 0
        %403 = vmatpush1.bf16.msra.mxu0 0
        %404 = vmatprep.subr.bf16.mxu0 0
        %405 = vmatpush1.bf16.msra.mxu0 0
        %406 = vmatprep.subr.bf16.mxu0 0
        %407 = vmatpush1.bf16.msra.mxu0 0
        %408 = vmatprep.subr.bf16.mxu0 0
        %409 = vmatpush1.bf16.msra.mxu0 0
        %410 = vmatprep.subr.bf16.mxu0 0
        %411 = vmatpush1.bf16.msra.mxu0 0
        %412 = vmatprep.subr.bf16.mxu0 0
        %413 = vmatpush1.bf16.msra.mxu0 0
        %414 = vmatprep.subr.bf16.mxu0 0
        %415 = vmatpush1.bf16.msra.mxu0 0
        %416 = vmatprep.subr.bf16.mxu0 0
        %417 = vmatpush1.bf16.msra.mxu0 0
        %418 = vmatprep.mubr.bf16.mxu0 0
        %419 = vmatmul.mubr.bf16.gmra.mrb[0].mxu0 %v377
        %v420 = vpop.f32.mrb[0].mxu0
        %v421 = vadd.f32 %v328, %v420
        %v422 = vpop.f32.mrb[0].mxu0
        %v423 = vadd.f32 %v329, %v422
        %v424 = vpop.f32.mrb[0].mxu0
        %v425 = vpop.f32.mrb[0].mxu0
        %426 = vdwg.mxu0
        %v427 = vld [vmem:[%s3] sm:$0xff]
        %429 = vset.pattern.permute.xlu0 0
        %430 = vperm.xlu0 %429, %v427
        %v431 = vpop.permute.xlu0 %430
        %v433 = vmul.f32 %v421, %v431
        %v434 = vmul.f32 %v423, %v431
        %v435 = vld [vmem:[%s4] sm:$0xff]
        %437 = vset.pattern.permute.xlu0 0
        %438 = vperm.xlu0 %437, %v435
        %v439 = vpop.permute.xlu0 %438
        %v441 = vadd.f32 %v433, %v439
        %v442 = vadd.f32 %v434, %v439
        %v443 = vmax.f32 %v441, 0.0
        %v444 = vmax.f32 %v442, 0.0
        %v445 = vpack.c.bf16 %v443, %v443
        %v446 = vpack.c.bf16 %v444, %v444
        %v449 = vunpack.c.l.b16 %v445
        %v450 = vunpack.c.l.b16 %v446
        %v451 = vpack.c.b16 %v450, %v449
        %453 = vst [vmem:[%s314] sm:$0xff] %v451
        %s454 = smul.u32 2, %s16
        %p455 = scmp.lt.s32.totalorder %s454, 3
        %s456 = scalar_select %p455, %s454, 3
        %s457 = smul.addr %s456, 4
        %s458 = scalar_lea.vmem %s5, %s457
        // Predicated region
        $region79: #{bottleneck_forward.13} parent=73 // pred_check
          %p459 = pneg %p149
        $region80: #{bottleneck_forward.13} parent=73 // pred_check_branch
          %461 = sbr.rel (%p459) target = $region82
        $region81: #{bottleneck_forward.13} parent=73 // pred_region
          %s462 = smul.u32 2, %s16
        $region82: #{bottleneck_forward.13} parent=73 // pred_fallthru
          _
      $region74: #{bottleneck_forward.13} parent=5 // pred_fallthru
        _
      %p463 = scmp.le.s32.totalorder 2, %s11
      // Predicated region
      $region83: #{bottleneck_forward.13} parent=5 // pred_check
        %p464 = pneg %p463
      $region84: #{bottleneck_forward.13} parent=5 // pred_check_branch
        %466 = sbr.rel (%p464) target = $region86
      $region85: #{bottleneck_forward.13} parent=5 // pred_region
        %s467 = ssub.s32 %s11, 2
        // Predicated region
        $region87: #{bottleneck_forward.13} parent=85 // pred_check
          %p468 = pneg %p155
        $region88: #{bottleneck_forward.13} parent=85 // pred_check_branch
          %470 = sbr.rel (%p468) target = $region90
        $region89: #{bottleneck_forward.13} parent=85 // pred_region
          %s471 = smul.u32 2, %s17
          %p472 = scmp.lt.s32.totalorder %s471, 3
          %s473 = scalar_select %p472, %s471, 3
          %s474 = smul.addr %s473, 4
          %s475 = scalar_lea.vmem %s5, %s474
        $region90: #{bottleneck_forward.13} parent=85 // pred_fallthru
          _
      $region86: #{bottleneck_forward.13} parent=5 // pred_fallthru
        _
    $region6: #{bottleneck_forward.13} parent=1 // loop_footer
      %s15 = sadd.s32 1, %s11
    $region7: #{bottleneck_forward.13} parent=1 // loop_footer_branch
      %10 = sbr.rel target = $region3
    $region8: #{bottleneck_forward.13} parent=1 // loop_exit
      _

// kernel: bottleneck_forward.17
$region0: #{bottleneck_forward.17}
  #allocation0 [shape = 'u32[]', space=smem, size = 0x4, offset = 0x4, fixed_abs, tag = 'smem constant byte address 0x4 - core index']
  #allocation1 [shape = 'u32[144,128]{1,0:T(1,128)}', space=vmem, size = 0x12000, scoped, tag = 'internal scratch']
  %s0 = inlined_call_operand.vmem [shape: bf16[32,8], index: 0, kind: input, shape index: {}]
  %s1 = inlined_call_operand.vmem [shape: bf16[8,128], index: 1, kind: input, shape index: {}]
  %s2 = inlined_call_operand.vmem [shape: bf16[32,128], index: 2, kind: input, shape index: {}]
  %s3 = inlined_call_operand.vmem [shape: f32[32,1], index: 3, kind: input, shape index: {}]
  %s4 = inlined_call_operand.vmem [shape: f32[32,1], index: 4, kind: input, shape index: {}]
  %s5 = inlined_call_operand.vmem [shape: f32[32,128], index: 5, kind: input, shape index: {}]
  %s6 = inlined_call_operand.vmem [shape: f32[32,128], index: 6, kind: output, shape index: {}]
  %s7 = sld [smem:[#allocation0]]
  $region34: #{bottleneck_forward.17} parent=0
    _
  %s9 = ssub.s32 1, %s7
  %s10 = scalar_select 0, %s9, %s7
  // Predicated region
  $region2: #{bottleneck_forward.17} parent=0 // pred_check
    _
  $region3: #{bottleneck_forward.17} parent=0 // pred_check_branch
    %12 = sbr.rel (0) target = $region5
  $region4: #{bottleneck_forward.17} parent=0 // pred_region
    _
  $region5: #{bottleneck_forward.17} parent=0 // pred_fallthru
    _
  // Predicated region
  $region6: #{bottleneck_forward.17} parent=0 // pred_check
    _
  $region7: #{bottleneck_forward.17} parent=0 // pred_check_branch
    %14 = sbr.rel (0) target = $region9
  $region8: #{bottleneck_forward.17} parent=0 // pred_region
    _
  $region9: #{bottleneck_forward.17} parent=0 // pred_fallthru
    _
  // Predicated region
  $region10: #{bottleneck_forward.17} parent=0 // pred_check
    _
  $region11: #{bottleneck_forward.17} parent=0 // pred_check_branch
    %16 = sbr.rel (0) target = $region13
  $region12: #{bottleneck_forward.17} parent=0 // pred_region
    _
  $region13: #{bottleneck_forward.17} parent=0 // pred_fallthru
    _
  // Predicated region
  $region14: #{bottleneck_forward.17} parent=0 // pred_check
    _
  $region15: #{bottleneck_forward.17} parent=0 // pred_check_branch
    %18 = sbr.rel (0) target = $region17
  $region16: #{bottleneck_forward.17} parent=0 // pred_region
    _
  $region17: #{bottleneck_forward.17} parent=0 // pred_fallthru
    _
  // Predicated region
  $region18: #{bottleneck_forward.17} parent=0 // pred_check
    _
  $region19: #{bottleneck_forward.17} parent=0 // pred_check_branch
    %20 = sbr.rel (0) target = $region21
  $region20: #{bottleneck_forward.17} parent=0 // pred_region
    _
  $region21: #{bottleneck_forward.17} parent=0 // pred_fallthru
    _
  // Predicated region
  $region22: #{bottleneck_forward.17} parent=0 // pred_check
    _
  $region23: #{bottleneck_forward.17} parent=0 // pred_check_branch
    %22 = sbr.rel (0) target = $region25
  $region24: #{bottleneck_forward.17} parent=0 // pred_region
    _
  $region25: #{bottleneck_forward.17} parent=0 // pred_fallthru
    _
  %v24 = vld [vmem:[%s0] sm:$0xf]
  %v25 = vld [vmem:[%s0 + $0x4] sm:$0xf]
  %v26 = vld [vmem:[%s0 + $0x8] sm:$0xf]
  %v27 = vld [vmem:[%s0 + $0xc] sm:$0xf]
  %v28 = vld [vmem:[%s1] sm:$0xf]
  %v29 = vld [vmem:[%s2] sm:$0xf]
  %v30 = vld [vmem:[%s2 + $0x4] sm:$0xf]
  %v31 = vld [vmem:[%s2 + $0x8] sm:$0xf]
  %v32 = vld [vmem:[%s2 + $0xc] sm:$0xf]
  %v33 = vunpack.c.l.bf16 %v29
  %v34 = vunpack.c.l.bf16 %v30
  %v35 = vunpack.c.l.bf16 %v31
  %v36 = vunpack.c.l.bf16 %v32
  %v41 = vunpack.c.l.b16 %v24
  %v42 = vunpack.c.l.b16 %v25
  %v43 = vunpack.c.l.b16 %v26
  %v44 = vunpack.c.l.b16 %v27
  %v45 = vpack.c.b16 %v42, %v41
  %v46 = vpack.c.b16 %v44, %v43
  %vm47 = vcmask 64512
  %v49 = vsel %vm47, %v45, 0
  %v52 = vsel %vm47, %v46, 0
  %vm54 = vcmask 1043456
  %v56 = vsel %vm54, %v28, 0
  %58 = vmatprep.subr.bf16.mxu0 0
  %59 = vmatpush1.bf16.msra.mxu0 %v56
  %60 = vmatprep.subr.bf16.mxu0 0
  %61 = vmatpush1.bf16.msra.mxu0 0
  %62 = vmatprep.subr.bf16.mxu0 0
  %63 = vmatpush1.bf16.msra.mxu0 0
  %64 = vmatprep.subr.bf16.mxu0 0
  %65 = vmatpush1.bf16.msra.mxu0 0
  %66 = vmatprep.subr.bf16.mxu0 0
  %67 = vmatpush1.bf16.msra.mxu0 0
  %68 = vmatprep.subr.bf16.mxu0 0
  %69 = vmatpush1.bf16.msra.mxu0 0
  %70 = vmatprep.subr.bf16.mxu0 0
  %71 = vmatpush1.bf16.msra.mxu0 0
  %72 = vmatprep.subr.bf16.mxu0 0
  %73 = vmatpush1.bf16.msra.mxu0 0
  %74 = vmatprep.subr.bf16.mxu0 0
  %75 = vmatpush1.bf16.msra.mxu0 0
  %76 = vmatprep.subr.bf16.mxu0 0
  %77 = vmatpush1.bf16.msra.mxu0 0
  %78 = vmatprep.subr.bf16.mxu0 0
  %79 = vmatpush1.bf16.msra.mxu0 0
  %80 = vmatprep.subr.bf16.mxu0 0
  %81 = vmatpush1.bf16.msra.mxu0 0
  %82 = vmatprep.subr.bf16.mxu0 0
  %83 = vmatpush1.bf16.msra.mxu0 0
  %84 = vmatprep.subr.bf16.mxu0 0
  %85 = vmatpush1.bf16.msra.mxu0 0
  %86 = vmatprep.subr.bf16.mxu0 0
  %87 = vmatpush1.bf16.msra.mxu0 0
  %88 = vmatprep.subr.bf16.mxu0 0
  %89 = vmatpush1.bf16.msra.mxu0 0
  %90 = vmatprep.mubr.bf16.mxu0 0
  %91 = vmatmul.mubr.bf16.gmra.mrb[0].mxu0 %v49
  %v92 = vpop.f32.mrb[0].mxu0
  %v93 = vadd.f32 %v33, %v92
  %v94 = vpop.f32.mrb[0].mxu0
  %v95 = vpop.f32.mrb[0].mxu0
  %v96 = vadd.f32 %v34, %v95
  %v97 = vpop.f32.mrb[0].mxu0
  %98 = vmatprep.mubr.bf16.mxu0 0
  %99 = vmatmul.mubr.bf16.gmra.mrb[0].mxu0 %v52
  %v100 = vpop.f32.mrb[0].mxu0
  %v101 = vadd.f32 %v35, %v100
  %v102 = vpop.f32.mrb[0].mxu0
  %v103 = vpop.f32.mrb[0].mxu0
  %v104 = vadd.f32 %v36, %v103
  %v105 = vpop.f32.mrb[0].mxu0
  %106 = vdwg.mxu0
  %v107 = vld [vmem:[%s3] sm:$0xff]
  %v108 = vld [vmem:[%s3 + $0x8] sm:$0xff]
  %v109 = vld [vmem:[%s3 + $0x10] sm:$0xff]
  %v110 = vld [vmem:[%s3 + $0x18] sm:$0xff]
  %112 = vset.pattern.permute.xlu0 0
  %113 = vperm.xlu0 %112, %v107
  %v114 = vpop.permute.xlu0 %113
  %117 = vset.pattern.permute.xlu0 0
  %118 = vperm.xlu0 %117, %v108
  %v119 = vpop.permute.xlu0 %118
  %122 = vset.pattern.permute.xlu0 0
  %123 = vperm.xlu0 %122, %v109
  %v124 = vpop.permute.xlu0 %123
  %127 = vset.pattern.permute.xlu0 0
  %128 = vperm.xlu0 %127, %v110
  %v129 = vpop.permute.xlu0 %128
  %v131 = vmul.f32 %v93, %v114
  %v132 = vmul.f32 %v96, %v119
  %v133 = vmul.f32 %v101, %v124
  %v134 = vmul.f32 %v104, %v129
  %v135 = vld [vmem:[%s4] sm:$0xff]
  %v136 = vld [vmem:[%s4 + $0x8] sm:$0xff]
  %v137 = vld [vmem:[%s4 + $0x10] sm:$0xff]
  %v138 = vld [vmem:[%s4 + $0x18] sm:$0xff]
  %140 = vset.pattern.permute.xlu0 0
  %141 = vperm.xlu0 %140, %v135
  %v142 = vpop.permute.xlu0 %141
  %145 = vset.pattern.permute.xlu0 0
  %146 = vperm.xlu0 %145, %v136
  %v147 = vpop.permute.xlu0 %146
  %150 = vset.pattern.permute.xlu0 0
  %151 = vperm.xlu0 %150, %v137
  %v152 = vpop.permute.xlu0 %151
  %155 = vset.pattern.permute.xlu0 0
  %156 = vperm.xlu0 %155, %v138
  %v157 = vpop.permute.xlu0 %156
  %v159 = vadd.f32 %v131, %v142
  %v160 = vadd.f32 %v132, %v147
  %v161 = vadd.f32 %v133, %v152
  %v162 = vadd.f32 %v134, %v157
  %v163 = vld [vmem:[%s5] sm:$0xff]
  %v164 = vld [vmem:[%s5 + $0x8] sm:$0xff]
  %v165 = vld [vmem:[%s5 + $0x10] sm:$0xff]
  %v166 = vld [vmem:[%s5 + $0x18] sm:$0xff]
  %v167 = vadd.f32 %v159, %v163
  %v168 = vadd.f32 %v160, %v164
  %v169 = vadd.f32 %v161, %v165
  %v170 = vadd.f32 %v162, %v166
  %v171 = vmax.f32 %v167, 0.0
  %v172 = vmax.f32 %v168, 0.0
  %v173 = vmax.f32 %v169, 0.0
  %v174 = vmax.f32 %v170, 0.0
  %175 = vst [vmem:[%s6] sm:$0xff] %v171
  %176 = vst [vmem:[%s6 + $0x8] sm:$0xff] %v172
  %177 = vst [vmem:[%s6 + $0x10] sm:$0xff] %v173
  %178 = vst [vmem:[%s6 + $0x18] sm:$0xff] %v174
  // Predicated region
  $region26: #{bottleneck_forward.17} parent=0 // pred_check
    _
  $region27: #{bottleneck_forward.17} parent=0 // pred_check_branch
    %180 = sbr.rel (0) target = $region29
  $region28: #{bottleneck_forward.17} parent=0 // pred_region
    _
  $region29: #{bottleneck_forward.17} parent=0 // pred_fallthru
    _
  // Predicated region
  $region30: #{bottleneck_forward.17} parent=0 // pred_check
    _
  $region31: #{bottleneck_forward.17} parent=0 // pred_check_branch
    %182 = sbr.rel (0) target = $region33
  $region32: #{bottleneck_forward.17} parent=0 // pred_region
    _
  $region33: #{bottleneck_forward.17} parent=0 // pred_fallthru
    _

// kernel: bottleneck_forward.16
$region0: #{bottleneck_forward.16}
  #allocation0 [shape = 'u32[]', space=smem, size = 0x4, offset = 0x4, fixed_abs, tag = 'smem constant byte address 0x4 - core index']
  #allocation1 [shape = 'u32[144,128]{1,0:T(1,128)}', space=vmem, size = 0x12000, scoped, tag = 'internal scratch']
  %s0 = inlined_call_operand.vmem [shape: bf16[32,8], index: 0, kind: input, shape index: {}]
  %s1 = inlined_call_operand.vmem [shape: bf16[8,512], index: 1, kind: input, shape index: {}]
  %s2 = inlined_call_operand.vmem [shape: bf16[32,512], index: 2, kind: input, shape index: {}]
  %s3 = inlined_call_operand.vmem [shape: f32[32,1], index: 3, kind: input, shape index: {}]
  %s4 = inlined_call_operand.vmem [shape: f32[32,1], index: 4, kind: input, shape index: {}]
  %s5 = inlined_call_operand.vmem [shape: f32[32,512], index: 5, kind: input, shape index: {}]
  %s6 = inlined_call_operand.vmem [shape: f32[32,512], index: 6, kind: output, shape index: {}]
  %s7 = sld [smem:[#allocation0]]
  $region137: #{bottleneck_forward.16} parent=0
    _
  %s9 = ssub.s32 1, %s7
  %s10 = scalar_select 0, %s9, %s7
  $region1: #{bottleneck_forward.16} parent=0
    #allocation2 [shape = 'u8[32768]{0}', space=vmem, size = 0x8000, scoped, tag = 'input window, operand 2']
    #allocation3 [shape = 'u8[65536]{0}', space=vmem, size = 0x10000, scoped, tag = 'input window, operand 5']
    #allocation4 [shape = 'u8[65536]{0}', space=vmem, size = 0x10000, scoped, tag = 'output window, operand 0']
    loop: start=0, step=1, limit=4
    $region2: #{bottleneck_forward.16} parent=1 // loop_pre_header
      _
    $region3: #{bottleneck_forward.16} parent=1 // loop_header
      %s12 = sphi 0, %s16
      %p13 = scmp.ge.s32.totalorder %s12, 4
      %s20 = sphi 0, %s20
      %s22 = sphi 0, %s20
      %s23 = sphi 0, %s22
      %s37 = sphi 0, %s23
      %s43 = sphi 0, %s45
      %s46 = sphi 0, %s43
      %s47 = sphi 0, %s46
      %s63 = sphi 0, %s47
      %s69 = sphi 0, %s71
      %s72 = sphi 0, %s69
      %s73 = sphi 0, %s72
      %s89 = sphi 0, %s73
      %s93 = sphi 0, %s93
      %s95 = sphi 0, %s93
      %s96 = sphi 0, %s95
      %s110 = sphi 0, %s96
      %s114 = sphi 0, %s114
      %s116 = sphi 0, %s114
      %s117 = sphi 0, %s116
      %s131 = sphi 0, %s117
      %s137 = sphi 0, %s139
      %s140 = sphi 0, %s137
      %s141 = sphi 0, %s140
      %s157 = sphi 0, %s141
      %s163 = sphi 0, %s165
      %s166 = sphi 0, %s163
      %s167 = sphi 0, %s166
      %s183 = sphi 0, %s167
    $region4: #{bottleneck_forward.16} parent=1 // loop_header_branch
      %15 = sbr.rel (%p13) target = $region8
    $region5: #{bottleneck_forward.16} parent=1 // loop_body
      %s17 = ssub.s32 %s12, 1
      %s18 = ssub.s32 %s12, 2
      %s19 = sadd.s32 %s12, 1
      %s21 = sadd.s32 %s20, 1
      %p24 = scmp.eq.s32.totalorder %s12, 1
      %p25 = scmp.ne.s32.totalorder %s20, %s22
      %p26 = scmp.eq.s32.totalorder %s12, 0
      %p27 = por %p25, %p26
      %p28 = scmp.ne.s32.totalorder %s20, %s22
      %p29 = scmp.eq.s32.totalorder %s17, 1
      %p30 = por %p28, %p29
      %p31 = scmp.ne.s32.totalorder %s22, %s23
      %p32 = scmp.eq.s32.totalorder %s17, 0
      %p33 = por %p31, %p32
      %p34 = scmp.ne.s32.totalorder %s22, %s23
      %p35 = scmp.eq.s32.totalorder %s18, 1
      %p36 = por %p34, %p35
      %p38 = scmp.ne.s32.totalorder %s23, %s37
      %p39 = scmp.eq.s32.totalorder %s18, 0
      %p40 = por %p38, %p39
      %s41 = ssub.s32 %s12, %s19
      %p42 = scmp.eq.s32.totalorder %s41, 0
      %s44 = sadd.s32 %s43, 1
      %s45 = scalar_select %p42, %s43, %s44
      %p48 = pneg %p42
      %p49 = scmp.eq.s32.totalorder %s12, 1
      %p50 = por %p48, %p49
      %p51 = scmp.ne.s32.totalorder %s43, %s46
      %p52 = scmp.eq.s32.totalorder %s12, 0
      %p53 = por %p51, %p52
      %p54 = scmp.ne.s32.totalorder %s43, %s46
      %p55 = scmp.eq.s32.totalorder %s17, 1
      %p56 = por %p54, %p55
      %p57 = scmp.ne.s32.totalorder %s46, %s47
      %p58 = scmp.eq.s32.totalorder %s17, 0
      %p59 = por %p57, %p58
      %p60 = scmp.ne.s32.totalorder %s46, %s47
      %p61 = scmp.eq.s32.totalorder %s18, 1
      %p62 = por %p60, %p61
      %p64 = scmp.ne.s32.totalorder %s47, %s63
      %p65 = scmp.eq.s32.totalorder %s18, 0
      %p66 = por %p64, %p65
      %s67 = ssub.s32 %s12, %s19
      %p68 = scmp.eq.s32.totalorder %s67, 0
      %s70 = sadd.s32 %s69, 1
      %s71 = scalar_select %p68, %s69, %s70
      %p74 = pneg %p68
      %p75 = scmp.eq.s32.totalorder %s12, 1
      %p76 = por %p74, %p75
      %p77 = scmp.ne.s32.totalorder %s69, %s72
      %p78 = scmp.eq.s32.totalorder %s12, 0
      %p79 = por %p77, %p78
      %p80 = scmp.ne.s32.totalorder %s69, %s72
      %p81 = scmp.eq.s32.totalorder %s17, 1
      %p82 = por %p80, %p81
      %p83 = scmp.ne.s32.totalorder %s72, %s73
      %p84 = scmp.eq.s32.totalorder %s17, 0
      %p85 = por %p83, %p84
      %p86 = scmp.ne.s32.totalorder %s72, %s73
      %p87 = scmp.eq.s32.totalorder %s18, 1
      %p88 = por %p86, %p87
      %p90 = scmp.ne.s32.totalorder %s73, %s89
      %p91 = scmp.eq.s32.totalorder %s18, 0
      %p92 = por %p90, %p91
      %s94 = sadd.s32 %s93, 1
      %p97 = scmp.eq.s32.totalorder %s12, 1
      %p98 = scmp.ne.s32.totalorder %s93, %s95
      %p99 = scmp.eq.s32.totalorder %s12, 0
      %p100 = por %p98, %p99
      %p101 = scmp.ne.s32.totalorder %s93, %s95
      %p102 = scmp.eq.s32.totalorder %s17, 1
      %p103 = por %p101, %p102
      %p104 = scmp.ne.s32.totalorder %s95, %s96
      %p105 = scmp.eq.s32.totalorder %s17, 0
      %p106 = por %p104, %p105
      %p107 = scmp.ne.s32.totalorder %s95, %s96
      %p108 = scmp.eq.s32.totalorder %s18, 1
      %p109 = por %p107, %p108
      %p111 = scmp.ne.s32.totalorder %s96, %s110
      %p112 = scmp.eq.s32.totalorder %s18, 0
      %p113 = por %p111, %p112
      %s115 = sadd.s32 %s114, 1
      %p118 = scmp.eq.s32.totalorder %s12, 1
      %p119 = scmp.ne.s32.totalorder %s114, %s116
      %p120 = scmp.eq.s32.totalorder %s12, 0
      %p121 = por %p119, %p120
      %p122 = scmp.ne.s32.totalorder %s114, %s116
      %p123 = scmp.eq.s32.totalorder %s17, 1
      %p124 = por %p122, %p123
      %p125 = scmp.ne.s32.totalorder %s116, %s117
      %p126 = scmp.eq.s32.totalorder %s17, 0
      %p127 = por %p125, %p126
      %p128 = scmp.ne.s32.totalorder %s116, %s117
      %p129 = scmp.eq.s32.totalorder %s18, 1
      %p130 = por %p128, %p129
      %p132 = scmp.ne.s32.totalorder %s117, %s131
      %p133 = scmp.eq.s32.totalorder %s18, 0
      %p134 = por %p132, %p133
      %s135 = ssub.s32 %s12, %s19
      %p136 = scmp.eq.s32.totalorder %s135, 0
      %s138 = sadd.s32 %s137, 1
      %s139 = scalar_select %p136, %s137, %s138
      %p142 = pneg %p136
      %p143 = scmp.eq.s32.totalorder %s12, 1
      %p144 = por %p142, %p143
      %p145 = scmp.ne.s32.totalorder %s137, %s140
      %p146 = scmp.eq.s32.totalorder %s12, 0
      %p147 = por %p145, %p146
      %p148 = scmp.ne.s32.totalorder %s137, %s140
      %p149 = scmp.eq.s32.totalorder %s17, 1
      %p150 = por %p148, %p149
      %p151 = scmp.ne.s32.totalorder %s140, %s141
      %p152 = scmp.eq.s32.totalorder %s17, 0
      %p153 = por %p151, %p152
      %p154 = scmp.ne.s32.totalorder %s140, %s141
      %p155 = scmp.eq.s32.totalorder %s18, 1
      %p156 = por %p154, %p155
      %p158 = scmp.ne.s32.totalorder %s141, %s157
      %p159 = scmp.eq.s32.totalorder %s18, 0
      %p160 = por %p158, %p159
      %s161 = ssub.s32 %s12, %s19
      %p162 = scmp.eq.s32.totalorder %s161, 0
      %s164 = sadd.s32 %s163, 1
      %s165 = scalar_select %p162, %s163, %s164
      %p168 = pneg %p162
      %p169 = scmp.eq.s32.totalorder %s12, 1
      %p170 = por %p168, %p169
      %p171 = scmp.ne.s32.totalorder %s163, %s166
      %p172 = scmp.eq.s32.totalorder %s12, 0
      %p173 = por %p171, %p172
      %p174 = scmp.ne.s32.totalorder %s163, %s166
      %p175 = scmp.eq.s32.totalorder %s17, 1
      %p176 = por %p174, %p175
      %p177 = scmp.ne.s32.totalorder %s166, %s167
      %p178 = scmp.eq.s32.totalorder %s17, 0
      %p179 = por %p177, %p178
      %p180 = scmp.ne.s32.totalorder %s166, %s167
      %p181 = scmp.eq.s32.totalorder %s18, 1
      %p182 = por %p180, %p181
      %p184 = scmp.ne.s32.totalorder %s167, %s183
      %p185 = scmp.eq.s32.totalorder %s18, 0
      %p186 = por %p184, %p185
      %p187 = scmp.le.s32.totalorder 1, %s12
      %p188 = scmp.lt.s32.totalorder %s12, 3
      %p189 = pnand %p187, %p188
      %p190 = pneg %p189
      // Predicated region
      $region9: #{bottleneck_forward.16} parent=5 // pred_check
        _
      $region10: #{bottleneck_forward.16} parent=5 // pred_check_branch
        %192 = sbr.rel (%p189) target = $region12
      $region11: #{bottleneck_forward.16} parent=5 // pred_region
        %s193 = ssub.s32 %s12, 1
        // Predicated region
        $region13: #{bottleneck_forward.16} parent=11 // pred_check
          %p194 = pneg %p33
        $region14: #{bottleneck_forward.16} parent=11 // pred_check_branch
          %196 = sbr.rel (%p194) target = $region16
        $region15: #{bottleneck_forward.16} parent=11 // pred_region
          _
        $region16: #{bottleneck_forward.16} parent=11 // pred_fallthru
          _
        // Predicated region
        $region17: #{bottleneck_forward.16} parent=11 // pred_check
          %p197 = pneg %p106
        $region18: #{bottleneck_forward.16} parent=11 // pred_check_branch
          %199 = sbr.rel (%p197) target = $region20
        $region19: #{bottleneck_forward.16} parent=11 // pred_region
          _
        $region20: #{bottleneck_forward.16} parent=11 // pred_fallthru
          _
        // Predicated region
        $region21: #{bottleneck_forward.16} parent=11 // pred_check
          %p200 = pneg %p127
        $region22: #{bottleneck_forward.16} parent=11 // pred_check_branch
          %202 = sbr.rel (%p200) target = $region24
        $region23: #{bottleneck_forward.16} parent=11 // pred_region
          _
        $region24: #{bottleneck_forward.16} parent=11 // pred_fallthru
          _
      $region12: #{bottleneck_forward.16} parent=5 // pred_fallthru
        _
      %p203 = scmp.lt.s32.totalorder %s12, 2
      // Predicated region
      $region25: #{bottleneck_forward.16} parent=5 // pred_check
        %p204 = pneg %p203
      $region26: #{bottleneck_forward.16} parent=5 // pred_check_branch
        %206 = sbr.rel (%p204) target = $region28
      $region27: #{bottleneck_forward.16} parent=5 // pred_region
        // Predicated region
        $region29: #{bottleneck_forward.16} parent=27 // pred_check
          %p207 = pneg %p53
        $region30: #{bottleneck_forward.16} parent=27 // pred_check_branch
          %209 = sbr.rel (%p207) target = $region32
        $region31: #{bottleneck_forward.16} parent=27 // pred_region
          %s210 = smul.u32 2, %s12
          %p211 = scmp.lt.s32.totalorder %s210, 3
          %s212 = scalar_select %p211, %s210, 3
          %s213 = smul.addr %s212, 4
          %s214 = scalar_lea.vmem %s1, %s213
          %s215 = smul.u32 2, %s12
        $region32: #{bottleneck_forward.16} parent=27 // pred_fallthru
          _
        // Predicated region
        $region33: #{bottleneck_forward.16} parent=27 // pred_check
          %p216 = pneg %p79
        $region34: #{bottleneck_forward.16} parent=27 // pred_check_branch
          %218 = sbr.rel (%p216) target = $region36
        $region35: #{bottleneck_forward.16} parent=27 // pred_region
          %s219 = sand.u32 %s69, 1
          %s220 = sand.u32 %s69, 1
          %s221 = smul.addr %s220, 32
          %s222 = scalar_lea.vmem [#allocation2], %s221
          %s223 = smul.u32 2, %s12
          %s224 = smul.addr %s223, 4
          %s225 = scalar_lea.vmem %s2, %s224
          // Predicated region
          $region37: #{bottleneck_forward.16} parent=35 // pred_check
            _
          $region38: #{bottleneck_forward.16} parent=35 // pred_check_branch
            %227 = sbr.rel (0) target = $region40
          $region39: #{bottleneck_forward.16} parent=35 // pred_region
            // Predicated region
            $region41: #{bottleneck_forward.16} parent=39 // pred_check
              _
            $region42: #{bottleneck_forward.16} parent=39 // pred_check_branch
              %229 = sbr.rel (0) target = $region44
            $region43: #{bottleneck_forward.16} parent=39 // pred_region
              // Predicated region
              $region56: #{bottleneck_forward.16} parent=43 // pred_check
                _
              $region57: #{bottleneck_forward.16} parent=43 // pred_check_branch
                %250 = sbr.rel (0) target = $region59
              $region58: #{bottleneck_forward.16} parent=43 // pred_region
                loop: start=0, step=1, limit=1
                $region60: #{bottleneck_forward.16} parent=58 // loop_pre_header
                  _
                $region61: #{bottleneck_forward.16} parent=58 // loop_header
                  %s252 = sphi 0, %s256
                  %p253 = scmp.ge.s32.totalorder %s252, 1
                  %s257 = sphi %s225, %s225
                  %s258 = sphi %s222, %s222
                $region62: #{bottleneck_forward.16} parent=58 // loop_header_branch
                  %255 = sbr.rel (%p253) target = $region66
                $region63: #{bottleneck_forward.16} parent=58 // loop_body
                  %v259 = vld [vmem:[%s257] sm:$0xff]
                  %260 = vst [vmem:[%s258] sm:$0xff] %v259
                  %v261 = vld [vmem:[%s257 + $0x10] sm:$0xff]
                  %262 = vst [vmem:[%s258 + $0x8] sm:$0xff] %v261
                  %v263 = vld [vmem:[%s257 + $0x20] sm:$0xff]
                  %264 = vst [vmem:[%s258 + $0x10] sm:$0xff] %v263
                  %v265 = vld [vmem:[%s257 + $0x30] sm:$0xff]
                  %266 = vst [vmem:[%s258 + $0x18] sm:$0xff] %v265
                $region64: #{bottleneck_forward.16} parent=58 // loop_footer
                  %s256 = sadd.s32 1, %s252
                $region65: #{bottleneck_forward.16} parent=58 // loop_footer_branch
                  %251 = sbr.rel target = $region61
                $region66: #{bottleneck_forward.16} parent=58 // loop_exit
                  _
              $region59: #{bottleneck_forward.16} parent=43 // pred_fallthru
                _
              // Predicated region
              $region67: #{bottleneck_forward.16} parent=43 // pred_check
                _
              $region68: #{bottleneck_forward.16} parent=43 // pred_check_branch
                %268 = sbr.rel target = $region70
              $region69: #{bottleneck_forward.16} parent=43 // pred_region
                _
              $region70: #{bottleneck_forward.16} parent=43 // pred_fallthru
                _
            $region44: #{bottleneck_forward.16} parent=39 // pred_fallthru
              _
            // Predicated region
            $region45: #{bottleneck_forward.16} parent=39 // pred_check
              _
            $region46: #{bottleneck_forward.16} parent=39 // pred_check_branch
              %231 = sbr.rel target = $region48
            $region47: #{bottleneck_forward.16} parent=39 // pred_region
              loop: start=0, step=1, limit=1
              $region49: #{bottleneck_forward.16} parent=47 // loop_pre_header
                _
              $region50: #{bottleneck_forward.16} parent=47 // loop_header
                %s234 = sphi 0, %s238
                %p235 = scmp.ge.s32.totalorder %s234, 1
                %s239 = sphi %s225, %s225
                %s240 = sphi %s222, %s222
              $region51: #{bottleneck_forward.16} parent=47 // loop_header_branch
                %237 = sbr.rel (%p235) target = $region55
              $region52: #{bottleneck_forward.16} parent=47 // loop_body
                %v241 = vld [vmem:[%s239] sm:$0xff]
                %242 = vst [vmem:[%s240] sm:$0xff] %v241
                %v243 = vld [vmem:[%s239 + $0x10] sm:$0xff]
                %244 = vst [vmem:[%s240 + $0x8] sm:$0xff] %v243
                %v245 = vld [vmem:[%s239 + $0x20] sm:$0xff]
                %246 = vst [vmem:[%s240 + $0x10] sm:$0xff] %v245
                %v247 = vld [vmem:[%s239 + $0x30] sm:$0xff]
                %248 = vst [vmem:[%s240 + $0x18] sm:$0xff] %v247
              $region53: #{bottleneck_forward.16} parent=47 // loop_footer
                %s238 = sadd.s32 1, %s234
              $region54: #{bottleneck_forward.16} parent=47 // loop_footer_branch
                %233 = sbr.rel target = $region50
              $region55: #{bottleneck_forward.16} parent=47 // loop_exit
                _
            $region48: #{bottleneck_forward.16} parent=39 // pred_fallthru
              _
          $region40: #{bottleneck_forward.16} parent=35 // pred_fallthru
            _
          %269 = vnop
        $region36: #{bottleneck_forward.16} parent=27 // pred_fallthru
          _
        // Predicated region
        $region71: #{bottleneck_forward.16} parent=27 // pred_check
          %p270 = pneg %p147
        $region72: #{bottleneck_forward.16} parent=27 // pred_check_branch
          %272 = sbr.rel (%p270) target = $region74
        $region73: #{bottleneck_forward.16} parent=27 // pred_region
          %s273 = sand.u32 %s137, 1
          %s274 = sand.u32 %s137, 1
          %s275 = smul.addr %s274, 64
          %s276 = scalar_lea.vmem [#allocation3], %s275
          %s277 = smul.u32 2, %s12
          %s278 = smul.addr %s277, 8
          %s279 = scalar_lea.vmem %s5, %s278
          // Predicated region
          $region75: #{bottleneck_forward.16} parent=73 // pred_check
            _
          $region76: #{bottleneck_forward.16} parent=73 // pred_check_branch
            %281 = sbr.rel (0) target = $region78
          $region77: #{bottleneck_forward.16} parent=73 // pred_region
            // Predicated region
            $region79: #{bottleneck_forward.16} parent=77 // pred_check
              _
            $region80: #{bottleneck_forward.16} parent=77 // pred_check_branch
              %283 = sbr.rel (0) target = $region82
            $region81: #{bottleneck_forward.16} parent=77 // pred_region
              loop: start=0, step=1, limit=1
              $region83: #{bottleneck_forward.16} parent=81 // loop_pre_header
                _
              $region84: #{bottleneck_forward.16} parent=81 // loop_header
                %s285 = sphi 0, %s289
                %p286 = scmp.ge.s32.totalorder %s285, 1
                %s290 = sphi %s279, %s279
                %s291 = sphi %s276, %s276
              $region85: #{bottleneck_forward.16} parent=81 // loop_header_branch
                %288 = sbr.rel (%p286) target = $region89
              $region86: #{bottleneck_forward.16} parent=81 // loop_body
                %v292 = vld [vmem:[%s290] sm:$0xff]
                %293 = vst [vmem:[%s291] sm:$0xff] %v292
                %v294 = vld [vmem:[%s290 + $0x8] sm:$0xff]
                %295 = vst [vmem:[%s291 + $0x8] sm:$0xff] %v294
                %v296 = vld [vmem:[%s290 + $0x20] sm:$0xff]
                %297 = vst [vmem:[%s291 + $0x10] sm:$0xff] %v296
                %v298 = vld [vmem:[%s290 + $0x28] sm:$0xff]
                %299 = vst [vmem:[%s291 + $0x18] sm:$0xff] %v298
                %v300 = vld [vmem:[%s290 + $0x40] sm:$0xff]
                %301 = vst [vmem:[%s291 + $0x20] sm:$0xff] %v300
                %v302 = vld [vmem:[%s290 + $0x48] sm:$0xff]
                %303 = vst [vmem:[%s291 + $0x28] sm:$0xff] %v302
                %v304 = vld [vmem:[%s290 + $0x60] sm:$0xff]
                %305 = vst [vmem:[%s291 + $0x30] sm:$0xff] %v304
                %v306 = vld [vmem:[%s290 + $0x68] sm:$0xff]
                %307 = vst [vmem:[%s291 + $0x38] sm:$0xff] %v306
              $region87: #{bottleneck_forward.16} parent=81 // loop_footer
                %s289 = sadd.s32 1, %s285
              $region88: #{bottleneck_forward.16} parent=81 // loop_footer_branch
                %284 = sbr.rel target = $region84
              $region89: #{bottleneck_forward.16} parent=81 // loop_exit
                _
            $region82: #{bottleneck_forward.16} parent=77 // pred_fallthru
              _
            // Predicated region
            $region90: #{bottleneck_forward.16} parent=77 // pred_check
              _
            $region91: #{bottleneck_forward.16} parent=77 // pred_check_branch
              %309 = sbr.rel target = $region93
            $region92: #{bottleneck_forward.16} parent=77 // pred_region
              _
            $region93: #{bottleneck_forward.16} parent=77 // pred_fallthru
              _
          $region78: #{bottleneck_forward.16} parent=73 // pred_fallthru
            _
          %310 = vnop
        $region74: #{bottleneck_forward.16} parent=27 // pred_fallthru
          _
      $region28: #{bottleneck_forward.16} parent=5 // pred_fallthru
        _
      %p311 = scmp.le.s32.totalorder 1, %s12
      %p312 = scmp.lt.s32.totalorder %s12, 3
      %p313 = pnand %p311, %p312
      %p314 = pneg %p313
      // Predicated region
      $region94: #{bottleneck_forward.16} parent=5 // pred_check
        _
      $region95: #{bottleneck_forward.16} parent=5 // pred_check_branch
        %316 = sbr.rel (%p313) target = $region97
      $region96: #{bottleneck_forward.16} parent=5 // pred_region
        %s317 = ssub.s32 %s12, 1
        %s318 = sand.u32 %s72, 1
        %s319 = sand.u32 %s72, 1
        %s320 = smul.addr %s319, 32
        %s321 = scalar_lea.vmem [#allocation2], %s320
        // Predicated region
        $region98: #{bottleneck_forward.16} parent=96 // pred_check
          %p322 = pneg %p85
        $region99: #{bottleneck_forward.16} parent=96 // pred_check_branch
          %324 = sbr.rel (%p322) target = $region101
        $region100: #{bottleneck_forward.16} parent=96 // pred_region
          _
        $region101: #{bottleneck_forward.16} parent=96 // pred_fallthru
          _
        %s325 = sand.u32 %s140, 1
        %s326 = sand.u32 %s140, 1
        %s327 = smul.addr %s326, 64
        %s328 = scalar_lea.vmem [#allocation3], %s327
        // Predicated region
        $region102: #{bottleneck_forward.16} parent=96 // pred_check
          %p329 = pneg %p153
        $region103: #{bottleneck_forward.16} parent=96 // pred_check_branch
          %331 = sbr.rel (%p329) target = $region105
        $region104: #{bottleneck_forward.16} parent=96 // pred_region
          _
        $region105: #{bottleneck_forward.16} parent=96 // pred_fallthru
          _
        %p332 = pneg %p33
        %p333 = pneg %p30
        %s334 = smul.u32 2, %s17
        %p335 = scmp.lt.s32.totalorder %s334, 3
        %s336 = scalar_select %p335, %s334, 3
        %s337 = smul.addr %s336, 4
        %s338 = scalar_lea.vmem %s1, %s337
        %p339 = pneg %p59
        %p340 = pneg %p56
        %s341 = sand.u32 %s72, 1
        %s342 = sand.u32 %s72, 1
        %s343 = smul.addr %s342, 32
        %s344 = scalar_lea.vmem [#allocation2], %s343
        %p345 = pneg %p85
        %p346 = pneg %p82
        %p347 = pneg %p106
        %p348 = pneg %p103
        %p349 = pneg %p127
        %p350 = pneg %p124
        %s351 = sand.u32 %s140, 1
        %s352 = sand.u32 %s140, 1
        %s353 = smul.addr %s352, 64
        %s354 = scalar_lea.vmem [#allocation3], %s353
        %p355 = pneg %p153
        %p356 = pneg %p150
        %p357 = pneg %p179
        %p358 = pneg %p176
        %s359 = sand.u32 %s166, 1
        %s360 = sand.u32 %s166, 1
        %s361 = smul.addr %s360, 64
        %s362 = scalar_lea.vmem [#allocation4], %s361
        %s363 = smul.u32 2, %s17
        %p364 = scmp.lt.s32.totalorder %s363, 3
        %s365 = scalar_select %p364, %s363, 3
        %s366 = smul.addr %s365, 4
        %s367 = scalar_lea.vmem %s1, %s366
        %s368 = smul.u32 2, %s17
        %s369 = smul.u32 2, %s17
        %s370 = smul.u32 2, %s17
        %s371 = smul.u32 2, %s17
        %v373 = vld [vmem:[%s0] sm:$0xf]
        %v374 = vld [vmem:[%s0 + $0x4] sm:$0xf]
        %v375 = vld [vmem:[%s0 + $0x8] sm:$0xf]
        %v376 = vld [vmem:[%s0 + $0xc] sm:$0xf]
        %v377 = vld [vmem:[%s367] sm:$0xff]
        %v378 = vld [vmem:[%s321] sm:$0xff]
        %v379 = vld [vmem:[%s321 + $0x8] sm:$0xff]
        %v380 = vld [vmem:[%s321 + $0x10] sm:$0xff]
        %v381 = vld [vmem:[%s321 + $0x18] sm:$0xff]
        %v382 = vunpack.c.l.bf16 %v378
        %v383 = vunpack.c.h.bf16 %v378
        %v384 = vunpack.c.l.bf16 %v379
        %v385 = vunpack.c.h.bf16 %v379
        %v386 = vunpack.c.l.bf16 %v380
        %v387 = vunpack.c.h.bf16 %v380
        %v388 = vunpack.c.l.bf16 %v381
        %v389 = vunpack.c.h.bf16 %v381
        %v394 = vunpack.c.l.b16 %v373
        %v395 = vunpack.c.l.b16 %v374
        %v396 = vunpack.c.l.b16 %v375
        %v397 = vunpack.c.l.b16 %v376
        %v398 = vpack.c.b16 %v395, %v394
        %v399 = vpack.c.b16 %v397, %v396
        %v401 = vunpack.c.l.b16 %v377
        %v402 = vunpack.c.h.b16 %v377
        %v403 = vpack.c.b16 %v401, %v401
        %v404 = vpack.c.b16 %v402, %v402
        %vm405 = vcmask 64512
        %v407 = vsel %vm405, %v398, 0
        %v410 = vsel %vm405, %v399, 0
        %vm412 = vcmask 1043456
        %v414 = vsel %vm412, %v403, 0
        %v417 = vsel %vm412, %v404, 0
        %419 = vmatprep.subr.bf16.mxu0 %v417
        %420 = vmatpush1.bf16.msra.mxu0 %v414
        %421 = vmatprep.subr.bf16.mxu0 0
        %422 = vmatpush1.bf16.msra.mxu0 0
        %423 = vmatprep.subr.bf16.mxu0 0
        %424 = vmatpush1.bf16.msra.mxu0 0
        %425 = vmatprep.subr.bf16.mxu0 0
        %426 = vmatpush1.bf16.msra.mxu0 0
        %427 = vmatprep.subr.bf16.mxu0 0
        %428 = vmatpush1.bf16.msra.mxu0 0
        %429 = vmatprep.subr.bf16.mxu0 0
        %430 = vmatpush1.bf16.msra.mxu0 0
        %431 = vmatprep.subr.bf16.mxu0 0
        %432 = vmatpush1.bf16.msra.mxu0 0
        %433 = vmatprep.subr.bf16.mxu0 0
        %434 = vmatpush1.bf16.msra.mxu0 0
        %435 = vmatprep.subr.bf16.mxu0 0
        %436 = vmatpush1.bf16.msra.mxu0 0
        %437 = vmatprep.subr.bf16.mxu0 0
        %438 = vmatpush1.bf16.msra.mxu0 0
        %439 = vmatprep.subr.bf16.mxu0 0
        %440 = vmatpush1.bf16.msra.mxu0 0
        %441 = vmatprep.subr.bf16.mxu0 0
        %442 = vmatpush1.bf16.msra.mxu0 0
        %443 = vmatprep.subr.bf16.mxu0 0
        %444 = vmatpush1.bf16.msra.mxu0 0
        %445 = vmatprep.subr.bf16.mxu0 0
        %446 = vmatpush1.bf16.msra.mxu0 0
        %447 = vmatprep.subr.bf16.mxu0 0
        %448 = vmatpush1.bf16.msra.mxu0 0
        %449 = vmatprep.subr.bf16.mxu0 0
        %450 = vmatpush1.bf16.msra.mxu0 0
        %451 = vmatprep.mubr.bf16.mxu0 0
        %452 = vmatmul.mubr.bf16.gmra.mrb[0].mxu0 %v407
        %v453 = vpop.f32.mrb[0].mxu0
        %v454 = vadd.f32 %v382, %v453
        %v455 = vpop.f32.mrb[0].mxu0
        %v456 = vadd.f32 %v383, %v455
        %v457 = vpop.f32.mrb[0].mxu0
        %v458 = vadd.f32 %v384, %v457
        %v459 = vpop.f32.mrb[0].mxu0
        %v460 = vadd.f32 %v385, %v459
        %461 = vmatprep.mubr.bf16.mxu0 0
        %462 = vmatmul.mubr.bf16.gmra.mrb[0].mxu0 %v410
        %v463 = vpop.f32.mrb[0].mxu0
        %v464 = vadd.f32 %v386, %v463
        %v465 = vpop.f32.mrb[0].mxu0
        %v466 = vadd.f32 %v387, %v465
        %v467 = vpop.f32.mrb[0].mxu0
        %v468 = vadd.f32 %v388, %v467
        %v469 = vpop.f32.mrb[0].mxu0
        %v470 = vadd.f32 %v389, %v469
        %471 = vdwg.mxu0
        %v472 = vld [vmem:[%s3] sm:$0xff]
        %v473 = vld [vmem:[%s3 + $0x8] sm:$0xff]
        %v474 = vld [vmem:[%s3 + $0x10] sm:$0xff]
        %v475 = vld [vmem:[%s3 + $0x18] sm:$0xff]
        %477 = vset.pattern.permute.xlu0 0
        %478 = vperm.xlu0 %477, %v472
        %v479 = vpop.permute.xlu0 %478
        %482 = vset.pattern.permute.xlu0 0
        %483 = vperm.xlu0 %482, %v473
        %v484 = vpop.permute.xlu0 %483
        %487 = vset.pattern.permute.xlu0 0
        %488 = vperm.xlu0 %487, %v474
        %v489 = vpop.permute.xlu0 %488
        %492 = vset.pattern.permute.xlu0 0
        %493 = vperm.xlu0 %492, %v475
        %v494 = vpop.permute.xlu0 %493
        %v496 = vmul.f32 %v454, %v479
        %v497 = vmul.f32 %v456, %v479
        %v498 = vmul.f32 %v458, %v484
        %v499 = vmul.f32 %v460, %v484
        %v500 = vmul.f32 %v464, %v489
        %v501 = vmul.f32 %v466, %v489
        %v502 = vmul.f32 %v468, %v494
        %v503 = vmul.f32 %v470, %v494
        %v504 = vld [vmem:[%s4] sm:$0xff]
        %v505 = vld [vmem:[%s4 + $0x8] sm:$0xff]
        %v506 = vld [vmem:[%s4 + $0x10] sm:$0xff]
        %v507 = vld [vmem:[%s4 + $0x18] sm:$0xff]
        %509 = vset.pattern.permute.xlu0 0
        %510 = vperm.xlu0 %509, %v504
        %v511 = vpop.permute.xlu0 %510
        %514 = vset.pattern.permute.xlu0 0
        %515 = vperm.xlu0 %514, %v505
        %v516 = vpop.permute.xlu0 %515
        %519 = vset.pattern.permute.xlu0 0
        %520 = vperm.xlu0 %519, %v506
        %v521 = vpop.permute.xlu0 %520
        %524 = vset.pattern.permute.xlu0 0
        %525 = vperm.xlu0 %524, %v507
        %v526 = vpop.permute.xlu0 %525
        %v528 = vadd.f32 %v496, %v511
        %v529 = vadd.f32 %v497, %v511
        %v530 = vadd.f32 %v498, %v516
        %v531 = vadd.f32 %v499, %v516
        %v532 = vadd.f32 %v500, %v521
        %v533 = vadd.f32 %v501, %v521
        %v534 = vadd.f32 %v502, %v526
        %v535 = vadd.f32 %v503, %v526
        %v536 = vld [vmem:[%s328] sm:$0xff]
        %v537 = vld [vmem:[%s328 + $0x8] sm:$0xff]
        %v538 = vld [vmem:[%s328 + $0x10] sm:$0xff]
        %v539 = vld [vmem:[%s328 + $0x18] sm:$0xff]
        %v540 = vld [vmem:[%s328 + $0x20] sm:$0xff]
        %v541 = vld [vmem:[%s328 + $0x28] sm:$0xff]
        %v542 = vld [vmem:[%s328 + $0x30] sm:$0xff]
        %v543 = vld [vmem:[%s328 + $0x38] sm:$0xff]
        %v544 = vadd.f32 %v528, %v536
        %v545 = vadd.f32 %v529, %v537
        %v546 = vadd.f32 %v530, %v538
        %v547 = vadd.f32 %v531, %v539
        %v548 = vadd.f32 %v532, %v540
        %v549 = vadd.f32 %v533, %v541
        %v550 = vadd.f32 %v534, %v542
        %v551 = vadd.f32 %v535, %v543
        %v552 = vmax.f32 %v544, 0.0
        %v553 = vmax.f32 %v545, 0.0
        %v554 = vmax.f32 %v546, 0.0
        %v555 = vmax.f32 %v547, 0.0
        %v556 = vmax.f32 %v548, 0.0
        %v557 = vmax.f32 %v549, 0.0
        %v558 = vmax.f32 %v550, 0.0
        %v559 = vmax.f32 %v551, 0.0
        %560 = vst [vmem:[%s362] sm:$0xff] %v552
        %561 = vst [vmem:[%s362 + $0x8] sm:$0xff] %v553
        %562 = vst [vmem:[%s362 + $0x10] sm:$0xff] %v554
        %563 = vst [vmem:[%s362 + $0x18] sm:$0xff] %v555
        %564 = vst [vmem:[%s362 + $0x20] sm:$0xff] %v556
        %565 = vst [vmem:[%s362 + $0x28] sm:$0xff] %v557
        %566 = vst [vmem:[%s362 + $0x30] sm:$0xff] %v558
        %567 = vst [vmem:[%s362 + $0x38] sm:$0xff] %v559
        %s568 = sand.u32 %s166, 1
        %s569 = sand.u32 %s166, 1
        %s570 = smul.addr %s569, 64
        %s571 = scalar_lea.vmem [#allocation4], %s570
        // Predicated region
        $region106: #{bottleneck_forward.16} parent=96 // pred_check
          %p572 = pneg %p176
        $region107: #{bottleneck_forward.16} parent=96 // pred_check_branch
          %574 = sbr.rel (%p572) target = $region109
        $region108: #{bottleneck_forward.16} parent=96 // pred_region
          %s575 = smul.u32 2, %s17
          %s576 = smul.addr %s575, 8
          %s577 = scalar_lea.vmem %s6, %s576
          // Predicated region
          $region110: #{bottleneck_forward.16} parent=108 // pred_check
            _
          $region111: #{bottleneck_forward.16} parent=108 // pred_check_branch
            %579 = sbr.rel (0) target = $region113
          $region112: #{bottleneck_forward.16} parent=108 // pred_region
            // Predicated region
            $region114: #{bottleneck_forward.16} parent=112 // pred_check
              _
            $region115: #{bottleneck_forward.16} parent=112 // pred_check_branch
              %581 = sbr.rel (0) target = $region117
            $region116: #{bottleneck_forward.16} parent=112 // pred_region
              loop: start=0, step=1, limit=1
              $region118: #{bottleneck_forward.16} parent=116 // loop_pre_header
                _
              $region119: #{bottleneck_forward.16} parent=116 // loop_header
                %s583 = sphi 0, %s587
                %p584 = scmp.ge.s32.totalorder %s583, 1
                %s588 = sphi %s571, %s571
                %s589 = sphi %s577, %s577
              $region120: #{bottleneck_forward.16} parent=116 // loop_header_branch
                %586 = sbr.rel (%p584) target = $region124
              $region121: #{bottleneck_forward.16} parent=116 // loop_body
                %v590 = vld [vmem:[%s588] sm:$0xff]
                %591 = vst [vmem:[%s589] sm:$0xff] %v590
                %v592 = vld [vmem:[%s588 + $0x8] sm:$0xff]
                %593 = vst [vmem:[%s589 + $0x8] sm:$0xff] %v592
                %v594 = vld [vmem:[%s588 + $0x10] sm:$0xff]
                %595 = vst [vmem:[%s589 + $0x20] sm:$0xff] %v594
                %v596 = vld [vmem:[%s588 + $0x18] sm:$0xff]
                %597 = vst [vmem:[%s589 + $0x28] sm:$0xff] %v596
                %v598 = vld [vmem:[%s588 + $0x20] sm:$0xff]
                %599 = vst [vmem:[%s589 + $0x40] sm:$0xff] %v598
                %v600 = vld [vmem:[%s588 + $0x28] sm:$0xff]
                %601 = vst [vmem:[%s589 + $0x48] sm:$0xff] %v600
                %v602 = vld [vmem:[%s588 + $0x30] sm:$0xff]
                %603 = vst [vmem:[%s589 + $0x60] sm:$0xff] %v602
                %v604 = vld [vmem:[%s588 + $0x38] sm:$0xff]
                %605 = vst [vmem:[%s589 + $0x68] sm:$0xff] %v604
              $region122: #{bottleneck_forward.16} parent=116 // loop_footer
                %s587 = sadd.s32 1, %s583
              $region123: #{bottleneck_forward.16} parent=116 // loop_footer_branch
                %582 = sbr.rel target = $region119
              $region124: #{bottleneck_forward.16} parent=116 // loop_exit
                _
            $region117: #{bottleneck_forward.16} parent=112 // pred_fallthru
              _
            // Predicated region
            $region125: #{bottleneck_forward.16} parent=112 // pred_check
              _
            $region126: #{bottleneck_forward.16} parent=112 // pred_check_branch
              %607 = sbr.rel target = $region128
            $region127: #{bottleneck_forward.16} parent=112 // pred_region
              _
            $region128: #{bottleneck_forward.16} parent=112 // pred_fallthru
              _
          $region113: #{bottleneck_forward.16} parent=108 // pred_fallthru
            _
          %608 = vnop
        $region109: #{bottleneck_forward.16} parent=96 // pred_fallthru
          _
      $region97: #{bottleneck_forward.16} parent=5 // pred_fallthru
        _
      %p609 = scmp.le.s32.totalorder 2, %s12
      // Predicated region
      $region129: #{bottleneck_forward.16} parent=5 // pred_check
        %p610 = pneg %p609
      $region130: #{bottleneck_forward.16} parent=5 // pred_check_branch
        %612 = sbr.rel (%p610) target = $region132
      $region131: #{bottleneck_forward.16} parent=5 // pred_region
        %s613 = ssub.s32 %s12, 2
        // Predicated region
        $region133: #{bottleneck_forward.16} parent=131 // pred_check
          %p614 = pneg %p182
        $region134: #{bottleneck_forward.16} parent=131 // pred_check_branch
          %616 = sbr.rel (%p614) target = $region136
        $region135: #{bottleneck_forward.16} parent=131 // pred_region
          %s617 = sand.u32 %s167, 1
          %s618 = sand.u32 %s167, 1
          %s619 = smul.addr %s618, 64
          %s620 = scalar_lea.vmem [#allocation4], %s619
        $region136: #{bottleneck_forward.16} parent=131 // pred_fallthru
          _
      $region132: #{bottleneck_forward.16} parent=5 // pred_fallthru
        _
    $region6: #{bottleneck_forward.16} parent=1 // loop_footer
      %s16 = sadd.s32 1, %s12
    $region7: #{bottleneck_forward.16} parent=1 // loop_footer_branch
      %11 = sbr.rel target = $region3
    $region8: #{bottleneck_forward.16} parent=1 // loop_exit
      _

</llo_original>
